<compile_context>
chip_gen: v6e
topology: v6e:2x2x1
jax: 0.10.0
libtpu: 0.0.40
codegen_flags: <defaults>
</compile_context>

<pallas_src>
import functools

import jax
import jax.numpy as jnp
from jax.experimental import pallas as pl
from jax.experimental.pallas import tpu as pltpu

# Matmul operand dtype for the MXU (accumulation is always f32).
MATMUL_DTYPE = jnp.bfloat16


@functools.lru_cache(maxsize=None)
def _vmem_limit():
    # Generation-aware VMEM budget: ~75% of physical capacity, capped at 100 MiB.
    try:
        cap = pltpu.get_tpu_info().vmem_capacity_bytes
        return int(min(cap * 3 // 4, 100 * 1024 * 1024))
    except Exception:
        return 48 * 1024 * 1024


def _pick_tile(dim, cap, quantum=128):
    """Largest divisor of `dim` that is a multiple of `quantum` and <= cap, else full."""
    if dim <= cap:
        return dim
    t = (cap // quantum) * quantum
    while t >= quantum:
        if dim % t == 0:
            return t
        t -= quantum
    return dim


# ----------------------------- fused linear (+bias +act [+residual +LN]) -----------------


def _epilogue(y, b_ref, res_ref, g_ref, beta_ref, o_ref, activation, ln_eps):
    y = y + b_ref[...].astype(jnp.float32)
    if activation == "gelu":
        # TODO(synk): HF BERT default act is exact (erf) GELU; tanh approximation used here.
        y = 0.5 * y * (1.0 + jnp.tanh(0.7978845608028654 * (y + 0.044715 * y * y * y)))
    elif activation == "tanh":
        y = jnp.tanh(y)
    if res_ref is not None:
        y = y + res_ref[...].astype(jnp.float32)
    if g_ref is not None:  # LayerNorm over the full N row (tn == N on this path)
        mean = jnp.mean(y, axis=-1, keepdims=True)
        var = jnp.mean((y - mean) ** 2, axis=-1, keepdims=True)
        y = (y - mean) * jax.lax.rsqrt(var + ln_eps)
        y = y * g_ref[...].astype(jnp.float32) + beta_ref[...].astype(jnp.float32)
    o_ref[...] = y.astype(o_ref.dtype)


def _split_refs(refs, fuse_res, fuse_ln, has_acc):
    x_ref, w_ref, b_ref = refs[0], refs[1], refs[2]
    i = 3
    res_ref = None
    if fuse_res:
        res_ref = refs[i]
        i += 1
    g_ref = beta_ref = None
    if fuse_ln:
        g_ref, beta_ref = refs[i], refs[i + 1]
        i += 2
    o_ref = refs[i]
    acc_ref = refs[i + 1] if has_acc else None
    return x_ref, w_ref, b_ref, res_ref, g_ref, beta_ref, o_ref, acc_ref


def _linear_nk1_kernel(*refs, activation, fuse_res, fuse_ln, ln_eps):
    x_ref, w_ref, b_ref, res_ref, g_ref, beta_ref, o_ref, _ = _split_refs(
        refs, fuse_res, fuse_ln, has_acc=False)
    y = jnp.dot(x_ref[...].astype(MATMUL_DTYPE), w_ref[...].astype(MATMUL_DTYPE),
                preferred_element_type=jnp.float32)
    _epilogue(y, b_ref, res_ref, g_ref, beta_ref, o_ref, activation, ln_eps)


def _linear_acc_kernel(*refs, activation, fuse_res, fuse_ln, ln_eps, n_k):
    x_ref, w_ref, b_ref, res_ref, g_ref, beta_ref, o_ref, acc_ref = _split_refs(
        refs, fuse_res, fuse_ln, has_acc=True)

    @pl.when(pl.program_id(2) == 0)
    def _init():
        acc_ref[...] = jnp.zeros_like(acc_ref)

    acc_ref[...] += jnp.dot(x_ref[...].astype(MATMUL_DTYPE), w_ref[...].astype(MATMUL_DTYPE),
                            preferred_element_type=jnp.float32)

    @pl.when(pl.program_id(2) == n_k - 1)
    def _finalize():
        _epilogue(acc_ref[...], b_ref, res_ref, g_ref, beta_ref, o_ref, activation, ln_eps)


def linear(x, w, b, activation="none", *, residual=None, ln_g=None, ln_b=None,
           ln_eps=1e-12, out_dtype=None, tm=256, tn=768, tk=512):
    """y = act(x @ w + b) [+ residual, then LayerNorm] with x:(M,K), w:(K,N), b:(N,)."""
    m, k = x.shape
    _, n = w.shape
    out_dtype = x.dtype if out_dtype is None else out_dtype
    fuse_res = residual is not None
    fuse_ln = ln_g is not None
    if fuse_ln:
        tn = n  # LN needs the full output row resident in one block.
    tm = m if m <= tm else tm
    tn = _pick_tile(n, tn, 128)
    tk = _pick_tile(k, tk, 128)
    n_k = k // tk

    b2 = b.reshape(1, n).astype(jnp.float32)
    args = [x, w, b2]
    if fuse_res:
        args.append(residual)
    if fuse_ln:
        args += [ln_g.reshape(1, n).astype(jnp.float32),
                 ln_b.reshape(1, n).astype(jnp.float32)]

    if n_k == 1:
        grid = (pl.cdiv(m, tm), n // tn)
        in_specs = [pl.BlockSpec((tm, tk), lambda i, j: (i, 0)),
                    pl.BlockSpec((tk, tn), lambda i, j: (0, j)),
                    pl.BlockSpec((1, tn), lambda i, j: (0, j))]
        if fuse_res:
            in_specs.append(pl.BlockSpec((tm, tn), lambda i, j: (i, j)))
        if fuse_ln:
            in_specs += [pl.BlockSpec((1, tn), lambda i, j: (0, j))] * 2
        out_spec = pl.BlockSpec((tm, tn), lambda i, j: (i, j))
        kern = functools.partial(_linear_nk1_kernel, activation=activation,
                                 fuse_res=fuse_res, fuse_ln=fuse_ln, ln_eps=ln_eps)
        scratch = []
        dims = ("parallel", "parallel")
    else:
        grid = (pl.cdiv(m, tm), n // tn, n_k)
        in_specs = [pl.BlockSpec((tm, tk), lambda i, j, kk: (i, kk)),
                    pl.BlockSpec((tk, tn), lambda i, j, kk: (kk, j)),
                    pl.BlockSpec((1, tn), lambda i, j, kk: (0, j))]
        if fuse_res:
            in_specs.append(pl.BlockSpec((tm, tn), lambda i, j, kk: (i, j)))
        if fuse_ln:
            in_specs += [pl.BlockSpec((1, tn), lambda i, j, kk: (0, j))] * 2
        out_spec = pl.BlockSpec((tm, tn), lambda i, j, kk: (i, j))
        kern = functools.partial(_linear_acc_kernel, activation=activation,
                                 fuse_res=fuse_res, fuse_ln=fuse_ln, ln_eps=ln_eps, n_k=n_k)
        scratch = [pltpu.VMEM((tm, tn), jnp.float32)]
        dims = ("parallel", "parallel", "arbitrary")

    return pl.pallas_call(
        kern,
        out_shape=jax.ShapeDtypeStruct((m, n), out_dtype),
        grid=grid,
        in_specs=in_specs,
        out_specs=out_spec,
        scratch_shapes=scratch,
        compiler_params=pltpu.CompilerParams(
            dimension_semantics=dims, vmem_limit_bytes=_vmem_limit()),
    )(*args)


# ----------------------------- standalone layernorm (embedding output only) --------------


def _layernorm_kernel(x_ref, g_ref, b_ref, o_ref, *, eps):
    x = x_ref[...].astype(jnp.float32)
    mean = jnp.mean(x, axis=-1, keepdims=True)
    var = jnp.mean((x - mean) ** 2, axis=-1, keepdims=True)
    y = (x - mean) * jax.lax.rsqrt(var + eps)
    o_ref[...] = (y * g_ref[...] + b_ref[...]).astype(o_ref.dtype)


def layernorm(x, g, b, eps=1e-12, out_dtype=None, row_tile=256):
    n, h = x.shape
    out_dtype = x.dtype if out_dtype is None else out_dtype
    tm = n if n <= row_tile else row_tile
    row_spec = pl.BlockSpec((tm, h), lambda i: (i, 0))
    vec_spec = pl.BlockSpec((1, h), lambda i: (0, 0))
    return pl.pallas_call(
        functools.partial(_layernorm_kernel, eps=eps),
        out_shape=jax.ShapeDtypeStruct((n, h), out_dtype),
        grid=(pl.cdiv(n, tm),),
        in_specs=[row_spec, vec_spec, vec_spec],
        out_specs=row_spec,
        compiler_params=pltpu.CompilerParams(dimension_semantics=("parallel",)),
    )(x, g.reshape(1, h).astype(jnp.float32), b.reshape(1, h).astype(jnp.float32))


# ----------------------------- attention (reads q/k/v slabs from fused QKV) --------------


def _attention_kernel(q_ref, k_ref, v_ref, m_ref, o_ref, *, hpb, dh):
    mask = m_ref[0]                                   # (1, S) additive bias, f32
    q_all = q_ref[...].astype(MATMUL_DTYPE)           # (S, hpb*Dh); 1/sqrt(Dh) folded into wq
    k_all = k_ref[...].astype(MATMUL_DTYPE)
    v_all = v_ref[...].astype(MATMUL_DTYPE)
    ctx = []
    for hh in range(hpb):
        lo, hi = hh * dh, (hh + 1) * dh
        q = q_all[:, lo:hi]
        k = k_all[:, lo:hi]
        v = v_all[:, lo:hi]
        s = jax.lax.dot_general(q, k, (((1,), (1,)), ((), ())),
                                preferred_element_type=jnp.float32)       # q @ k^T: (S, S)
        s = s + mask
        s = s - jnp.max(s, axis=-1, keepdims=True)
        p = jnp.exp(s)
        p = p * pl.reciprocal(jnp.sum(p, axis=-1, keepdims=True), approx=True)
        ctx.append(jnp.dot(p.astype(MATMUL_DTYPE), v,
                           preferred_element_type=jnp.float32))           # (S, Dh)
    # Single lane-dense store of all heads in this block.
    o_ref[...] = jnp.concatenate(ctx, axis=-1).astype(o_ref.dtype)


def _heads_per_block(nh, dh):
    best = None
    for h in range(1, nh + 1):
        if nh % h == 0 and (h * dh) % 128 == 0 and h * dh <= 512:
            best = h
    if best is None:
        # TODO(synk): lane-aligned head packing needs (hpb*Dh) % 128 == 0; fall back to all heads.
        best = nh
    return best


def scaled_dot_attention(qkv, mask_bias, b, s, nh, dh, hpb):
    """qkv: (B*S, 3H) with columns [q | k | v]; mask_bias: (B, 1, S) -> ctx (B*S, H)."""
    h = nh * dh
    n_hb = nh // hpb
    blk_w = hpb * dh

    def slab(block_off):
        return pl.BlockSpec((s, blk_w), lambda i, j: (i, block_off + j))

    return pl.pallas_call(
        functools.partial(_attention_kernel, hpb=hpb, dh=dh),
        out_shape=jax.ShapeDtypeStruct((b * s, h), qkv.dtype),
        grid=(b, n_hb),
        in_specs=[slab(0), slab(n_hb), slab(2 * n_hb),
                  pl.BlockSpec((1, 1, s), lambda i, j: (i, 0, 0))],
        out_specs=pl.BlockSpec((s, blk_w), lambda i, j: (i, j)),
        compiler_params=pltpu.CompilerParams(
            dimension_semantics=("parallel", "parallel"),
            vmem_limit_bytes=_vmem_limit()),
    )(qkv, qkv, qkv, mask_bias)


# ----------------------------- model -----------------------------


def pairwise_bert_forward(params, input_ids, attention_mask, *, num_heads):
    b, s = input_ids.shape
    h = params["word_emb"].shape[1]
    dh = h // num_heads

    # Embeddings (token gather is glue). token_type_ids default to 0 -> tt_emb[0].
    x = (params["word_emb"][input_ids].astype(jnp.float32)
         + params["pos_emb"][:s][None, :, :].astype(jnp.float32)
         + params["tt_emb"][0][None, None, :].astype(jnp.float32))            # (B, S, H)
    x2 = layernorm(x.reshape(b * s, h), params["emb_ln_g"], params["emb_ln_b"],
                   out_dtype=MATMUL_DTYPE)                                    # (B*S, H) bf16

    # HF-BERT style additive attention-mask bias.
    mask_bias = ((1.0 - attention_mask.astype(jnp.float32)) * -1e4).reshape(b, 1, s)
    hpb = _heads_per_block(num_heads, dh)

    for lp in params["layers"]:
        qkv = linear(x2, lp["wqkv"], lp["bqkv"])                              # (B*S, 3H) bf16
        ctx = scaled_dot_attention(qkv, mask_bias, b, s, num_heads, dh, hpb)  # (B*S, H) bf16
        x2 = linear(ctx, lp["wo"], lp["bo"], residual=x2,
                    ln_g=lp["ln1_g"], ln_b=lp["ln1_b"])                       # LN(x + attn)
        ff = linear(x2, lp["w1"], lp["b1"], activation="gelu")
        x2 = linear(ff, lp["w2"], lp["b2"], residual=x2,
                    ln_g=lp["ln2_g"], ln_b=lp["ln2_b"])                       # LN(x + ff)

    cls = x2.reshape(b, s, h)[:, 0, :]                                        # (B, H)
    pooled = linear(cls, params["wp"], params["bp"], activation="tanh")       # BERT pooler
    sent_repr = linear(pooled, params["wfc"], params["bfc"],
                       out_dtype=jnp.float32)                                 # PairwiseBERT.fc
    return sent_repr


# ----------------------------- params: deterministic init + one-time packing -------------


def init_params(key, *, vocab, max_pos, hidden, n_layers, inter, out_dim):
    def nrm(k, shape):
        return (0.02 * jax.random.normal(k, shape)).astype(jnp.float32)

    keys = iter(jax.random.split(key, 8 + 12 * n_layers))
    params = {
        "word_emb": nrm(next(keys), (vocab, hidden)),
        "pos_emb": nrm(next(keys), (max_pos, hidden)),
        "tt_emb": nrm(next(keys), (2, hidden)),
        "emb_ln_g": jnp.ones((hidden,), jnp.float32),
        "emb_ln_b": jnp.zeros((hidden,), jnp.float32),
        "layers": [],
        "wp": nrm(next(keys), (hidden, hidden)),
        "bp": jnp.zeros((hidden,), jnp.float32),
        "wfc": nrm(next(keys), (hidden, out_dim)),
        "bfc": jnp.zeros((out_dim,), jnp.float32),
    }
    for _ in range(n_layers):
        lp = {
            "wq": nrm(next(keys), (hidden, hidden)), "bq": jnp.zeros((hidden,), jnp.float32),
            "wk": nrm(next(keys), (hidden, hidden)), "bk": jnp.zeros((hidden,), jnp.float32),
            "wv": nrm(next(keys), (hidden, hidden)), "bv": jnp.zeros((hidden,), jnp.float32),
            "wo": nrm(next(keys), (hidden, hidden)), "bo": jnp.zeros((hidden,), jnp.float32),
            "ln1_g": jnp.ones((hidden,), jnp.float32), "ln1_b": jnp.zeros((hidden,), jnp.float32),
            "w1": nrm(next(keys), (hidden, inter)), "b1": jnp.zeros((inter,), jnp.float32),
            "w2": nrm(next(keys), (inter, hidden)), "b2": jnp.zeros((hidden,), jnp.float32),
            "ln2_g": jnp.ones((hidden,), jnp.float32), "ln2_b": jnp.zeros((hidden,), jnp.float32),
        }
        params["layers"].append(lp)
    return params


def prepare_params(raw, *, num_heads):
    """One-time inference packing: bf16 weights, fused+scaled QKV, f32 biases/LN params."""
    hidden = raw["wp"].shape[0]
    dh = hidden // num_heads
    scale = 1.0 / (dh ** 0.5)
    p = {
        "word_emb": raw["word_emb"].astype(MATMUL_DTYPE),
        "pos_emb": raw["pos_emb"].astype(MATMUL_DTYPE),
        "tt_emb": raw["tt_emb"].astype(MATMUL_DTYPE),
        "emb_ln_g": raw["emb_ln_g"], "emb_ln_b": raw["emb_ln_b"],
        "wp": raw["wp"].astype(MATMUL_DTYPE), "bp": raw["bp"],
        "wfc": raw["wfc"].astype(MATMUL_DTYPE), "bfc": raw["bfc"],
        "layers": [],
    }
    for lp in raw["layers"]:
        p["layers"].append({
            # 1/sqrt(Dh) folded into the Q projection (weights + bias).
            "wqkv": jnp.concatenate([lp["wq"] * scale, lp["wk"], lp["wv"]],
                                    axis=1).astype(MATMUL_DTYPE),
            "bqkv": jnp.concatenate([lp["bq"] * scale, lp["bk"], lp["bv"]], axis=0),
            "wo": lp["wo"].astype(MATMUL_DTYPE), "bo": lp["bo"],
            "w1": lp["w1"].astype(MATMUL_DTYPE), "b1": lp["b1"],
            "w2": lp["w2"].astype(MATMUL_DTYPE), "b2": lp["b2"],
            "ln1_g": lp["ln1_g"], "ln1_b": lp["ln1_b"],
            "ln2_g": lp["ln2_g"], "ln2_b": lp["ln2_b"],
        })
    return p


# ----------------------------- main -----------------------------

if __name__ == "__main__":
    B, S = 2, 16
    VOCAB, HIDDEN, N_LAYERS, N_HEADS, INTER, DIM = 100, 128, 2, 2, 256, 64

    key = jax.random.PRNGKey(0)
    k_params, k_ids = jax.random.split(key)
    raw = init_params(k_params, vocab=VOCAB, max_pos=32, hidden=HIDDEN,
                      n_layers=N_LAYERS, inter=INTER, out_dim=DIM)
    params = prepare_params(raw, num_heads=N_HEADS)

    input_ids = jax.random.randint(k_ids, (B, S), 0, VOCAB, dtype=jnp.int32)
    # simple padding mask: last two tokens of batch element 1 are padding
    attention_mask = jnp.array([[1] * S, [1] * (S - 2) + [0, 0]], dtype=jnp.int32)

    fwd = jax.jit(functools.partial(pairwise_bert_forward, num_heads=N_HEADS))
    out = fwd(params, input_ids, attention_mask)
    out = jax.block_until_ready(out)
    assert out.shape == (B, DIM) and out.dtype == jnp.float32
    print("KERNEL_OK")
</pallas_src>

<mosaic_0001>
module attributes {stable_mosaic.version = 11 : i64} {
  func.func @_linear_nk1_kernel(%arg0: i32, %arg1: i32, %arg2: memref<32x128xbf16, #tpu.memory_space<vmem>>, %arg3: memref<128x384xbf16, #tpu.memory_space<vmem>>, %arg4: memref<1x384xf32, #tpu.memory_space<vmem>>, %arg5: memref<32x384xbf16, #tpu.memory_space<vmem>>) attributes {dimension_semantics = [#tpu.dimension_semantics<parallel>, #tpu.dimension_semantics<parallel>], iteration_bounds = array<i64: 1, 1>, scalar_prefetch = 0 : i64, scratch_operands = 0 : i64, tpu.core_type = #tpu.core_type<tc>, window_params = [{transform_indices = @transform_0, window_bounds = array<i64: 32, 128>}, {transform_indices = @transform_1, window_bounds = array<i64: 128, 384>}, {transform_indices = @transform_2, window_bounds = array<i64: 1, 384>}, {transform_indices = @transform_3, window_bounds = array<i64: 32, 384>}]} {
    %c0 = arith.constant 0 : index
    %c0_0 = arith.constant 0 : index
    %0 = vector.load %arg2[%c0, %c0_0] : memref<32x128xbf16, #tpu.memory_space<vmem>>, vector<32x128xbf16>
    %c0_1 = arith.constant 0 : index
    %c0_2 = arith.constant 0 : index
    %1 = vector.load %arg3[%c0_1, %c0_2] : memref<128x384xbf16, #tpu.memory_space<vmem>>, vector<128x384xbf16>
    %cst = arith.constant dense<0.000000e+00> : vector<32x384xf32>
    %2 = tpu.matmul %0, %1, %cst {dimension_numbers = #tpu.dot_dimension_numbers<[1], [0], [0], [1], [0, 0, 1, 1], [], []>} : vector<32x128xbf16>, vector<128x384xbf16>, vector<32x384xf32> -> vector<32x384xf32>
    %c0_3 = arith.constant 0 : index
    %c0_4 = arith.constant 0 : index
    %3 = vector.load %arg4[%c0_3, %c0_4] : memref<1x384xf32, #tpu.memory_space<vmem>>, vector<1x384xf32>
    %4 = vector.broadcast %3 : vector<1x384xf32> to vector<32x384xf32>
    %5 = arith.addf %2, %4 : vector<32x384xf32>
    %6 = arith.truncf %5 : vector<32x384xf32> to vector<32x384xbf16>
    %c0_5 = arith.constant 0 : index
    %c0_6 = arith.constant 0 : index
    %7 = vector.load %arg5[%c0_5, %c0_6] : memref<32x384xbf16, #tpu.memory_space<vmem>>, vector<32x384xbf16>
    tpu.vector_store %arg5[%c0_5, %c0_6], %6 {strides = array<i32>} : memref<32x384xbf16, #tpu.memory_space<vmem>>, vector<32x384xbf16>,
    return
  }
  func.func @transform_0(%arg0: i32, %arg1: i32) -> (i32, i32) {
    %c0_i32 = arith.constant 0 : i32
    %c0_i32_0 = arith.constant 0 : i32
    return %arg0, %c0_i32 : i32, i32
  }
  func.func @transform_1(%arg0: i32, %arg1: i32) -> (i32, i32) {
    %c0_i32 = arith.constant 0 : i32
    %c0_i32_0 = arith.constant 0 : i32
    return %c0_i32, %arg1 : i32, i32
  }
  func.func @transform_2(%arg0: i32, %arg1: i32) -> (i32, i32) {
    %c0_i32 = arith.constant 0 : i32
    %c0_i32_0 = arith.constant 0 : i32
    return %c0_i32, %arg1 : i32, i32
  }
  func.func @transform_3(%arg0: i32, %arg1: i32) -> (i32, i32) {
    %c0_i32 = arith.constant 0 : i32
    return %arg0, %arg1 : i32, i32
  }
}

module attributes {stable_mosaic.version = 11 : i64} {
  func.func @_linear_nk1_kernel(%arg0: i32, %arg1: i32, %arg2: memref<32x128xbf16, #tpu.memory_space<vmem>>, %arg3: memref<128x128xbf16, #tpu.memory_space<vmem>>, %arg4: memref<1x128xf32, #tpu.memory_space<vmem>>, %arg5: memref<32x128xbf16, #tpu.memory_space<vmem>>, %arg6: memref<1x128xf32, #tpu.memory_space<vmem>>, %arg7: memref<1x128xf32, #tpu.memory_space<vmem>>, %arg8: memref<32x128xbf16, #tpu.memory_space<vmem>>) attributes {dimension_semantics = [#tpu.dimension_semantics<parallel>, #tpu.dimension_semantics<parallel>], iteration_bounds = array<i64: 1, 1>, scalar_prefetch = 0 : i64, scratch_operands = 0 : i64, tpu.core_type = #tpu.core_type<tc>, window_params = [{transform_indices = @transform_0, window_bounds = array<i64: 32, 128>}, {transform_indices = @transform_1, window_bounds = array<i64: 128, 128>}, {transform_indices = @transform_2, window_bounds = array<i64: 1, 128>}, {transform_indices = @transform_3, window_bounds = array<i64: 32, 128>}, {transform_indices = @transform_4, window_bounds = array<i64: 1, 128>}, {transform_indices = @transform_5, window_bounds = array<i64: 1, 128>}, {transform_indices = @transform_6, window_bounds = array<i64: 32, 128>}]} {
    %c0 = arith.constant 0 : index
    %c0_0 = arith.constant 0 : index
    %0 = vector.load %arg2[%c0, %c0_0] : memref<32x128xbf16, #tpu.memory_space<vmem>>, vector<32x128xbf16>
    %c0_1 = arith.constant 0 : index
    %c0_2 = arith.constant 0 : index
    %1 = vector.load %arg3[%c0_1, %c0_2] : memref<128x128xbf16, #tpu.memory_space<vmem>>, vector<128x128xbf16>
    %cst = arith.constant dense<0.000000e+00> : vector<32x128xf32>
    %2 = tpu.matmul %0, %1, %cst {dimension_numbers = #tpu.dot_dimension_numbers<[1], [0], [0], [1], [0, 0, 1, 1], [], []>} : vector<32x128xbf16>, vector<128x128xbf16>, vector<32x128xf32> -> vector<32x128xf32>
    %c0_3 = arith.constant 0 : index
    %c0_4 = arith.constant 0 : index
    %3 = vector.load %arg4[%c0_3, %c0_4] : memref<1x128xf32, #tpu.memory_space<vmem>>, vector<1x128xf32>
    %4 = vector.broadcast %3 : vector<1x128xf32> to vector<32x128xf32>
    %5 = arith.addf %2, %4 : vector<32x128xf32>
    %c0_5 = arith.constant 0 : index
    %c0_6 = arith.constant 0 : index
    %6 = vector.load %arg5[%c0_5, %c0_6] : memref<32x128xbf16, #tpu.memory_space<vmem>>, vector<32x128xbf16>
    %7 = arith.extf %6 : vector<32x128xbf16> to vector<32x128xf32>
    %8 = arith.addf %5, %7 : vector<32x128xf32>
    %cst_7 = arith.constant dense<0.000000e+00> : vector<32xf32>
    %9 = vector.multi_reduction <add>, %8, %cst_7 [1] : vector<32x128xf32> to vector<32xf32>
    %10 = vector.shape_cast %9 : vector<32xf32> to vector<32x1xf32>
    %cst_8 = arith.constant 1.280000e+02 : f32
    %11 = vector.broadcast %cst_8 : f32 to vector<32x1xf32>
    %12 = arith.divf %10, %11 : vector<32x1xf32>
    %13 = vector.broadcast %12 : vector<32x1xf32> to vector<32x128xf32>
    %14 = arith.subf %8, %13 : vector<32x128xf32>
    %15 = arith.mulf %14, %14 : vector<32x128xf32>
    %cst_9 = arith.constant dense<0.000000e+00> : vector<32xf32>
    %16 = vector.multi_reduction <add>, %15, %cst_9 [1] : vector<32x128xf32> to vector<32xf32>
    %17 = vector.shape_cast %16 : vector<32xf32> to vector<32x1xf32>
    %cst_10 = arith.constant 1.280000e+02 : f32
    %18 = vector.broadcast %cst_10 : f32 to vector<32x1xf32>
    %19 = arith.divf %17, %18 : vector<32x1xf32>
    %20 = vector.broadcast %12 : vector<32x1xf32> to vector<32x128xf32>
    %21 = arith.subf %8, %20 : vector<32x128xf32>
    %cst_11 = arith.constant 9.99999996E-13 : f32
    %22 = vector.broadcast %cst_11 : f32 to vector<32x1xf32>
    %23 = arith.addf %19, %22 : vector<32x1xf32>
    %24 = math.rsqrt %23 : vector<32x1xf32>
    %25 = vector.broadcast %24 : vector<32x1xf32> to vector<32x128xf32>
    %26 = arith.mulf %21, %25 : vector<32x128xf32>
    %c0_12 = arith.constant 0 : index
    %c0_13 = arith.constant 0 : index
    %27 = vector.load %arg6[%c0_12, %c0_13] : memref<1x128xf32, #tpu.memory_space<vmem>>, vector<1x128xf32>
    %28 = vector.broadcast %27 : vector<1x128xf32> to vector<32x128xf32>
    %29 = arith.mulf %26, %28 : vector<32x128xf32>
    %c0_14 = arith.constant 0 : index
    %c0_15 = arith.constant 0 : index
    %30 = vector.load %arg7[%c0_14, %c0_15] : memref<1x128xf32, #tpu.memory_space<vmem>>, vector<1x128xf32>
    %31 = vector.broadcast %30 : vector<1x128xf32> to vector<32x128xf32>
    %32 = arith.addf %29, %31 : vector<32x128xf32>
    %33 = arith.truncf %32 : vector<32x128xf32> to vector<32x128xbf16>
    %c0_16 = arith.constant 0 : index
    %c0_17 = arith.constant 0 : index
    %34 = vector.load %arg8[%c0_16, %c0_17] : memref<32x128xbf16, #tpu.memory_space<vmem>>, vector<32x128xbf16>
    tpu.vector_store %arg8[%c0_16, %c0_17], %33 {strides = array<i32>} : memref<32x128xbf16, #tpu.memory_space<vmem>>, vector<32x128xbf16>,
    return
  }
  func.func @transform_0(%arg0: i32, %arg1: i32) -> (i32, i32) {
    %c0_i32 = arith.constant 0 : i32
    %c0_i32_0 = arith.constant 0 : i32
    return %arg0, %c0_i32 : i32, i32
  }
  func.func @transform_1(%arg0: i32, %arg1: i32) -> (i32, i32) {
    %c0_i32 = arith.constant 0 : i32
    %c0_i32_0 = arith.constant 0 : i32
    return %c0_i32, %arg1 : i32, i32
  }
  func.func @transform_2(%arg0: i32, %arg1: i32) -> (i32, i32) {
    %c0_i32 = arith.constant 0 : i32
    %c0_i32_0 = arith.constant 0 : i32
    return %c0_i32, %arg1 : i32, i32
  }
  func.func @transform_3(%arg0: i32, %arg1: i32) -> (i32, i32) {
    %c0_i32 = arith.constant 0 : i32
    return %arg0, %arg1 : i32, i32
  }
  func.func @transform_4(%arg0: i32, %arg1: i32) -> (i32, i32) {
    %c0_i32 = arith.constant 0 : i32
    %c0_i32_0 = arith.constant 0 : i32
    return %c0_i32, %arg1 : i32, i32
  }
  func.func @transform_5(%arg0: i32, %arg1: i32) -> (i32, i32) {
    %c0_i32 = arith.constant 0 : i32
    %c0_i32_0 = arith.constant 0 : i32
    return %c0_i32, %arg1 : i32, i32
  }
  func.func @transform_6(%arg0: i32, %arg1: i32) -> (i32, i32) {
    %c0_i32 = arith.constant 0 : i32
    return %arg0, %arg1 : i32, i32
  }
}

module attributes {stable_mosaic.version = 11 : i64} {
  func.func @_layernorm_kernel(%arg0: i32, %arg1: memref<32x128xf32, #tpu.memory_space<vmem>>, %arg2: memref<1x128xf32, #tpu.memory_space<vmem>>, %arg3: memref<1x128xf32, #tpu.memory_space<vmem>>, %arg4: memref<32x128xbf16, #tpu.memory_space<vmem>>) attributes {dimension_semantics = [#tpu.dimension_semantics<parallel>], iteration_bounds = array<i64: 1>, scalar_prefetch = 0 : i64, scratch_operands = 0 : i64, tpu.core_type = #tpu.core_type<tc>, window_params = [{transform_indices = @transform_0, window_bounds = array<i64: 32, 128>}, {pipeline_mode = #tpu.pipeline_mode<synchronous>, transform_indices = @transform_1, window_bounds = array<i64: 1, 128>}, {pipeline_mode = #tpu.pipeline_mode<synchronous>, transform_indices = @transform_2, window_bounds = array<i64: 1, 128>}, {transform_indices = @transform_3, window_bounds = array<i64: 32, 128>}]} {
    %c0 = arith.constant 0 : index
    %c0_0 = arith.constant 0 : index
    %0 = vector.load %arg1[%c0, %c0_0] : memref<32x128xf32, #tpu.memory_space<vmem>>, vector<32x128xf32>
    %cst = arith.constant dense<0.000000e+00> : vector<32xf32>
    %1 = vector.multi_reduction <add>, %0, %cst [1] : vector<32x128xf32> to vector<32xf32>
    %2 = vector.shape_cast %1 : vector<32xf32> to vector<32x1xf32>
    %cst_1 = arith.constant 1.280000e+02 : f32
    %3 = vector.broadcast %cst_1 : f32 to vector<32x1xf32>
    %4 = arith.divf %2, %3 : vector<32x1xf32>
    %5 = vector.broadcast %4 : vector<32x1xf32> to vector<32x128xf32>
    %6 = arith.subf %0, %5 : vector<32x128xf32>
    %7 = arith.mulf %6, %6 : vector<32x128xf32>
    %cst_2 = arith.constant dense<0.000000e+00> : vector<32xf32>
    %8 = vector.multi_reduction <add>, %7, %cst_2 [1] : vector<32x128xf32> to vector<32xf32>
    %9 = vector.shape_cast %8 : vector<32xf32> to vector<32x1xf32>
    %cst_3 = arith.constant 1.280000e+02 : f32
    %10 = vector.broadcast %cst_3 : f32 to vector<32x1xf32>
    %11 = arith.divf %9, %10 : vector<32x1xf32>
    %12 = vector.broadcast %4 : vector<32x1xf32> to vector<32x128xf32>
    %13 = arith.subf %0, %12 : vector<32x128xf32>
    %cst_4 = arith.constant 9.99999996E-13 : f32
    %14 = vector.broadcast %cst_4 : f32 to vector<32x1xf32>
    %15 = arith.addf %11, %14 : vector<32x1xf32>
    %16 = math.rsqrt %15 : vector<32x1xf32>
    %17 = vector.broadcast %16 : vector<32x1xf32> to vector<32x128xf32>
    %18 = arith.mulf %13, %17 : vector<32x128xf32>
    %c0_5 = arith.constant 0 : index
    %c0_6 = arith.constant 0 : index
    %19 = vector.load %arg2[%c0_5, %c0_6] : memref<1x128xf32, #tpu.memory_space<vmem>>, vector<1x128xf32>
    %20 = vector.broadcast %19 : vector<1x128xf32> to vector<32x128xf32>
    %21 = arith.mulf %18, %20 : vector<32x128xf32>
    %c0_7 = arith.constant 0 : index
    %c0_8 = arith.constant 0 : index
    %22 = vector.load %arg3[%c0_7, %c0_8] : memref<1x128xf32, #tpu.memory_space<vmem>>, vector<1x128xf32>
    %23 = vector.broadcast %22 : vector<1x128xf32> to vector<32x128xf32>
    %24 = arith.addf %21, %23 : vector<32x128xf32>
    %25 = arith.truncf %24 : vector<32x128xf32> to vector<32x128xbf16>
    %c0_9 = arith.constant 0 : index
    %c0_10 = arith.constant 0 : index
    %26 = vector.load %arg4[%c0_9, %c0_10] : memref<32x128xbf16, #tpu.memory_space<vmem>>, vector<32x128xbf16>
    tpu.vector_store %arg4[%c0_9, %c0_10], %25 {strides = array<i32>} : memref<32x128xbf16, #tpu.memory_space<vmem>>, vector<32x128xbf16>,
    return
  }
  func.func @transform_0(%arg0: i32) -> (i32, i32) {
    %c0_i32 = arith.constant 0 : i32
    %c0_i32_0 = arith.constant 0 : i32
    return %arg0, %c0_i32 : i32, i32
  }
  func.func @transform_1(%arg0: i32) -> (i32, i32) {
    %c0_i32 = arith.constant 0 : i32
    %c0_i32_0 = arith.constant 0 : i32
    %c0_i32_1 = arith.constant 0 : i32
    return %c0_i32, %c0_i32_0 : i32, i32
  }
  func.func @transform_2(%arg0: i32) -> (i32, i32) {
    %c0_i32 = arith.constant 0 : i32
    %c0_i32_0 = arith.constant 0 : i32
    %c0_i32_1 = arith.constant 0 : i32
    return %c0_i32, %c0_i32_0 : i32, i32
  }
  func.func @transform_3(%arg0: i32) -> (i32, i32) {
    %c0_i32 = arith.constant 0 : i32
    %c0_i32_0 = arith.constant 0 : i32
    return %arg0, %c0_i32 : i32, i32
  }
}

module attributes {stable_mosaic.version = 11 : i64} {
  func.func @_attention_kernel(%arg0: i32, %arg1: i32, %arg2: memref<16x128xbf16, #tpu.memory_space<vmem>>, %arg3: memref<16x128xbf16, #tpu.memory_space<vmem>>, %arg4: memref<16x128xbf16, #tpu.memory_space<vmem>>, %arg5: memref<1x1x16xf32, #tpu.memory_space<vmem>>, %arg6: memref<16x128xbf16, #tpu.memory_space<vmem>>) attributes {dimension_semantics = [#tpu.dimension_semantics<parallel>, #tpu.dimension_semantics<parallel>], iteration_bounds = array<i64: 2, 1>, scalar_prefetch = 0 : i64, scratch_operands = 0 : i64, tpu.core_type = #tpu.core_type<tc>, window_params = [{transform_indices = @transform_0, window_bounds = array<i64: 16, 128>}, {transform_indices = @transform_1, window_bounds = array<i64: 16, 128>}, {transform_indices = @transform_2, window_bounds = array<i64: 16, 128>}, {transform_indices = @transform_3, window_bounds = array<i64: 1, 1, 16>}, {transform_indices = @transform_4, window_bounds = array<i64: 16, 128>}]} {
    %c0 = arith.constant 0 : index
    %c0_0 = arith.constant 0 : index
    %c0_1 = arith.constant 0 : index
    %0 = vector.load %arg5[%c0, %c0_0, %c0_1] : memref<1x1x16xf32, #tpu.memory_space<vmem>>, vector<1x1x16xf32>
    %1 = vector.shape_cast %0 : vector<1x1x16xf32> to vector<1x16xf32>
    %c0_2 = arith.constant 0 : index
    %c0_3 = arith.constant 0 : index
    %2 = vector.load %arg2[%c0_2, %c0_3] : memref<16x128xbf16, #tpu.memory_space<vmem>>, vector<16x128xbf16>
    %c0_4 = arith.constant 0 : index
    %c0_5 = arith.constant 0 : index
    %3 = vector.load %arg3[%c0_4, %c0_5] : memref<16x128xbf16, #tpu.memory_space<vmem>>, vector<16x128xbf16>
    %c0_6 = arith.constant 0 : index
    %c0_7 = arith.constant 0 : index
    %4 = vector.load %arg4[%c0_6, %c0_7] : memref<16x128xbf16, #tpu.memory_space<vmem>>, vector<16x128xbf16>
    %5 = vector.extract_strided_slice %2 {offsets = [0, 0], sizes = [16, 64], strides = [1, 1]} : vector<16x128xbf16> to vector<16x64xbf16>
    %6 = vector.extract_strided_slice %3 {offsets = [0, 0], sizes = [16, 64], strides = [1, 1]} : vector<16x128xbf16> to vector<16x64xbf16>
    %7 = vector.extract_strided_slice %4 {offsets = [0, 0], sizes = [16, 64], strides = [1, 1]} : vector<16x128xbf16> to vector<16x64xbf16>
    %cst = arith.constant dense<0.000000e+00> : vector<16x16xf32>
    %8 = tpu.matmul %5, %6, %cst {dimension_numbers = #tpu.dot_dimension_numbers<[1], [1], [0], [0], [0, 0, 1, 0], [], []>} : vector<16x64xbf16>, vector<16x64xbf16>, vector<16x16xf32> -> vector<16x16xf32>
    %9 = vector.broadcast %1 : vector<1x16xf32> to vector<16x16xf32>
    %10 = arith.addf %8, %9 : vector<16x16xf32>
    %cst_8 = arith.constant dense<0xFF800000> : vector<16xf32>
    %11 = vector.multi_reduction <maximumf>, %10, %cst_8 [1] : vector<16x16xf32> to vector<16xf32>
    %12 = vector.shape_cast %11 : vector<16xf32> to vector<16x1xf32>
    %13 = vector.broadcast %12 : vector<16x1xf32> to vector<16x16xf32>
    %14 = arith.subf %10, %13 : vector<16x16xf32>
    %15 = math.exp %14 : vector<16x16xf32>
    %cst_9 = arith.constant dense<0.000000e+00> : vector<16xf32>
    %16 = vector.multi_reduction <add>, %15, %cst_9 [1] : vector<16x16xf32> to vector<16xf32>
    %17 = vector.shape_cast %16 : vector<16xf32> to vector<16x1xf32>
    %18 = tpu.reciprocal %17 {approx = true} : vector<16x1xf32> -> vector<16x1xf32>
    %19 = vector.broadcast %18 : vector<16x1xf32> to vector<16x16xf32>
    %20 = arith.mulf %15, %19 : vector<16x16xf32>
    %21 = arith.truncf %20 : vector<16x16xf32> to vector<16x16xbf16>
    %cst_10 = arith.constant dense<0.000000e+00> : vector<16x64xf32>
    %22 = tpu.matmul %21, %7, %cst_10 {dimension_numbers = #tpu.dot_dimension_numbers<[1], [0], [0], [1], [0, 0, 1, 1], [], []>} : vector<16x16xbf16>, vector<16x64xbf16>, vector<16x64xf32> -> vector<16x64xf32>
    %23 = vector.extract_strided_slice %2 {offsets = [0, 64], sizes = [16, 64], strides = [1, 1]} : vector<16x128xbf16> to vector<16x64xbf16>
    %24 = vector.extract_strided_slice %3 {offsets = [0, 64], sizes = [16, 64], strides = [1, 1]} : vector<16x128xbf16> to vector<16x64xbf16>
    %25 = vector.extract_strided_slice %4 {offsets = [0, 64], sizes = [16, 64], strides = [1, 1]} : vector<16x128xbf16> to vector<16x64xbf16>
    %cst_11 = arith.constant dense<0.000000e+00> : vector<16x16xf32>
    %26 = tpu.matmul %23, %24, %cst_11 {dimension_numbers = #tpu.dot_dimension_numbers<[1], [1], [0], [0], [0, 0, 1, 0], [], []>} : vector<16x64xbf16>, vector<16x64xbf16>, vector<16x16xf32> -> vector<16x16xf32>
    %27 = vector.broadcast %1 : vector<1x16xf32> to vector<16x16xf32>
    %28 = arith.addf %26, %27 : vector<16x16xf32>
    %cst_12 = arith.constant dense<0xFF800000> : vector<16xf32>
    %29 = vector.multi_reduction <maximumf>, %28, %cst_12 [1] : vector<16x16xf32> to vector<16xf32>
    %30 = vector.shape_cast %29 : vector<16xf32> to vector<16x1xf32>
    %31 = vector.broadcast %30 : vector<16x1xf32> to vector<16x16xf32>
    %32 = arith.subf %28, %31 : vector<16x16xf32>
    %33 = math.exp %32 : vector<16x16xf32>
    %cst_13 = arith.constant dense<0.000000e+00> : vector<16xf32>
    %34 = vector.multi_reduction <add>, %33, %cst_13 [1] : vector<16x16xf32> to vector<16xf32>
    %35 = vector.shape_cast %34 : vector<16xf32> to vector<16x1xf32>
    %36 = tpu.reciprocal %35 {approx = true} : vector<16x1xf32> -> vector<16x1xf32>
    %37 = vector.broadcast %36 : vector<16x1xf32> to vector<16x16xf32>
    %38 = arith.mulf %33, %37 : vector<16x16xf32>
    %39 = arith.truncf %38 : vector<16x16xf32> to vector<16x16xbf16>
    %cst_14 = arith.constant dense<0.000000e+00> : vector<16x64xf32>
    %40 = tpu.matmul %39, %25, %cst_14 {dimension_numbers = #tpu.dot_dimension_numbers<[1], [0], [0], [1], [0, 0, 1, 1], [], []>} : vector<16x16xbf16>, vector<16x64xbf16>, vector<16x64xf32> -> vector<16x64xf32>
    %41 = tpu.concatenate %22, %40 in 1 : vector<16x64xf32>, vector<16x64xf32> -> vector<16x128xf32>
    %42 = arith.truncf %41 : vector<16x128xf32> to vector<16x128xbf16>
    %c0_15 = arith.constant 0 : index
    %c0_16 = arith.constant 0 : index
    %43 = vector.load %arg6[%c0_15, %c0_16] : memref<16x128xbf16, #tpu.memory_space<vmem>>, vector<16x128xbf16>
    tpu.vector_store %arg6[%c0_15, %c0_16], %42 {strides = array<i32>} : memref<16x128xbf16, #tpu.memory_space<vmem>>, vector<16x128xbf16>,
    return
  }
  func.func @transform_0(%arg0: i32, %arg1: i32) -> (i32, i32) {
    %c0_i32 = arith.constant 0 : i32
    %0 = arith.addi %c0_i32, %arg1 : i32
    %c0_i32_0 = arith.constant 0 : i32
    return %arg0, %0 : i32, i32
  }
  func.func @transform_1(%arg0: i32, %arg1: i32) -> (i32, i32) {
    %c1_i32 = arith.constant 1 : i32
    %0 = arith.addi %c1_i32, %arg1 : i32
    %c0_i32 = arith.constant 0 : i32
    return %arg0, %0 : i32, i32
  }
  func.func @transform_2(%arg0: i32, %arg1: i32) -> (i32, i32) {
    %c2_i32 = arith.constant 2 : i32
    %0 = arith.addi %c2_i32, %arg1 : i32
    %c0_i32 = arith.constant 0 : i32
    return %arg0, %0 : i32, i32
  }
  func.func @transform_3(%arg0: i32, %arg1: i32) -> (i32, i32, i32) {
    %c0_i32 = arith.constant 0 : i32
    %c0_i32_0 = arith.constant 0 : i32
    %c0_i32_1 = arith.constant 0 : i32
    return %arg0, %c0_i32, %c0_i32_0 : i32, i32, i32
  }
  func.func @transform_4(%arg0: i32, %arg1: i32) -> (i32, i32) {
    %c0_i32 = arith.constant 0 : i32
    return %arg0, %arg1 : i32, i32
  }
}

module attributes {stable_mosaic.version = 11 : i64} {
  func.func @_linear_nk1_kernel(%arg0: i32, %arg1: i32, %arg2: memref<32x128xbf16, #tpu.memory_space<vmem>>, %arg3: memref<128x256xbf16, #tpu.memory_space<vmem>>, %arg4: memref<1x256xf32, #tpu.memory_space<vmem>>, %arg5: memref<32x256xbf16, #tpu.memory_space<vmem>>) attributes {dimension_semantics = [#tpu.dimension_semantics<parallel>, #tpu.dimension_semantics<parallel>], iteration_bounds = array<i64: 1, 1>, scalar_prefetch = 0 : i64, scratch_operands = 0 : i64, tpu.core_type = #tpu.core_type<tc>, window_params = [{transform_indices = @transform_0, window_bounds = array<i64: 32, 128>}, {transform_indices = @transform_1, window_bounds = array<i64: 128, 256>}, {transform_indices = @transform_2, window_bounds = array<i64: 1, 256>}, {transform_indices = @transform_3, window_bounds = array<i64: 32, 256>}]} {
    %c0 = arith.constant 0 : index
    %c0_0 = arith.constant 0 : index
    %0 = vector.load %arg2[%c0, %c0_0] : memref<32x128xbf16, #tpu.memory_space<vmem>>, vector<32x128xbf16>
    %c0_1 = arith.constant 0 : index
    %c0_2 = arith.constant 0 : index
    %1 = vector.load %arg3[%c0_1, %c0_2] : memref<128x256xbf16, #tpu.memory_space<vmem>>, vector<128x256xbf16>
    %cst = arith.constant dense<0.000000e+00> : vector<32x256xf32>
    %2 = tpu.matmul %0, %1, %cst {dimension_numbers = #tpu.dot_dimension_numbers<[1], [0], [0], [1], [0, 0, 1, 1], [], []>} : vector<32x128xbf16>, vector<128x256xbf16>, vector<32x256xf32> -> vector<32x256xf32>
    %c0_3 = arith.constant 0 : index
    %c0_4 = arith.constant 0 : index
    %3 = vector.load %arg4[%c0_3, %c0_4] : memref<1x256xf32, #tpu.memory_space<vmem>>, vector<1x256xf32>
    %4 = vector.broadcast %3 : vector<1x256xf32> to vector<32x256xf32>
    %5 = arith.addf %2, %4 : vector<32x256xf32>
    %cst_5 = arith.constant 5.000000e-01 : f32
    %6 = vector.broadcast %cst_5 : f32 to vector<32x256xf32>
    %7 = arith.mulf %6, %5 : vector<32x256xf32>
    %cst_6 = arith.constant 4.471500e-02 : f32
    %8 = vector.broadcast %cst_6 : f32 to vector<32x256xf32>
    %9 = arith.mulf %8, %5 : vector<32x256xf32>
    %10 = arith.mulf %9, %5 : vector<32x256xf32>
    %11 = arith.mulf %10, %5 : vector<32x256xf32>
    %12 = arith.addf %5, %11 : vector<32x256xf32>
    %cst_7 = arith.constant 0.797884583 : f32
    %13 = vector.broadcast %cst_7 : f32 to vector<32x256xf32>
    %14 = arith.mulf %13, %12 : vector<32x256xf32>
    %15 = math.tanh %14 : vector<32x256xf32>
    %cst_8 = arith.constant 1.000000e+00 : f32
    %16 = vector.broadcast %cst_8 : f32 to vector<32x256xf32>
    %17 = arith.addf %16, %15 : vector<32x256xf32>
    %18 = arith.mulf %7, %17 : vector<32x256xf32>
    %19 = arith.truncf %18 : vector<32x256xf32> to vector<32x256xbf16>
    %c0_9 = arith.constant 0 : index
    %c0_10 = arith.constant 0 : index
    %20 = vector.load %arg5[%c0_9, %c0_10] : memref<32x256xbf16, #tpu.memory_space<vmem>>, vector<32x256xbf16>
    tpu.vector_store %arg5[%c0_9, %c0_10], %19 {strides = array<i32>} : memref<32x256xbf16, #tpu.memory_space<vmem>>, vector<32x256xbf16>,
    return
  }
  func.func @transform_0(%arg0: i32, %arg1: i32) -> (i32, i32) {
    %c0_i32 = arith.constant 0 : i32
    %c0_i32_0 = arith.constant 0 : i32
    return %arg0, %c0_i32 : i32, i32
  }
  func.func @transform_1(%arg0: i32, %arg1: i32) -> (i32, i32) {
    %c0_i32 = arith.constant 0 : i32
    %c0_i32_0 = arith.constant 0 : i32
    return %c0_i32, %arg1 : i32, i32
  }
  func.func @transform_2(%arg0: i32, %arg1: i32) -> (i32, i32) {
    %c0_i32 = arith.constant 0 : i32
    %c0_i32_0 = arith.constant 0 : i32
    return %c0_i32, %arg1 : i32, i32
  }
  func.func @transform_3(%arg0: i32, %arg1: i32) -> (i32, i32) {
    %c0_i32 = arith.constant 0 : i32
    return %arg0, %arg1 : i32, i32
  }
}

module attributes {stable_mosaic.version = 11 : i64} {
  func.func @_linear_nk1_kernel(%arg0: i32, %arg1: i32, %arg2: memref<32x256xbf16, #tpu.memory_space<vmem>>, %arg3: memref<256x128xbf16, #tpu.memory_space<vmem>>, %arg4: memref<1x128xf32, #tpu.memory_space<vmem>>, %arg5: memref<32x128xbf16, #tpu.memory_space<vmem>>, %arg6: memref<1x128xf32, #tpu.memory_space<vmem>>, %arg7: memref<1x128xf32, #tpu.memory_space<vmem>>, %arg8: memref<32x128xbf16, #tpu.memory_space<vmem>>) attributes {dimension_semantics = [#tpu.dimension_semantics<parallel>, #tpu.dimension_semantics<parallel>], iteration_bounds = array<i64: 1, 1>, scalar_prefetch = 0 : i64, scratch_operands = 0 : i64, tpu.core_type = #tpu.core_type<tc>, window_params = [{transform_indices = @transform_0, window_bounds = array<i64: 32, 256>}, {transform_indices = @transform_1, window_bounds = array<i64: 256, 128>}, {transform_indices = @transform_2, window_bounds = array<i64: 1, 128>}, {transform_indices = @transform_3, window_bounds = array<i64: 32, 128>}, {transform_indices = @transform_4, window_bounds = array<i64: 1, 128>}, {transform_indices = @transform_5, window_bounds = array<i64: 1, 128>}, {transform_indices = @transform_6, window_bounds = array<i64: 32, 128>}]} {
    %c0 = arith.constant 0 : index
    %c0_0 = arith.constant 0 : index
    %0 = vector.load %arg2[%c0, %c0_0] : memref<32x256xbf16, #tpu.memory_space<vmem>>, vector<32x256xbf16>
    %c0_1 = arith.constant 0 : index
    %c0_2 = arith.constant 0 : index
    %1 = vector.load %arg3[%c0_1, %c0_2] : memref<256x128xbf16, #tpu.memory_space<vmem>>, vector<256x128xbf16>
    %cst = arith.constant dense<0.000000e+00> : vector<32x128xf32>
    %2 = tpu.matmul %0, %1, %cst {dimension_numbers = #tpu.dot_dimension_numbers<[1], [0], [0], [1], [0, 0, 1, 1], [], []>} : vector<32x256xbf16>, vector<256x128xbf16>, vector<32x128xf32> -> vector<32x128xf32>
    %c0_3 = arith.constant 0 : index
    %c0_4 = arith.constant 0 : index
    %3 = vector.load %arg4[%c0_3, %c0_4] : memref<1x128xf32, #tpu.memory_space<vmem>>, vector<1x128xf32>
    %4 = vector.broadcast %3 : vector<1x128xf32> to vector<32x128xf32>
    %5 = arith.addf %2, %4 : vector<32x128xf32>
    %c0_5 = arith.constant 0 : index
    %c0_6 = arith.constant 0 : index
    %6 = vector.load %arg5[%c0_5, %c0_6] : memref<32x128xbf16, #tpu.memory_space<vmem>>, vector<32x128xbf16>
    %7 = arith.extf %6 : vector<32x128xbf16> to vector<32x128xf32>
    %8 = arith.addf %5, %7 : vector<32x128xf32>
    %cst_7 = arith.constant dense<0.000000e+00> : vector<32xf32>
    %9 = vector.multi_reduction <add>, %8, %cst_7 [1] : vector<32x128xf32> to vector<32xf32>
    %10 = vector.shape_cast %9 : vector<32xf32> to vector<32x1xf32>
    %cst_8 = arith.constant 1.280000e+02 : f32
    %11 = vector.broadcast %cst_8 : f32 to vector<32x1xf32>
    %12 = arith.divf %10, %11 : vector<32x1xf32>
    %13 = vector.broadcast %12 : vector<32x1xf32> to vector<32x128xf32>
    %14 = arith.subf %8, %13 : vector<32x128xf32>
    %15 = arith.mulf %14, %14 : vector<32x128xf32>
    %cst_9 = arith.constant dense<0.000000e+00> : vector<32xf32>
    %16 = vector.multi_reduction <add>, %15, %cst_9 [1] : vector<32x128xf32> to vector<32xf32>
    %17 = vector.shape_cast %16 : vector<32xf32> to vector<32x1xf32>
    %cst_10 = arith.constant 1.280000e+02 : f32
    %18 = vector.broadcast %cst_10 : f32 to vector<32x1xf32>
    %19 = arith.divf %17, %18 : vector<32x1xf32>
    %20 = vector.broadcast %12 : vector<32x1xf32> to vector<32x128xf32>
    %21 = arith.subf %8, %20 : vector<32x128xf32>
    %cst_11 = arith.constant 9.99999996E-13 : f32
    %22 = vector.broadcast %cst_11 : f32 to vector<32x1xf32>
    %23 = arith.addf %19, %22 : vector<32x1xf32>
    %24 = math.rsqrt %23 : vector<32x1xf32>
    %25 = vector.broadcast %24 : vector<32x1xf32> to vector<32x128xf32>
    %26 = arith.mulf %21, %25 : vector<32x128xf32>
    %c0_12 = arith.constant 0 : index
    %c0_13 = arith.constant 0 : index
    %27 = vector.load %arg6[%c0_12, %c0_13] : memref<1x128xf32, #tpu.memory_space<vmem>>, vector<1x128xf32>
    %28 = vector.broadcast %27 : vector<1x128xf32> to vector<32x128xf32>
    %29 = arith.mulf %26, %28 : vector<32x128xf32>
    %c0_14 = arith.constant 0 : index
    %c0_15 = arith.constant 0 : index
    %30 = vector.load %arg7[%c0_14, %c0_15] : memref<1x128xf32, #tpu.memory_space<vmem>>, vector<1x128xf32>
    %31 = vector.broadcast %30 : vector<1x128xf32> to vector<32x128xf32>
    %32 = arith.addf %29, %31 : vector<32x128xf32>
    %33 = arith.truncf %32 : vector<32x128xf32> to vector<32x128xbf16>
    %c0_16 = arith.constant 0 : index
    %c0_17 = arith.constant 0 : index
    %34 = vector.load %arg8[%c0_16, %c0_17] : memref<32x128xbf16, #tpu.memory_space<vmem>>, vector<32x128xbf16>
    tpu.vector_store %arg8[%c0_16, %c0_17], %33 {strides = array<i32>} : memref<32x128xbf16, #tpu.memory_space<vmem>>, vector<32x128xbf16>,
    return
  }
  func.func @transform_0(%arg0: i32, %arg1: i32) -> (i32, i32) {
    %c0_i32 = arith.constant 0 : i32
    %c0_i32_0 = arith.constant 0 : i32
    return %arg0, %c0_i32 : i32, i32
  }
  func.func @transform_1(%arg0: i32, %arg1: i32) -> (i32, i32) {
    %c0_i32 = arith.constant 0 : i32
    %c0_i32_0 = arith.constant 0 : i32
    return %c0_i32, %arg1 : i32, i32
  }
  func.func @transform_2(%arg0: i32, %arg1: i32) -> (i32, i32) {
    %c0_i32 = arith.constant 0 : i32
    %c0_i32_0 = arith.constant 0 : i32
    return %c0_i32, %arg1 : i32, i32
  }
  func.func @transform_3(%arg0: i32, %arg1: i32) -> (i32, i32) {
    %c0_i32 = arith.constant 0 : i32
    return %arg0, %arg1 : i32, i32
  }
  func.func @transform_4(%arg0: i32, %arg1: i32) -> (i32, i32) {
    %c0_i32 = arith.constant 0 : i32
    %c0_i32_0 = arith.constant 0 : i32
    return %c0_i32, %arg1 : i32, i32
  }
  func.func @transform_5(%arg0: i32, %arg1: i32) -> (i32, i32) {
    %c0_i32 = arith.constant 0 : i32
    %c0_i32_0 = arith.constant 0 : i32
    return %c0_i32, %arg1 : i32, i32
  }
  func.func @transform_6(%arg0: i32, %arg1: i32) -> (i32, i32) {
    %c0_i32 = arith.constant 0 : i32
    return %arg0, %arg1 : i32, i32
  }
}

module attributes {stable_mosaic.version = 11 : i64} {
  func.func @_linear_nk1_kernel(%arg0: i32, %arg1: i32, %arg2: memref<2x128xbf16, #tpu.memory_space<vmem>>, %arg3: memref<128x64xbf16, #tpu.memory_space<vmem>>, %arg4: memref<1x64xf32, #tpu.memory_space<vmem>>, %arg5: memref<2x64xf32, #tpu.memory_space<vmem>>) attributes {dimension_semantics = [#tpu.dimension_semantics<parallel>, #tpu.dimension_semantics<parallel>], iteration_bounds = array<i64: 1, 1>, scalar_prefetch = 0 : i64, scratch_operands = 0 : i64, tpu.core_type = #tpu.core_type<tc>, window_params = [{transform_indices = @transform_0, window_bounds = array<i64: 2, 128>}, {transform_indices = @transform_1, window_bounds = array<i64: 128, 64>}, {transform_indices = @transform_2, window_bounds = array<i64: 1, 64>}, {transform_indices = @transform_3, window_bounds = array<i64: 2, 64>}]} {
    %c0 = arith.constant 0 : index
    %c0_0 = arith.constant 0 : index
    %0 = vector.load %arg2[%c0, %c0_0] : memref<2x128xbf16, #tpu.memory_space<vmem>>, vector<2x128xbf16>
    %c0_1 = arith.constant 0 : index
    %c0_2 = arith.constant 0 : index
    %1 = vector.load %arg3[%c0_1, %c0_2] : memref<128x64xbf16, #tpu.memory_space<vmem>>, vector<128x64xbf16>
    %cst = arith.constant dense<0.000000e+00> : vector<2x64xf32>
    %2 = tpu.matmul %0, %1, %cst {dimension_numbers = #tpu.dot_dimension_numbers<[1], [0], [0], [1], [0, 0, 1, 1], [], []>} : vector<2x128xbf16>, vector<128x64xbf16>, vector<2x64xf32> -> vector<2x64xf32>
    %c0_3 = arith.constant 0 : index
    %c0_4 = arith.constant 0 : index
    %3 = vector.load %arg4[%c0_3, %c0_4] : memref<1x64xf32, #tpu.memory_space<vmem>>, vector<1x64xf32>
    %4 = vector.broadcast %3 : vector<1x64xf32> to vector<2x64xf32>
    %5 = arith.addf %2, %4 : vector<2x64xf32>
    %c0_5 = arith.constant 0 : index
    %c0_6 = arith.constant 0 : index
    %6 = vector.load %arg5[%c0_5, %c0_6] : memref<2x64xf32, #tpu.memory_space<vmem>>, vector<2x64xf32>
    tpu.vector_store %arg5[%c0_5, %c0_6], %5 {strides = array<i32>} : memref<2x64xf32, #tpu.memory_space<vmem>>, vector<2x64xf32>,
    return
  }
  func.func @transform_0(%arg0: i32, %arg1: i32) -> (i32, i32) {
    %c0_i32 = arith.constant 0 : i32
    %c0_i32_0 = arith.constant 0 : i32
    return %arg0, %c0_i32 : i32, i32
  }
  func.func @transform_1(%arg0: i32, %arg1: i32) -> (i32, i32) {
    %c0_i32 = arith.constant 0 : i32
    %c0_i32_0 = arith.constant 0 : i32
    return %c0_i32, %arg1 : i32, i32
  }
  func.func @transform_2(%arg0: i32, %arg1: i32) -> (i32, i32) {
    %c0_i32 = arith.constant 0 : i32
    %c0_i32_0 = arith.constant 0 : i32
    return %c0_i32, %arg1 : i32, i32
  }
  func.func @transform_3(%arg0: i32, %arg1: i32) -> (i32, i32) {
    %c0_i32 = arith.constant 0 : i32
    return %arg0, %arg1 : i32, i32
  }
}

module attributes {stable_mosaic.version = 11 : i64} {
  func.func @_linear_nk1_kernel(%arg0: i32, %arg1: i32, %arg2: memref<2x128xbf16, #tpu.memory_space<vmem>>, %arg3: memref<128x128xbf16, #tpu.memory_space<vmem>>, %arg4: memref<1x128xf32, #tpu.memory_space<vmem>>, %arg5: memref<2x128xbf16, #tpu.memory_space<vmem>>) attributes {dimension_semantics = [#tpu.dimension_semantics<parallel>, #tpu.dimension_semantics<parallel>], iteration_bounds = array<i64: 1, 1>, scalar_prefetch = 0 : i64, scratch_operands = 0 : i64, tpu.core_type = #tpu.core_type<tc>, window_params = [{transform_indices = @transform_0, window_bounds = array<i64: 2, 128>}, {transform_indices = @transform_1, window_bounds = array<i64: 128, 128>}, {transform_indices = @transform_2, window_bounds = array<i64: 1, 128>}, {transform_indices = @transform_3, window_bounds = array<i64: 2, 128>}]} {
    %c0 = arith.constant 0 : index
    %c0_0 = arith.constant 0 : index
    %0 = vector.load %arg2[%c0, %c0_0] : memref<2x128xbf16, #tpu.memory_space<vmem>>, vector<2x128xbf16>
    %c0_1 = arith.constant 0 : index
    %c0_2 = arith.constant 0 : index
    %1 = vector.load %arg3[%c0_1, %c0_2] : memref<128x128xbf16, #tpu.memory_space<vmem>>, vector<128x128xbf16>
    %cst = arith.constant dense<0.000000e+00> : vector<2x128xf32>
    %2 = tpu.matmul %0, %1, %cst {dimension_numbers = #tpu.dot_dimension_numbers<[1], [0], [0], [1], [0, 0, 1, 1], [], []>} : vector<2x128xbf16>, vector<128x128xbf16>, vector<2x128xf32> -> vector<2x128xf32>
    %c0_3 = arith.constant 0 : index
    %c0_4 = arith.constant 0 : index
    %3 = vector.load %arg4[%c0_3, %c0_4] : memref<1x128xf32, #tpu.memory_space<vmem>>, vector<1x128xf32>
    %4 = vector.broadcast %3 : vector<1x128xf32> to vector<2x128xf32>
    %5 = arith.addf %2, %4 : vector<2x128xf32>
    %6 = math.tanh %5 : vector<2x128xf32>
    %7 = arith.truncf %6 : vector<2x128xf32> to vector<2x128xbf16>
    %c0_5 = arith.constant 0 : index
    %c0_6 = arith.constant 0 : index
    %8 = vector.load %arg5[%c0_5, %c0_6] : memref<2x128xbf16, #tpu.memory_space<vmem>>, vector<2x128xbf16>
    tpu.vector_store %arg5[%c0_5, %c0_6], %7 {strides = array<i32>} : memref<2x128xbf16, #tpu.memory_space<vmem>>, vector<2x128xbf16>,
    return
  }
  func.func @transform_0(%arg0: i32, %arg1: i32) -> (i32, i32) {
    %c0_i32 = arith.constant 0 : i32
    %c0_i32_0 = arith.constant 0 : i32
    return %arg0, %c0_i32 : i32, i32
  }
  func.func @transform_1(%arg0: i32, %arg1: i32) -> (i32, i32) {
    %c0_i32 = arith.constant 0 : i32
    %c0_i32_0 = arith.constant 0 : i32
    return %c0_i32, %arg1 : i32, i32
  }
  func.func @transform_2(%arg0: i32, %arg1: i32) -> (i32, i32) {
    %c0_i32 = arith.constant 0 : i32
    %c0_i32_0 = arith.constant 0 : i32
    return %c0_i32, %arg1 : i32, i32
  }
  func.func @transform_3(%arg0: i32, %arg1: i32) -> (i32, i32) {
    %c0_i32 = arith.constant 0 : i32
    return %arg0, %arg1 : i32, i32
  }
}

</mosaic_0001>

<llo_original>
// kernel: pairwise_bert_forward.13
$region0: #{pairwise_bert_forward.13}
  #allocation0 [shape = 'u32[]', space=smem, size = 0x4, offset = 0x4, fixed_abs, tag = 'smem constant byte address 0x4 - core index']
  #allocation1 [shape = 'u32[144,128]{1,0:T(1,128)}', space=vmem, size = 0x12000, scoped, tag = 'internal scratch']
  %s0 = inlined_call_operand.vmem [shape: f32[32,128], index: 0, kind: input, shape index: {}]
  %s1 = inlined_call_operand.vmem [shape: f32[1,128], index: 1, kind: input, shape index: {}]
  %s2 = inlined_call_operand.vmem [shape: f32[1,128], index: 2, kind: input, shape index: {}]
  %s3 = inlined_call_operand.vmem [shape: bf16[32,128], index: 3, kind: output, shape index: {}]
  %s4 = sld [smem:[#allocation0]]
  $region22: #{pairwise_bert_forward.13} parent=0
    _
  %s6 = ssub.s32 1, %s4
  %s7 = scalar_select 0, %s6, %s4
  // Predicated region
  $region2: #{pairwise_bert_forward.13} parent=0 // pred_check
    _
  $region3: #{pairwise_bert_forward.13} parent=0 // pred_check_branch
    %9 = sbr.rel (0) target = $region5
  $region4: #{pairwise_bert_forward.13} parent=0 // pred_region
    _
  $region5: #{pairwise_bert_forward.13} parent=0 // pred_fallthru
    _
  // Predicated region
  $region6: #{pairwise_bert_forward.13} parent=0 // pred_check
    _
  $region7: #{pairwise_bert_forward.13} parent=0 // pred_check_branch
    %11 = sbr.rel (0) target = $region9
  $region8: #{pairwise_bert_forward.13} parent=0 // pred_region
    _
  $region9: #{pairwise_bert_forward.13} parent=0 // pred_fallthru
    _
  // Predicated region
  $region10: #{pairwise_bert_forward.13} parent=0 // pred_check
    _
  $region11: #{pairwise_bert_forward.13} parent=0 // pred_check_branch
    %13 = sbr.rel (0) target = $region13
  $region12: #{pairwise_bert_forward.13} parent=0 // pred_region
    _
  $region13: #{pairwise_bert_forward.13} parent=0 // pred_fallthru
    _
  %v14 = vld [vmem:[%s0] sm:$0xff]
  %v15 = vld [vmem:[%s0 + $0x8] sm:$0xff]
  %v16 = vld [vmem:[%s0 + $0x10] sm:$0xff]
  %v17 = vld [vmem:[%s0 + $0x18] sm:$0xff]
  %18 = vadd.xlane.f32.xlu0 %v14
  %v19 = vpop.xlane.xlu0 %18
  %20 = vadd.xlane.f32.xlu0 %v15
  %v21 = vpop.xlane.xlu0 %20
  %22 = vadd.xlane.f32.xlu0 %v16
  %v23 = vpop.xlane.xlu0 %22
  %24 = vadd.xlane.f32.xlu0 %v17
  %v25 = vpop.xlane.xlu0 %24
  %v26 = vrcp.pop 128.0
  %v27 = vmul.f32 %v19, %v26
  %v28 = vmul.f32 %v21, %v26
  %v29 = vmul.f32 %v23, %v26
  %v30 = vmul.f32 %v25, %v26
  %v31 = vsub.f32 %v14, %v27
  %v32 = vsub.f32 %v15, %v28
  %v33 = vsub.f32 %v16, %v29
  %v34 = vsub.f32 %v17, %v30
  %v35 = vmul.f32 %v31, %v31
  %v36 = vmul.f32 %v32, %v32
  %v37 = vmul.f32 %v33, %v33
  %v38 = vmul.f32 %v34, %v34
  %39 = vadd.xlane.f32.xlu0 %v35
  %v40 = vpop.xlane.xlu0 %39
  %41 = vadd.xlane.f32.xlu0 %v36
  %v42 = vpop.xlane.xlu0 %41
  %43 = vadd.xlane.f32.xlu0 %v37
  %v44 = vpop.xlane.xlu0 %43
  %45 = vadd.xlane.f32.xlu0 %v38
  %v46 = vpop.xlane.xlu0 %45
  %v47 = vmul.f32 %v40, %v26
  %v48 = vmul.f32 %v42, %v26
  %v49 = vmul.f32 %v44, %v26
  %v50 = vmul.f32 %v46, %v26
  %v51 = vadd.f32 %v47, 1e-12
  %v52 = vadd.f32 %v48, 1e-12
  %v53 = vadd.f32 %v49, 1e-12
  %v54 = vadd.f32 %v50, 1e-12
  %v55 = vrsqrt.pop %v51
  %v56 = vrsqrt.pop %v52
  %v57 = vrsqrt.pop %v53
  %v58 = vrsqrt.pop %v54
  %v59 = vmul.f32 %v31, %v55
  %v60 = vmul.f32 %v32, %v56
  %v61 = vmul.f32 %v33, %v57
  %v62 = vmul.f32 %v34, %v58
  %v63 = vld [vmem:[%s1] sm:$0x1]
  %v65 = vlaneseq
  %v66 = vshrl.u32 %v65, 7
  %v67 = vsub.s32 0, %v66
  %v68 = vrot.slane %v63, %v67
  %v70 = vmul.f32 %v59, %v68
  %v71 = vmul.f32 %v60, %v68
  %v72 = vmul.f32 %v61, %v68
  %v73 = vmul.f32 %v62, %v68
  %v74 = vld [vmem:[%s2] sm:$0x1]
  %v76 = vlaneseq
  %v77 = vshrl.u32 %v76, 7
  %v78 = vsub.s32 0, %v77
  %v79 = vrot.slane %v74, %v78
  %v81 = vadd.f32 %v70, %v79
  %v82 = vadd.f32 %v71, %v79
  %v83 = vadd.f32 %v72, %v79
  %v84 = vadd.f32 %v73, %v79
  %v85 = vpack.c.bf16 %v82, %v81
  %v86 = vpack.c.bf16 %v84, %v83
  %v89 = vunpack.c.l.b16 %v85
  %v90 = vunpack.c.h.b16 %v85
  %v91 = vunpack.c.l.b16 %v86
  %v92 = vunpack.c.h.b16 %v86
  %v93 = vpack.c.b16 %v89, %v89
  %v94 = vpack.c.b16 %v90, %v90
  %v95 = vpack.c.b16 %v91, %v91
  %v96 = vpack.c.b16 %v92, %v92
  %101 = vst [vmem:[%s3] sm:$0xf] %v93
  %102 = vst [vmem:[%s3 + $0x4] sm:$0xf] %v94
  %103 = vst [vmem:[%s3 + $0x8] sm:$0xf] %v95
  %104 = vst [vmem:[%s3 + $0xc] sm:$0xf] %v96
  // Predicated region
  $region14: #{pairwise_bert_forward.13} parent=0 // pred_check
    _
  $region15: #{pairwise_bert_forward.13} parent=0 // pred_check_branch
    %106 = sbr.rel (0) target = $region17
  $region16: #{pairwise_bert_forward.13} parent=0 // pred_region
    _
  $region17: #{pairwise_bert_forward.13} parent=0 // pred_fallthru
    _
  // Predicated region
  $region18: #{pairwise_bert_forward.13} parent=0 // pred_check
    _
  $region19: #{pairwise_bert_forward.13} parent=0 // pred_check_branch
    %108 = sbr.rel (0) target = $region21
  $region20: #{pairwise_bert_forward.13} parent=0 // pred_region
    _
  $region21: #{pairwise_bert_forward.13} parent=0 // pred_fallthru
    _

// kernel: pairwise_bert_forward.16
$region0: #{pairwise_bert_forward.16}
  #allocation0 [shape = 'u32[]', space=smem, size = 0x4, offset = 0x4, fixed_abs, tag = 'smem constant byte address 0x4 - core index']
  #allocation1 [shape = 'u32[144,128]{1,0:T(1,128)}', space=vmem, size = 0x12000, scoped, tag = 'internal scratch']
  %s0 = inlined_call_operand.vmem [shape: bf16[32,128], index: 0, kind: input, shape index: {}]
  %s1 = inlined_call_operand.vmem [shape: bf16[128,128], index: 1, kind: input, shape index: {}]
  %s2 = inlined_call_operand.vmem [shape: f32[1,128], index: 2, kind: input, shape index: {}]
  %s3 = inlined_call_operand.vmem [shape: bf16[32,128], index: 3, kind: input, shape index: {}]
  %s4 = inlined_call_operand.vmem [shape: f32[1,128], index: 4, kind: input, shape index: {}]
  %s5 = inlined_call_operand.vmem [shape: f32[1,128], index: 5, kind: input, shape index: {}]
  %s6 = inlined_call_operand.vmem [shape: bf16[32,128], index: 6, kind: output, shape index: {}]
  %s7 = sld [smem:[#allocation0]]
  $region34: #{pairwise_bert_forward.16} parent=0
    _
  %s9 = ssub.s32 1, %s7
  %s10 = scalar_select 0, %s9, %s7
  // Predicated region
  $region2: #{pairwise_bert_forward.16} parent=0 // pred_check
    _
  $region3: #{pairwise_bert_forward.16} parent=0 // pred_check_branch
    %12 = sbr.rel (0) target = $region5
  $region4: #{pairwise_bert_forward.16} parent=0 // pred_region
    _
  $region5: #{pairwise_bert_forward.16} parent=0 // pred_fallthru
    _
  // Predicated region
  $region6: #{pairwise_bert_forward.16} parent=0 // pred_check
    _
  $region7: #{pairwise_bert_forward.16} parent=0 // pred_check_branch
    %14 = sbr.rel (0) target = $region9
  $region8: #{pairwise_bert_forward.16} parent=0 // pred_region
    _
  $region9: #{pairwise_bert_forward.16} parent=0 // pred_fallthru
    _
  // Predicated region
  $region10: #{pairwise_bert_forward.16} parent=0 // pred_check
    _
  $region11: #{pairwise_bert_forward.16} parent=0 // pred_check_branch
    %16 = sbr.rel (0) target = $region13
  $region12: #{pairwise_bert_forward.16} parent=0 // pred_region
    _
  $region13: #{pairwise_bert_forward.16} parent=0 // pred_fallthru
    _
  // Predicated region
  $region14: #{pairwise_bert_forward.16} parent=0 // pred_check
    _
  $region15: #{pairwise_bert_forward.16} parent=0 // pred_check_branch
    %18 = sbr.rel (0) target = $region17
  $region16: #{pairwise_bert_forward.16} parent=0 // pred_region
    _
  $region17: #{pairwise_bert_forward.16} parent=0 // pred_fallthru
    _
  // Predicated region
  $region18: #{pairwise_bert_forward.16} parent=0 // pred_check
    _
  $region19: #{pairwise_bert_forward.16} parent=0 // pred_check_branch
    %20 = sbr.rel (0) target = $region21
  $region20: #{pairwise_bert_forward.16} parent=0 // pred_region
    _
  $region21: #{pairwise_bert_forward.16} parent=0 // pred_fallthru
    _
  // Predicated region
  $region22: #{pairwise_bert_forward.16} parent=0 // pred_check
    _
  $region23: #{pairwise_bert_forward.16} parent=0 // pred_check_branch
    %22 = sbr.rel (0) target = $region25
  $region24: #{pairwise_bert_forward.16} parent=0 // pred_region
    _
  $region25: #{pairwise_bert_forward.16} parent=0 // pred_fallthru
    _
  %v24 = vld [vmem:[%s0] sm:$0xf]
  %v25 = vld [vmem:[%s0 + $0x4] sm:$0xf]
  %v26 = vld [vmem:[%s0 + $0x8] sm:$0xf]
  %v27 = vld [vmem:[%s0 + $0xc] sm:$0xf]
  %v28 = vld [vmem:[%s1] sm:$0xf]
  %v29 = vld [vmem:[%s1 + $0x4] sm:$0xf]
  %v30 = vld [vmem:[%s1 + $0x8] sm:$0xf]
  %v31 = vld [vmem:[%s1 + $0xc] sm:$0xf]
  %v32 = vld [vmem:[%s1 + $0x10] sm:$0xf]
  %v33 = vld [vmem:[%s1 + $0x14] sm:$0xf]
  %v34 = vld [vmem:[%s1 + $0x18] sm:$0xf]
  %v35 = vld [vmem:[%s1 + $0x1c] sm:$0xf]
  %v36 = vld [vmem:[%s1 + $0x20] sm:$0xf]
  %v37 = vld [vmem:[%s1 + $0x24] sm:$0xf]
  %v38 = vld [vmem:[%s1 + $0x28] sm:$0xf]
  %v39 = vld [vmem:[%s1 + $0x2c] sm:$0xf]
  %v40 = vld [vmem:[%s1 + $0x30] sm:$0xf]
  %v41 = vld [vmem:[%s1 + $0x34] sm:$0xf]
  %v42 = vld [vmem:[%s1 + $0x38] sm:$0xf]
  %v43 = vld [vmem:[%s1 + $0x3c] sm:$0xf]
  %v44 = vld [vmem:[%s2] sm:$0x1]
  %v46 = vlaneseq
  %v47 = vshrl.u32 %v46, 7
  %v48 = vsub.s32 0, %v47
  %v49 = vrot.slane %v44, %v48
  %v55 = vunpack.c.l.b16 %v24
  %v56 = vunpack.c.l.b16 %v25
  %v57 = vunpack.c.l.b16 %v26
  %v58 = vunpack.c.l.b16 %v27
  %v59 = vpack.c.b16 %v56, %v55
  %v60 = vpack.c.b16 %v58, %v57
  %v79 = vunpack.c.l.b16 %v28
  %v80 = vunpack.c.l.b16 %v29
  %v81 = vunpack.c.l.b16 %v30
  %v82 = vunpack.c.l.b16 %v31
  %v83 = vunpack.c.l.b16 %v32
  %v84 = vunpack.c.l.b16 %v33
  %v85 = vunpack.c.l.b16 %v34
  %v86 = vunpack.c.l.b16 %v35
  %v87 = vunpack.c.l.b16 %v36
  %v88 = vunpack.c.l.b16 %v37
  %v89 = vunpack.c.l.b16 %v38
  %v90 = vunpack.c.l.b16 %v39
  %v91 = vunpack.c.l.b16 %v40
  %v92 = vunpack.c.l.b16 %v41
  %v93 = vunpack.c.l.b16 %v42
  %v94 = vunpack.c.l.b16 %v43
  %v95 = vpack.c.b16 %v80, %v79
  %v96 = vpack.c.b16 %v82, %v81
  %v97 = vpack.c.b16 %v84, %v83
  %v98 = vpack.c.b16 %v86, %v85
  %v99 = vpack.c.b16 %v88, %v87
  %v100 = vpack.c.b16 %v90, %v89
  %v101 = vpack.c.b16 %v92, %v91
  %v102 = vpack.c.b16 %v94, %v93
  %111 = vmatprep.subr.bf16.mxu0 0
  %112 = vmatpush1.bf16.msra.mxu0 %v102
  %113 = vmatprep.subr.bf16.mxu0 0
  %114 = vmatpush1.bf16.msra.mxu0 %v101
  %115 = vmatprep.subr.bf16.mxu0 0
  %116 = vmatpush1.bf16.msra.mxu0 %v100
  %117 = vmatprep.subr.bf16.mxu0 0
  %118 = vmatpush1.bf16.msra.mxu0 %v99
  %119 = vmatprep.subr.bf16.mxu0 0
  %120 = vmatpush1.bf16.msra.mxu0 %v98
  %121 = vmatprep.subr.bf16.mxu0 0
  %122 = vmatpush1.bf16.msra.mxu0 %v97
  %123 = vmatprep.subr.bf16.mxu0 0
  %124 = vmatpush1.bf16.msra.mxu0 %v96
  %125 = vmatprep.subr.bf16.mxu0 0
  %126 = vmatpush1.bf16.msra.mxu0 %v95
  %127 = vmatprep.subr.bf16.mxu0 0
  %128 = vmatpush2.bf16.msra.mxu0 0
  %129 = vmatprep.subr.bf16.mxu0 0
  %130 = vmatpush2.bf16.msra.mxu0 0
  %131 = vmatprep.subr.bf16.mxu0 0
  %132 = vmatpush2.bf16.msra.mxu0 0
  %133 = vmatprep.subr.bf16.mxu0 0
  %134 = vmatpush2.bf16.msra.mxu0 0
  %135 = vmatprep.subr.bf16.mxu0 0
  %136 = vmatpush2.bf16.msra.mxu0 0
  %137 = vmatprep.subr.bf16.mxu0 0
  %138 = vmatpush2.bf16.msra.mxu0 0
  %139 = vmatprep.subr.bf16.mxu0 0
  %140 = vmatpush2.bf16.msra.mxu0 0
  %141 = vmatprep.subr.bf16.mxu0 0
  %142 = vmatpush2.bf16.msra.mxu0 0
  %143 = vmatprep.mubr.bf16.mxu0 0
  %144 = vmatmul.mubr.bf16.gmra.mxu0 %v59
  %v145 = vpop.f32.mrf.mxu0
  %v146 = vadd.f32 %v49, %v145
  %v147 = vpop.f32.mrf.mxu0
  %v148 = vpop.f32.mrf.mxu0
  %v149 = vadd.f32 %v49, %v148
  %v150 = vpop.f32.mrf.mxu0
  %151 = vmatprep.mubr.bf16.mxu0 0
  %152 = vmatmul.mubr.bf16.gmra.mxu0 %v60
  %v153 = vpop.f32.mrf.mxu0
  %v154 = vadd.f32 %v49, %v153
  %v155 = vpop.f32.mrf.mxu0
  %v156 = vpop.f32.mrf.mxu0
  %v157 = vadd.f32 %v49, %v156
  %v158 = vpop.f32.mrf.mxu0
  %159 = vdwg.mxu0
  %v160 = vld [vmem:[%s3] sm:$0xf]
  %v161 = vld [vmem:[%s3 + $0x4] sm:$0xf]
  %v162 = vld [vmem:[%s3 + $0x8] sm:$0xf]
  %v163 = vld [vmem:[%s3 + $0xc] sm:$0xf]
  %v164 = vunpack.c.l.bf16 %v160
  %v165 = vunpack.c.l.bf16 %v161
  %v166 = vunpack.c.l.bf16 %v162
  %v167 = vunpack.c.l.bf16 %v163
  %v168 = vadd.f32 %v146, %v164
  %v169 = vadd.f32 %v149, %v165
  %v170 = vadd.f32 %v154, %v166
  %v171 = vadd.f32 %v157, %v167
  %172 = vadd.xlane.f32.xlu0 %v168
  %v173 = vpop.xlane.xlu0 %172
  %174 = vadd.xlane.f32.xlu0 %v169
  %v175 = vpop.xlane.xlu0 %174
  %176 = vadd.xlane.f32.xlu0 %v170
  %v177 = vpop.xlane.xlu0 %176
  %178 = vadd.xlane.f32.xlu0 %v171
  %v179 = vpop.xlane.xlu0 %178
  %v180 = vrcp.pop 128.0
  %v181 = vmul.f32 %v173, %v180
  %v182 = vmul.f32 %v175, %v180
  %v183 = vmul.f32 %v177, %v180
  %v184 = vmul.f32 %v179, %v180
  %v185 = vsub.f32 %v168, %v181
  %v186 = vsub.f32 %v169, %v182
  %v187 = vsub.f32 %v170, %v183
  %v188 = vsub.f32 %v171, %v184
  %v189 = vmul.f32 %v185, %v185
  %v190 = vmul.f32 %v186, %v186
  %v191 = vmul.f32 %v187, %v187
  %v192 = vmul.f32 %v188, %v188
  %193 = vadd.xlane.f32.xlu0 %v189
  %v194 = vpop.xlane.xlu0 %193
  %195 = vadd.xlane.f32.xlu0 %v190
  %v196 = vpop.xlane.xlu0 %195
  %197 = vadd.xlane.f32.xlu0 %v191
  %v198 = vpop.xlane.xlu0 %197
  %199 = vadd.xlane.f32.xlu0 %v192
  %v200 = vpop.xlane.xlu0 %199
  %v201 = vmul.f32 %v194, %v180
  %v202 = vmul.f32 %v196, %v180
  %v203 = vmul.f32 %v198, %v180
  %v204 = vmul.f32 %v200, %v180
  %v205 = vadd.f32 %v201, 1e-12
  %v206 = vadd.f32 %v202, 1e-12
  %v207 = vadd.f32 %v203, 1e-12
  %v208 = vadd.f32 %v204, 1e-12
  %v209 = vrsqrt.pop %v205
  %v210 = vrsqrt.pop %v206
  %v211 = vrsqrt.pop %v207
  %v212 = vrsqrt.pop %v208
  %v213 = vmul.f32 %v185, %v209
  %v214 = vmul.f32 %v186, %v210
  %v215 = vmul.f32 %v187, %v211
  %v216 = vmul.f32 %v188, %v212
  %v217 = vld [vmem:[%s4] sm:$0x1]
  %v219 = vlaneseq
  %v220 = vshrl.u32 %v219, 7
  %v221 = vsub.s32 0, %v220
  %v222 = vrot.slane %v217, %v221
  %v224 = vmul.f32 %v213, %v222
  %v225 = vmul.f32 %v214, %v222
  %v226 = vmul.f32 %v215, %v222
  %v227 = vmul.f32 %v216, %v222
  %v228 = vld [vmem:[%s5] sm:$0x1]
  %v230 = vlaneseq
  %v231 = vshrl.u32 %v230, 7
  %v232 = vsub.s32 0, %v231
  %v233 = vrot.slane %v228, %v232
  %v235 = vadd.f32 %v224, %v233
  %v236 = vadd.f32 %v225, %v233
  %v237 = vadd.f32 %v226, %v233
  %v238 = vadd.f32 %v227, %v233
  %v239 = vpack.c.bf16 %v236, %v235
  %v240 = vpack.c.bf16 %v238, %v237
  %v243 = vunpack.c.l.b16 %v239
  %v244 = vunpack.c.h.b16 %v239
  %v245 = vunpack.c.l.b16 %v240
  %v246 = vunpack.c.h.b16 %v240
  %v247 = vpack.c.b16 %v243, %v243
  %v248 = vpack.c.b16 %v244, %v244
  %v249 = vpack.c.b16 %v245, %v245
  %v250 = vpack.c.b16 %v246, %v246
  %255 = vst [vmem:[%s6] sm:$0xf] %v247
  %256 = vst [vmem:[%s6 + $0x4] sm:$0xf] %v248
  %257 = vst [vmem:[%s6 + $0x8] sm:$0xf] %v249
  %258 = vst [vmem:[%s6 + $0xc] sm:$0xf] %v250
  // Predicated region
  $region26: #{pairwise_bert_forward.16} parent=0 // pred_check
    _
  $region27: #{pairwise_bert_forward.16} parent=0 // pred_check_branch
    %260 = sbr.rel (0) target = $region29
  $region28: #{pairwise_bert_forward.16} parent=0 // pred_region
    _
  $region29: #{pairwise_bert_forward.16} parent=0 // pred_fallthru
    _
  // Predicated region
  $region30: #{pairwise_bert_forward.16} parent=0 // pred_check
    _
  $region31: #{pairwise_bert_forward.16} parent=0 // pred_check_branch
    %262 = sbr.rel (0) target = $region33
  $region32: #{pairwise_bert_forward.16} parent=0 // pred_region
    _
  $region33: #{pairwise_bert_forward.16} parent=0 // pred_fallthru
    _

// kernel: pairwise_bert_forward.14
$region0: #{pairwise_bert_forward.14}
  #allocation0 [shape = 'u32[]', space=smem, size = 0x4, offset = 0x4, fixed_abs, tag = 'smem constant byte address 0x4 - core index']
  #allocation1 [shape = 'u32[144,128]{1,0:T(1,128)}', space=vmem, size = 0x12000, scoped, tag = 'internal scratch']
  %s0 = inlined_call_operand.vmem [shape: bf16[32,128], index: 0, kind: input, shape index: {}]
  %s1 = inlined_call_operand.vmem [shape: bf16[128,384], index: 1, kind: input, shape index: {}]
  %s2 = inlined_call_operand.vmem [shape: f32[1,384], index: 2, kind: input, shape index: {}]
  %s3 = inlined_call_operand.vmem [shape: bf16[32,384], index: 3, kind: output, shape index: {}]
  %s4 = sld [smem:[#allocation0]]
  $region22: #{pairwise_bert_forward.14} parent=0
    _
  %s6 = ssub.s32 1, %s4
  %s7 = scalar_select 0, %s6, %s4
  // Predicated region
  $region2: #{pairwise_bert_forward.14} parent=0 // pred_check
    _
  $region3: #{pairwise_bert_forward.14} parent=0 // pred_check_branch
    %9 = sbr.rel (0) target = $region5
  $region4: #{pairwise_bert_forward.14} parent=0 // pred_region
    _
  $region5: #{pairwise_bert_forward.14} parent=0 // pred_fallthru
    _
  // Predicated region
  $region6: #{pairwise_bert_forward.14} parent=0 // pred_check
    _
  $region7: #{pairwise_bert_forward.14} parent=0 // pred_check_branch
    %11 = sbr.rel (0) target = $region9
  $region8: #{pairwise_bert_forward.14} parent=0 // pred_region
    _
  $region9: #{pairwise_bert_forward.14} parent=0 // pred_fallthru
    _
  // Predicated region
  $region10: #{pairwise_bert_forward.14} parent=0 // pred_check
    _
  $region11: #{pairwise_bert_forward.14} parent=0 // pred_check_branch
    %13 = sbr.rel (0) target = $region13
  $region12: #{pairwise_bert_forward.14} parent=0 // pred_region
    _
  $region13: #{pairwise_bert_forward.14} parent=0 // pred_fallthru
    _
  %v15 = vld [vmem:[%s0] sm:$0xf]
  %v16 = vld [vmem:[%s0 + $0x4] sm:$0xf]
  %v17 = vld [vmem:[%s0 + $0x8] sm:$0xf]
  %v18 = vld [vmem:[%s0 + $0xc] sm:$0xf]
  %v19 = vld [vmem:[%s1] sm:$0xff]
  %v20 = vld [vmem:[%s1 + $0x8] sm:$0xf]
  %v21 = vld [vmem:[%s1 + $0xc] sm:$0xff]
  %v22 = vld [vmem:[%s1 + $0x14] sm:$0xf]
  %v23 = vld [vmem:[%s1 + $0x18] sm:$0xff]
  %v24 = vld [vmem:[%s1 + $0x20] sm:$0xf]
  %v25 = vld [vmem:[%s1 + $0x24] sm:$0xff]
  %v26 = vld [vmem:[%s1 + $0x2c] sm:$0xf]
  %v27 = vld [vmem:[%s1 + $0x30] sm:$0xff]
  %v28 = vld [vmem:[%s1 + $0x38] sm:$0xf]
  %v29 = vld [vmem:[%s1 + $0x3c] sm:$0xff]
  %v30 = vld [vmem:[%s1 + $0x44] sm:$0xf]
  %v31 = vld [vmem:[%s1 + $0x48] sm:$0xff]
  %v32 = vld [vmem:[%s1 + $0x50] sm:$0xf]
  %v33 = vld [vmem:[%s1 + $0x54] sm:$0xff]
  %v34 = vld [vmem:[%s1 + $0x5c] sm:$0xf]
  %v35 = vld [vmem:[%s1 + $0x60] sm:$0xff]
  %v36 = vld [vmem:[%s1 + $0x68] sm:$0xf]
  %v37 = vld [vmem:[%s1 + $0x6c] sm:$0xff]
  %v38 = vld [vmem:[%s1 + $0x74] sm:$0xf]
  %v39 = vld [vmem:[%s1 + $0x78] sm:$0xff]
  %v40 = vld [vmem:[%s1 + $0x80] sm:$0xf]
  %v41 = vld [vmem:[%s1 + $0x84] sm:$0xff]
  %v42 = vld [vmem:[%s1 + $0x8c] sm:$0xf]
  %v43 = vld [vmem:[%s1 + $0x90] sm:$0xff]
  %v44 = vld [vmem:[%s1 + $0x98] sm:$0xf]
  %v45 = vld [vmem:[%s1 + $0x9c] sm:$0xff]
  %v46 = vld [vmem:[%s1 + $0xa4] sm:$0xf]
  %v47 = vld [vmem:[%s1 + $0xa8] sm:$0xff]
  %v48 = vld [vmem:[%s1 + $0xb0] sm:$0xf]
  %v49 = vld [vmem:[%s1 + $0xb4] sm:$0xff]
  %v50 = vld [vmem:[%s1 + $0xbc] sm:$0xf]
  %v51 = vld [vmem:[%s2] sm:$0x7]
  %v53 = vlaneseq
  %v54 = vshrl.u32 %v53, 7
  %v55 = vsub.s32 0, %v54
  %v56 = vrot.slane %v51, %v55
  %v57 = vlaneseq
  %v58 = vshrl.u32 %v57, 7
  %v59 = vsub.s32 1, %v58
  %v60 = vrot.slane %v51, %v59
  %v61 = vlaneseq
  %v62 = vshrl.u32 %v61, 7
  %v63 = vsub.s32 2, %v62
  %v64 = vrot.slane %v51, %v63
  %v72 = vunpack.c.l.b16 %v15
  %v73 = vunpack.c.l.b16 %v16
  %v74 = vunpack.c.l.b16 %v17
  %v75 = vunpack.c.l.b16 %v18
  %v76 = vpack.c.b16 %v73, %v72
  %v77 = vpack.c.b16 %v75, %v74
  %v112 = vunpack.c.l.b16 %v19
  %v113 = vunpack.c.h.b16 %v19
  %v114 = vunpack.c.l.b16 %v20
  %v115 = vunpack.c.l.b16 %v21
  %v116 = vunpack.c.h.b16 %v21
  %v117 = vunpack.c.l.b16 %v22
  %v118 = vunpack.c.l.b16 %v23
  %v119 = vunpack.c.h.b16 %v23
  %v120 = vunpack.c.l.b16 %v24
  %v121 = vunpack.c.l.b16 %v25
  %v122 = vunpack.c.h.b16 %v25
  %v123 = vunpack.c.l.b16 %v26
  %v124 = vunpack.c.l.b16 %v27
  %v125 = vunpack.c.h.b16 %v27
  %v126 = vunpack.c.l.b16 %v28
  %v127 = vunpack.c.l.b16 %v29
  %v128 = vunpack.c.h.b16 %v29
  %v129 = vunpack.c.l.b16 %v30
  %v130 = vunpack.c.l.b16 %v31
  %v131 = vunpack.c.h.b16 %v31
  %v132 = vunpack.c.l.b16 %v32
  %v133 = vunpack.c.l.b16 %v33
  %v134 = vunpack.c.h.b16 %v33
  %v135 = vunpack.c.l.b16 %v34
  %v136 = vunpack.c.l.b16 %v35
  %v137 = vunpack.c.h.b16 %v35
  %v138 = vunpack.c.l.b16 %v36
  %v139 = vunpack.c.l.b16 %v37
  %v140 = vunpack.c.h.b16 %v37
  %v141 = vunpack.c.l.b16 %v38
  %v142 = vunpack.c.l.b16 %v39
  %v143 = vunpack.c.h.b16 %v39
  %v144 = vunpack.c.l.b16 %v40
  %v145 = vunpack.c.l.b16 %v41
  %v146 = vunpack.c.h.b16 %v41
  %v147 = vunpack.c.l.b16 %v42
  %v148 = vunpack.c.l.b16 %v43
  %v149 = vunpack.c.h.b16 %v43
  %v150 = vunpack.c.l.b16 %v44
  %v151 = vunpack.c.l.b16 %v45
  %v152 = vunpack.c.h.b16 %v45
  %v153 = vunpack.c.l.b16 %v46
  %v154 = vunpack.c.l.b16 %v47
  %v155 = vunpack.c.h.b16 %v47
  %v156 = vunpack.c.l.b16 %v48
  %v157 = vunpack.c.l.b16 %v49
  %v158 = vunpack.c.h.b16 %v49
  %v159 = vunpack.c.l.b16 %v50
  %v160 = vpack.c.b16 %v115, %v112
  %v161 = vpack.c.b16 %v116, %v113
  %v162 = vpack.c.b16 %v117, %v114
  %v163 = vpack.c.b16 %v121, %v118
  %v164 = vpack.c.b16 %v122, %v119
  %v165 = vpack.c.b16 %v123, %v120
  %v166 = vpack.c.b16 %v127, %v124
  %v167 = vpack.c.b16 %v128, %v125
  %v168 = vpack.c.b16 %v129, %v126
  %v169 = vpack.c.b16 %v133, %v130
  %v170 = vpack.c.b16 %v134, %v131
  %v171 = vpack.c.b16 %v135, %v132
  %v172 = vpack.c.b16 %v139, %v136
  %v173 = vpack.c.b16 %v140, %v137
  %v174 = vpack.c.b16 %v141, %v138
  %v175 = vpack.c.b16 %v145, %v142
  %v176 = vpack.c.b16 %v146, %v143
  %v177 = vpack.c.b16 %v147, %v144
  %v178 = vpack.c.b16 %v151, %v148
  %v179 = vpack.c.b16 %v152, %v149
  %v180 = vpack.c.b16 %v153, %v150
  %v181 = vpack.c.b16 %v157, %v154
  %v182 = vpack.c.b16 %v158, %v155
  %v183 = vpack.c.b16 %v159, %v156
  %208 = vmatprep.subr.bf16.mxu0 %v182
  %209 = vmatpush1.bf16.msra.mxu0 %v181
  %210 = vmatprep.subr.bf16.mxu0 %v179
  %211 = vmatpush1.bf16.msra.mxu0 %v178
  %212 = vmatprep.subr.bf16.mxu0 %v176
  %213 = vmatpush1.bf16.msra.mxu0 %v175
  %214 = vmatprep.subr.bf16.mxu0 %v173
  %215 = vmatpush1.bf16.msra.mxu0 %v172
  %216 = vmatprep.subr.bf16.mxu0 %v170
  %217 = vmatpush1.bf16.msra.mxu0 %v169
  %218 = vmatprep.subr.bf16.mxu0 %v167
  %219 = vmatpush1.bf16.msra.mxu0 %v166
  %220 = vmatprep.subr.bf16.mxu0 %v164
  %221 = vmatpush1.bf16.msra.mxu0 %v163
  %222 = vmatprep.subr.bf16.mxu0 %v161
  %223 = vmatpush1.bf16.msra.mxu0 %v160
  %224 = vmatprep.subr.bf16.mxu0 0
  %225 = vmatpush2.bf16.msra.mxu0 0
  %226 = vmatprep.subr.bf16.mxu0 0
  %227 = vmatpush2.bf16.msra.mxu0 0
  %228 = vmatprep.subr.bf16.mxu0 0
  %229 = vmatpush2.bf16.msra.mxu0 0
  %230 = vmatprep.subr.bf16.mxu0 0
  %231 = vmatpush2.bf16.msra.mxu0 0
  %232 = vmatprep.subr.bf16.mxu0 0
  %233 = vmatpush2.bf16.msra.mxu0 0
  %234 = vmatprep.subr.bf16.mxu0 0
  %235 = vmatpush2.bf16.msra.mxu0 0
  %236 = vmatprep.subr.bf16.mxu0 0
  %237 = vmatpush2.bf16.msra.mxu0 0
  %238 = vmatprep.subr.bf16.mxu0 0
  %239 = vmatpush2.bf16.msra.mxu0 0
  %240 = vmatprep.mubr.bf16.mxu0 0
  %241 = vmatmul.mubr.bf16.gmra.mxu0 %v76
  %v242 = vpop.f32.mrf.mxu0
  %v243 = vadd.f32 %v56, %v242
  %v244 = vpop.f32.mrf.mxu0
  %v245 = vadd.f32 %v60, %v244
  %v246 = vpop.f32.mrf.mxu0
  %v247 = vadd.f32 %v56, %v246
  %v248 = vpop.f32.mrf.mxu0
  %v249 = vadd.f32 %v60, %v248
  %250 = vmatprep.mubr.bf16.mxu0 0
  %251 = vmatmul.mubr.bf16.gmra.mxu0 %v77
  %v252 = vpop.f32.mrf.mxu0
  %v253 = vadd.f32 %v56, %v252
  %v254 = vpop.f32.mrf.mxu0
  %v255 = vadd.f32 %v60, %v254
  %v256 = vpop.f32.mrf.mxu0
  %v257 = vadd.f32 %v56, %v256
  %v258 = vpop.f32.mrf.mxu0
  %v259 = vadd.f32 %v60, %v258
  %260 = vdwg.mxu0
  %261 = vmatprep.subr.bf16.mxu0 0
  %262 = vmatpush1.bf16.msra.mxu0 %v183
  %263 = vmatprep.subr.bf16.mxu0 0
  %264 = vmatpush1.bf16.msra.mxu0 %v180
  %265 = vmatprep.subr.bf16.mxu0 0
  %266 = vmatpush1.bf16.msra.mxu0 %v177
  %267 = vmatprep.subr.bf16.mxu0 0
  %268 = vmatpush1.bf16.msra.mxu0 %v174
  %269 = vmatprep.subr.bf16.mxu0 0
  %270 = vmatpush1.bf16.msra.mxu0 %v171
  %271 = vmatprep.subr.bf16.mxu0 0
  %272 = vmatpush1.bf16.msra.mxu0 %v168
  %273 = vmatprep.subr.bf16.mxu0 0
  %274 = vmatpush1.bf16.msra.mxu0 %v165
  %275 = vmatprep.subr.bf16.mxu0 0
  %276 = vmatpush1.bf16.msra.mxu0 %v162
  %277 = vmatprep.subr.bf16.mxu0 0
  %278 = vmatpush2.bf16.msra.mxu0 0
  %279 = vmatprep.subr.bf16.mxu0 0
  %280 = vmatpush2.bf16.msra.mxu0 0
  %281 = vmatprep.subr.bf16.mxu0 0
  %282 = vmatpush2.bf16.msra.mxu0 0
  %283 = vmatprep.subr.bf16.mxu0 0
  %284 = vmatpush2.bf16.msra.mxu0 0
  %285 = vmatprep.subr.bf16.mxu0 0
  %286 = vmatpush2.bf16.msra.mxu0 0
  %287 = vmatprep.subr.bf16.mxu0 0
  %288 = vmatpush2.bf16.msra.mxu0 0
  %289 = vmatprep.subr.bf16.mxu0 0
  %290 = vmatpush2.bf16.msra.mxu0 0
  %291 = vmatprep.subr.bf16.mxu0 0
  %292 = vmatpush2.bf16.msra.mxu0 0
  %293 = vmatprep.mubr.bf16.mxu0 0
  %294 = vmatmul.mubr.bf16.gmra.mxu0 %v76
  %v295 = vpop.f32.mrf.mxu0
  %v296 = vadd.f32 %v64, %v295
  %v297 = vpop.f32.mrf.mxu0
  %v298 = vpop.f32.mrf.mxu0
  %v299 = vadd.f32 %v64, %v298
  %v300 = vpop.f32.mrf.mxu0
  %301 = vmatprep.mubr.bf16.mxu0 0
  %302 = vmatmul.mubr.bf16.gmra.mxu0 %v77
  %v303 = vpop.f32.mrf.mxu0
  %v304 = vadd.f32 %v64, %v303
  %v305 = vpop.f32.mrf.mxu0
  %v306 = vpop.f32.mrf.mxu0
  %v307 = vadd.f32 %v64, %v306
  %v308 = vpop.f32.mrf.mxu0
  %309 = vdwg.mxu0
  %v310 = vpack.c.bf16 %v247, %v243
  %v311 = vpack.c.bf16 %v249, %v245
  %v312 = vpack.c.bf16 %v299, %v296
  %v313 = vpack.c.bf16 %v257, %v253
  %v314 = vpack.c.bf16 %v259, %v255
  %v315 = vpack.c.bf16 %v307, %v304
  %v322 = vunpack.c.l.b16 %v310
  %v323 = vunpack.c.l.b16 %v311
  %v324 = vunpack.c.l.b16 %v312
  %v325 = vunpack.c.h.b16 %v310
  %v326 = vunpack.c.h.b16 %v311
  %v327 = vunpack.c.h.b16 %v312
  %v328 = vunpack.c.l.b16 %v313
  %v329 = vunpack.c.l.b16 %v314
  %v330 = vunpack.c.l.b16 %v315
  %v331 = vunpack.c.h.b16 %v313
  %v332 = vunpack.c.h.b16 %v314
  %v333 = vunpack.c.h.b16 %v315
  %v334 = vpack.c.b16 %v323, %v322
  %v335 = vpack.c.b16 %v324, %v324
  %v336 = vpack.c.b16 %v326, %v325
  %v337 = vpack.c.b16 %v327, %v327
  %v338 = vpack.c.b16 %v329, %v328
  %v339 = vpack.c.b16 %v330, %v330
  %v340 = vpack.c.b16 %v332, %v331
  %v341 = vpack.c.b16 %v333, %v333
  %350 = vst [vmem:[%s3] sm:$0xff] %v334
  %351 = vst [vmem:[%s3 + $0x8] sm:$0xf] %v335
  %352 = vst [vmem:[%s3 + $0xc] sm:$0xff] %v336
  %353 = vst [vmem:[%s3 + $0x14] sm:$0xf] %v337
  %354 = vst [vmem:[%s3 + $0x18] sm:$0xff] %v338
  %355 = vst [vmem:[%s3 + $0x20] sm:$0xf] %v339
  %356 = vst [vmem:[%s3 + $0x24] sm:$0xff] %v340
  %357 = vst [vmem:[%s3 + $0x2c] sm:$0xf] %v341
  // Predicated region
  $region14: #{pairwise_bert_forward.14} parent=0 // pred_check
    _
  $region15: #{pairwise_bert_forward.14} parent=0 // pred_check_branch
    %359 = sbr.rel (0) target = $region17
  $region16: #{pairwise_bert_forward.14} parent=0 // pred_region
    _
  $region17: #{pairwise_bert_forward.14} parent=0 // pred_fallthru
    _
  // Predicated region
  $region18: #{pairwise_bert_forward.14} parent=0 // pred_check
    _
  $region19: #{pairwise_bert_forward.14} parent=0 // pred_check_branch
    %361 = sbr.rel (0) target = $region21
  $region20: #{pairwise_bert_forward.14} parent=0 // pred_region
    _
  $region21: #{pairwise_bert_forward.14} parent=0 // pred_fallthru
    _

// kernel: pairwise_bert_forward.15
$region0: #{pairwise_bert_forward.15}
  #allocation0 [shape = 'u32[]', space=smem, size = 0x4, offset = 0x4, fixed_abs, tag = 'smem constant byte address 0x4 - core index']
  #allocation1 [shape = 'u32[144,128]{1,0:T(1,128)}', space=vmem, size = 0x12000, scoped, tag = 'internal scratch']
  %s0 = inlined_call_operand.vmem [shape: bf16[32,384], index: 0, kind: input, shape index: {}, may-alias: {0,1,2}]
  %s1 = inlined_call_operand.vmem [shape: bf16[32,384], index: 1, kind: input, shape index: {}, may-alias: {0,1,2}]
  %s2 = inlined_call_operand.vmem [shape: bf16[32,384], index: 2, kind: input, shape index: {}, may-alias: {0,1,2}]
  %s3 = inlined_call_operand.vmem [shape: f32[2,1,16], index: 3, kind: input, shape index: {}]
  %s4 = inlined_call_operand.vmem [shape: bf16[32,128], index: 4, kind: output, shape index: {}]
  %s5 = sld [smem:[#allocation0]]
  $region172: #{pairwise_bert_forward.15} parent=0
    _
  %s7 = ssub.s32 1, %s5
  %s8 = scalar_select 0, %s7, %s5
  $region1: #{pairwise_bert_forward.15} parent=0
    #allocation2 [shape = 'u8[8192]{0}', space=vmem, size = 0x2000, scoped, tag = 'input window, operand 0']
    #allocation3 [shape = 'u8[8192]{0}', space=vmem, size = 0x2000, scoped, tag = 'input window, operand 1']
    #allocation4 [shape = 'u8[8192]{0}', space=vmem, size = 0x2000, scoped, tag = 'input window, operand 2']
    loop: start=0, step=1, limit=4
    $region2: #{pairwise_bert_forward.15} parent=1 // loop_pre_header
      _
    $region3: #{pairwise_bert_forward.15} parent=1 // loop_header
      %s10 = sphi 0, %s14
      %p11 = scmp.ge.s32.totalorder %s10, 4
      %s17 = sphi 0, %s29
      %s18 = sphi 0, %s25
      %s19 = sphi 0, %s17
      %s20 = sphi 0, %s18
      %s21 = sphi 0, %s19
      %s22 = sphi 0, %s20
      %s34 = sphi 0, %s36
      %s37 = sphi 0, %s34
      %s38 = sphi 0, %s37
      %s54 = sphi 0, %s38
      %s64 = sphi 0, %s66
      %s67 = sphi 0, %s64
      %s68 = sphi 0, %s67
      %s84 = sphi 0, %s68
      %s94 = sphi 0, %s96
      %s97 = sphi 0, %s94
      %s98 = sphi 0, %s97
      %s114 = sphi 0, %s98
      %s120 = sphi 0, %s122
      %s123 = sphi 0, %s120
      %s124 = sphi 0, %s123
      %s140 = sphi 0, %s124
      %s148 = sphi 0, %s150
      %s151 = sphi 0, %s148
      %s152 = sphi 0, %s151
      %s168 = sphi 0, %s152
    $region4: #{pairwise_bert_forward.15} parent=1 // loop_header_branch
      %13 = sbr.rel (%p11) target = $region8
    $region5: #{pairwise_bert_forward.15} parent=1 // loop_body
      %s15 = ssub.s32 %s10, 1
      %s16 = ssub.s32 %s10, 2
      %s23 = sadd.s32 1, %s18
      %p24 = scmp.ge.s32.totalorder %s23, 1
      %s25 = scalar_select %p24, 0, %s23
      %s26 = sadd.s32 1, %s17
      %s27 = scalar_select %p24, %s26, %s17
      %p28 = scmp.ge.s32.totalorder %s27, 2
      %s29 = scalar_select %p28, 0, %s27
      %s30 = ssub.s32 %s17, %s29
      %s31 = ssub.s32 %s18, %s25
      %s32 = sor.u32 %s30, %s31
      %p33 = scmp.eq.s32.totalorder %s32, 0
      %s35 = sadd.s32 %s34, 1
      %s36 = scalar_select %p33, %s34, %s35
      %p39 = pneg %p33
      %p40 = scmp.eq.s32.totalorder %s10, 1
      %p41 = por %p39, %p40
      %p42 = scmp.ne.s32.totalorder %s34, %s37
      %p43 = scmp.eq.s32.totalorder %s10, 0
      %p44 = por %p42, %p43
      %p45 = scmp.ne.s32.totalorder %s34, %s37
      %p46 = scmp.eq.s32.totalorder %s15, 1
      %p47 = por %p45, %p46
      %p48 = scmp.ne.s32.totalorder %s37, %s38
      %p49 = scmp.eq.s32.totalorder %s15, 0
      %p50 = por %p48, %p49
      %p51 = scmp.ne.s32.totalorder %s37, %s38
      %p52 = scmp.eq.s32.totalorder %s16, 1
      %p53 = por %p51, %p52
      %p55 = scmp.ne.s32.totalorder %s38, %s54
      %p56 = scmp.eq.s32.totalorder %s16, 0
      %p57 = por %p55, %p56
      %s58 = sadd.s32 %s18, 1
      %s59 = sadd.s32 %s25, 1
      %s60 = ssub.s32 %s17, %s29
      %s61 = ssub.s32 %s58, %s59
      %s62 = sor.u32 %s60, %s61
      %p63 = scmp.eq.s32.totalorder %s62, 0
      %s65 = sadd.s32 %s64, 1
      %s66 = scalar_select %p63, %s64, %s65
      %p69 = pneg %p63
      %p70 = scmp.eq.s32.totalorder %s10, 1
      %p71 = por %p69, %p70
      %p72 = scmp.ne.s32.totalorder %s64, %s67
      %p73 = scmp.eq.s32.totalorder %s10, 0
      %p74 = por %p72, %p73
      %p75 = scmp.ne.s32.totalorder %s64, %s67
      %p76 = scmp.eq.s32.totalorder %s15, 1
      %p77 = por %p75, %p76
      %p78 = scmp.ne.s32.totalorder %s67, %s68
      %p79 = scmp.eq.s32.totalorder %s15, 0
      %p80 = por %p78, %p79
      %p81 = scmp.ne.s32.totalorder %s67, %s68
      %p82 = scmp.eq.s32.totalorder %s16, 1
      %p83 = por %p81, %p82
      %p85 = scmp.ne.s32.totalorder %s68, %s84
      %p86 = scmp.eq.s32.totalorder %s16, 0
      %p87 = por %p85, %p86
      %s88 = sadd.s32 %s18, 2
      %s89 = sadd.s32 %s25, 2
      %s90 = ssub.s32 %s17, %s29
      %s91 = ssub.s32 %s88, %s89
      %s92 = sor.u32 %s90, %s91
      %p93 = scmp.eq.s32.totalorder %s92, 0
      %s95 = sadd.s32 %s94, 1
      %s96 = scalar_select %p93, %s94, %s95
      %p99 = pneg %p93
      %p100 = scmp.eq.s32.totalorder %s10, 1
      %p101 = por %p99, %p100
      %p102 = scmp.ne.s32.totalorder %s94, %s97
      %p103 = scmp.eq.s32.totalorder %s10, 0
      %p104 = por %p102, %p103
      %p105 = scmp.ne.s32.totalorder %s94, %s97
      %p106 = scmp.eq.s32.totalorder %s15, 1
      %p107 = por %p105, %p106
      %p108 = scmp.ne.s32.totalorder %s97, %s98
      %p109 = scmp.eq.s32.totalorder %s15, 0
      %p110 = por %p108, %p109
      %p111 = scmp.ne.s32.totalorder %s97, %s98
      %p112 = scmp.eq.s32.totalorder %s16, 1
      %p113 = por %p111, %p112
      %p115 = scmp.ne.s32.totalorder %s98, %s114
      %p116 = scmp.eq.s32.totalorder %s16, 0
      %p117 = por %p115, %p116
      %s118 = ssub.s32 %s17, %s29
      %p119 = scmp.eq.s32.totalorder %s118, 0
      %s121 = sadd.s32 %s120, 1
      %s122 = scalar_select %p119, %s120, %s121
      %p125 = pneg %p119
      %p126 = scmp.eq.s32.totalorder %s10, 1
      %p127 = por %p125, %p126
      %p128 = scmp.ne.s32.totalorder %s120, %s123
      %p129 = scmp.eq.s32.totalorder %s10, 0
      %p130 = por %p128, %p129
      %p131 = scmp.ne.s32.totalorder %s120, %s123
      %p132 = scmp.eq.s32.totalorder %s15, 1
      %p133 = por %p131, %p132
      %p134 = scmp.ne.s32.totalorder %s123, %s124
      %p135 = scmp.eq.s32.totalorder %s15, 0
      %p136 = por %p134, %p135
      %p137 = scmp.ne.s32.totalorder %s123, %s124
      %p138 = scmp.eq.s32.totalorder %s16, 1
      %p139 = por %p137, %p138
      %p141 = scmp.ne.s32.totalorder %s124, %s140
      %p142 = scmp.eq.s32.totalorder %s16, 0
      %p143 = por %p141, %p142
      %s144 = ssub.s32 %s17, %s29
      %s145 = ssub.s32 %s18, %s25
      %s146 = sor.u32 %s144, %s145
      %p147 = scmp.eq.s32.totalorder %s146, 0
      %s149 = sadd.s32 %s148, 1
      %s150 = scalar_select %p147, %s148, %s149
      %p153 = pneg %p147
      %p154 = scmp.eq.s32.totalorder %s10, 1
      %p155 = por %p153, %p154
      %p156 = scmp.ne.s32.totalorder %s148, %s151
      %p157 = scmp.eq.s32.totalorder %s10, 0
      %p158 = por %p156, %p157
      %p159 = scmp.ne.s32.totalorder %s148, %s151
      %p160 = scmp.eq.s32.totalorder %s15, 1
      %p161 = por %p159, %p160
      %p162 = scmp.ne.s32.totalorder %s151, %s152
      %p163 = scmp.eq.s32.totalorder %s15, 0
      %p164 = por %p162, %p163
      %p165 = scmp.ne.s32.totalorder %s151, %s152
      %p166 = scmp.eq.s32.totalorder %s16, 1
      %p167 = por %p165, %p166
      %p169 = scmp.ne.s32.totalorder %s152, %s168
      %p170 = scmp.eq.s32.totalorder %s16, 0
      %p171 = por %p169, %p170
      %p172 = scmp.le.s32.totalorder 1, %s10
      %p173 = scmp.lt.s32.totalorder %s10, 3
      %p174 = pnand %p172, %p173
      %p175 = pneg %p174
      // Predicated region
      $region9: #{pairwise_bert_forward.15} parent=5 // pred_check
        _
      $region10: #{pairwise_bert_forward.15} parent=5 // pred_check_branch
        %177 = sbr.rel (%p174) target = $region12
      $region11: #{pairwise_bert_forward.15} parent=5 // pred_region
        %s178 = ssub.s32 %s10, 1
      $region12: #{pairwise_bert_forward.15} parent=5 // pred_fallthru
        _
      %p179 = scmp.lt.s32.totalorder %s10, 2
      // Predicated region
      $region13: #{pairwise_bert_forward.15} parent=5 // pred_check
        %p180 = pneg %p179
      $region14: #{pairwise_bert_forward.15} parent=5 // pred_check_branch
        %182 = sbr.rel (%p180) target = $region16
      $region15: #{pairwise_bert_forward.15} parent=5 // pred_region
        // Predicated region
        $region17: #{pairwise_bert_forward.15} parent=15 // pred_check
          %p183 = pneg %p44
        $region18: #{pairwise_bert_forward.15} parent=15 // pred_check_branch
          %185 = sbr.rel (%p183) target = $region20
        $region19: #{pairwise_bert_forward.15} parent=15 // pred_region
          %s186 = sand.u32 %s34, 1
          %s187 = sand.u32 %s34, 1
          %s188 = smul.addr %s187, 8
          %s189 = scalar_lea.vmem [#allocation2], %s188
          %s190 = smul.u32 2, %s17
          %s191 = smul.addr %s190, 3
          %s192 = sadd.s32 %s18, %s191
          %s193 = smul.addr %s192, 4
          %s194 = scalar_lea.vmem %s0, %s193
          // Predicated region
          $region21: #{pairwise_bert_forward.15} parent=19 // pred_check
            _
          $region22: #{pairwise_bert_forward.15} parent=19 // pred_check_branch
            %196 = sbr.rel (0) target = $region24
          $region23: #{pairwise_bert_forward.15} parent=19 // pred_region
            // Predicated region
            $region25: #{pairwise_bert_forward.15} parent=23 // pred_check
              _
            $region26: #{pairwise_bert_forward.15} parent=23 // pred_check_branch
              %198 = sbr.rel target = $region28
            $region27: #{pairwise_bert_forward.15} parent=23 // pred_region
              // Predicated region
              $region40: #{pairwise_bert_forward.15} parent=27 // pred_check
                _
              $region41: #{pairwise_bert_forward.15} parent=27 // pred_check_branch
                %216 = sbr.rel (0) target = $region43
              $region42: #{pairwise_bert_forward.15} parent=27 // pred_region
                loop: start=0, step=1, limit=1
                $region44: #{pairwise_bert_forward.15} parent=42 // loop_pre_header
                  _
                $region45: #{pairwise_bert_forward.15} parent=42 // loop_header
                  %s218 = sphi 0, %s222
                  %p219 = scmp.ge.s32.totalorder %s218, 1
                  %s223 = sphi %s194, %s194
                  %s224 = sphi %s189, %s189
                $region46: #{pairwise_bert_forward.15} parent=42 // loop_header_branch
                  %221 = sbr.rel (%p219) target = $region50
                $region47: #{pairwise_bert_forward.15} parent=42 // loop_body
                  _
                $region48: #{pairwise_bert_forward.15} parent=42 // loop_footer
                  %s222 = sadd.s32 1, %s218
                $region49: #{pairwise_bert_forward.15} parent=42 // loop_footer_branch
                  %217 = sbr.rel target = $region45
                $region50: #{pairwise_bert_forward.15} parent=42 // loop_exit
                  _
                %s226 = ssub.s32 16, 1
                loop: start=0, step=1, limit=1
                $region51: #{pairwise_bert_forward.15} parent=42 // loop_pre_header
                  _
                $region52: #{pairwise_bert_forward.15} parent=42 // loop_header
                  %s228 = sphi 0, %s232
                  %p229 = scmp.ge.s32.totalorder %s228, 1
                  %s233 = sphi %s194, %s194
                  %s234 = sphi %s189, %s189
                $region53: #{pairwise_bert_forward.15} parent=42 // loop_header_branch
                  %231 = sbr.rel (%p229) target = $region57
                $region54: #{pairwise_bert_forward.15} parent=42 // loop_body
                  %v235 = vld [vmem:[%s233] sm:%s226]
                  %236 = vst [vmem:[%s234] sm:%s226] %v235
                  %v237 = vld [vmem:[%s233 + $0xc] sm:%s226]
                  %238 = vst [vmem:[%s234 + $0x4] sm:%s226] %v237
                $region55: #{pairwise_bert_forward.15} parent=42 // loop_footer
                  %s232 = sadd.s32 1, %s228
                $region56: #{pairwise_bert_forward.15} parent=42 // loop_footer_branch
                  %227 = sbr.rel target = $region52
                $region57: #{pairwise_bert_forward.15} parent=42 // loop_exit
                  _
              $region43: #{pairwise_bert_forward.15} parent=27 // pred_fallthru
                _
            $region28: #{pairwise_bert_forward.15} parent=23 // pred_fallthru
              _
            // Predicated region
            $region29: #{pairwise_bert_forward.15} parent=23 // pred_check
              _
            $region30: #{pairwise_bert_forward.15} parent=23 // pred_check_branch
              %200 = sbr.rel (0) target = $region32
            $region31: #{pairwise_bert_forward.15} parent=23 // pred_region
              %s202 = ssub.s32 16, 1
              loop: start=0, step=1, limit=1
              $region33: #{pairwise_bert_forward.15} parent=31 // loop_pre_header
                _
              $region34: #{pairwise_bert_forward.15} parent=31 // loop_header
                %s204 = sphi 0, %s208
                %p205 = scmp.ge.s32.totalorder %s204, 1
                %s209 = sphi %s194, %s194
                %s210 = sphi %s189, %s189
              $region35: #{pairwise_bert_forward.15} parent=31 // loop_header_branch
                %207 = sbr.rel (%p205) target = $region39
              $region36: #{pairwise_bert_forward.15} parent=31 // loop_body
                %v211 = vld [vmem:[%s209] sm:%s202]
                %212 = vst [vmem:[%s210] sm:%s202] %v211
                %v213 = vld [vmem:[%s209 + $0xc] sm:%s202]
                %214 = vst [vmem:[%s210 + $0x4] sm:%s202] %v213
              $region37: #{pairwise_bert_forward.15} parent=31 // loop_footer
                %s208 = sadd.s32 1, %s204
              $region38: #{pairwise_bert_forward.15} parent=31 // loop_footer_branch
                %203 = sbr.rel target = $region34
              $region39: #{pairwise_bert_forward.15} parent=31 // loop_exit
                _
            $region32: #{pairwise_bert_forward.15} parent=23 // pred_fallthru
              _
          $region24: #{pairwise_bert_forward.15} parent=19 // pred_fallthru
            _
          %239 = vnop
        $region20: #{pairwise_bert_forward.15} parent=15 // pred_fallthru
          _
        // Predicated region
        $region58: #{pairwise_bert_forward.15} parent=15 // pred_check
          %p240 = pneg %p74
        $region59: #{pairwise_bert_forward.15} parent=15 // pred_check_branch
          %242 = sbr.rel (%p240) target = $region61
        $region60: #{pairwise_bert_forward.15} parent=15 // pred_region
          %s243 = sand.u32 %s64, 1
          %s244 = sand.u32 %s64, 1
          %s245 = smul.addr %s244, 8
          %s246 = scalar_lea.vmem [#allocation3], %s245
          %s247 = sadd.s32 %s18, 1
          %s248 = smul.u32 2, %s17
          %s249 = smul.addr %s248, 3
          %s250 = sadd.s32 %s247, %s249
          %s251 = smul.addr %s250, 4
          %s252 = scalar_lea.vmem %s1, %s251
          // Predicated region
          $region62: #{pairwise_bert_forward.15} parent=60 // pred_check
            _
          $region63: #{pairwise_bert_forward.15} parent=60 // pred_check_branch
            %254 = sbr.rel (0) target = $region65
          $region64: #{pairwise_bert_forward.15} parent=60 // pred_region
            // Predicated region
            $region66: #{pairwise_bert_forward.15} parent=64 // pred_check
              _
            $region67: #{pairwise_bert_forward.15} parent=64 // pred_check_branch
              %256 = sbr.rel target = $region69
            $region68: #{pairwise_bert_forward.15} parent=64 // pred_region
              // Predicated region
              $region81: #{pairwise_bert_forward.15} parent=68 // pred_check
                _
              $region82: #{pairwise_bert_forward.15} parent=68 // pred_check_branch
                %274 = sbr.rel (0) target = $region84
              $region83: #{pairwise_bert_forward.15} parent=68 // pred_region
                loop: start=0, step=1, limit=1
                $region85: #{pairwise_bert_forward.15} parent=83 // loop_pre_header
                  _
                $region86: #{pairwise_bert_forward.15} parent=83 // loop_header
                  %s276 = sphi 0, %s280
                  %p277 = scmp.ge.s32.totalorder %s276, 1
                  %s281 = sphi %s252, %s252
                  %s282 = sphi %s246, %s246
                $region87: #{pairwise_bert_forward.15} parent=83 // loop_header_branch
                  %279 = sbr.rel (%p277) target = $region91
                $region88: #{pairwise_bert_forward.15} parent=83 // loop_body
                  _
                $region89: #{pairwise_bert_forward.15} parent=83 // loop_footer
                  %s280 = sadd.s32 1, %s276
                $region90: #{pairwise_bert_forward.15} parent=83 // loop_footer_branch
                  %275 = sbr.rel target = $region86
                $region91: #{pairwise_bert_forward.15} parent=83 // loop_exit
                  _
                %s284 = ssub.s32 16, 1
                loop: start=0, step=1, limit=1
                $region92: #{pairwise_bert_forward.15} parent=83 // loop_pre_header
                  _
                $region93: #{pairwise_bert_forward.15} parent=83 // loop_header
                  %s286 = sphi 0, %s290
                  %p287 = scmp.ge.s32.totalorder %s286, 1
                  %s291 = sphi %s252, %s252
                  %s292 = sphi %s246, %s246
                $region94: #{pairwise_bert_forward.15} parent=83 // loop_header_branch
                  %289 = sbr.rel (%p287) target = $region98
                $region95: #{pairwise_bert_forward.15} parent=83 // loop_body
                  %v293 = vld [vmem:[%s291] sm:%s284]
                  %294 = vst [vmem:[%s292] sm:%s284] %v293
                  %v295 = vld [vmem:[%s291 + $0xc] sm:%s284]
                  %296 = vst [vmem:[%s292 + $0x4] sm:%s284] %v295
                $region96: #{pairwise_bert_forward.15} parent=83 // loop_footer
                  %s290 = sadd.s32 1, %s286
                $region97: #{pairwise_bert_forward.15} parent=83 // loop_footer_branch
                  %285 = sbr.rel target = $region93
                $region98: #{pairwise_bert_forward.15} parent=83 // loop_exit
                  _
              $region84: #{pairwise_bert_forward.15} parent=68 // pred_fallthru
                _
            $region69: #{pairwise_bert_forward.15} parent=64 // pred_fallthru
              _
            // Predicated region
            $region70: #{pairwise_bert_forward.15} parent=64 // pred_check
              _
            $region71: #{pairwise_bert_forward.15} parent=64 // pred_check_branch
              %258 = sbr.rel (0) target = $region73
            $region72: #{pairwise_bert_forward.15} parent=64 // pred_region
              %s260 = ssub.s32 16, 1
              loop: start=0, step=1, limit=1
              $region74: #{pairwise_bert_forward.15} parent=72 // loop_pre_header
                _
              $region75: #{pairwise_bert_forward.15} parent=72 // loop_header
                %s262 = sphi 0, %s266
                %p263 = scmp.ge.s32.totalorder %s262, 1
                %s267 = sphi %s252, %s252
                %s268 = sphi %s246, %s246
              $region76: #{pairwise_bert_forward.15} parent=72 // loop_header_branch
                %265 = sbr.rel (%p263) target = $region80
              $region77: #{pairwise_bert_forward.15} parent=72 // loop_body
                %v269 = vld [vmem:[%s267] sm:%s260]
                %270 = vst [vmem:[%s268] sm:%s260] %v269
                %v271 = vld [vmem:[%s267 + $0xc] sm:%s260]
                %272 = vst [vmem:[%s268 + $0x4] sm:%s260] %v271
              $region78: #{pairwise_bert_forward.15} parent=72 // loop_footer
                %s266 = sadd.s32 1, %s262
              $region79: #{pairwise_bert_forward.15} parent=72 // loop_footer_branch
                %261 = sbr.rel target = $region75
              $region80: #{pairwise_bert_forward.15} parent=72 // loop_exit
                _
            $region73: #{pairwise_bert_forward.15} parent=64 // pred_fallthru
              _
          $region65: #{pairwise_bert_forward.15} parent=60 // pred_fallthru
            _
          %297 = vnop
        $region61: #{pairwise_bert_forward.15} parent=15 // pred_fallthru
          _
        // Predicated region
        $region99: #{pairwise_bert_forward.15} parent=15 // pred_check
          %p298 = pneg %p104
        $region100: #{pairwise_bert_forward.15} parent=15 // pred_check_branch
          %300 = sbr.rel (%p298) target = $region102
        $region101: #{pairwise_bert_forward.15} parent=15 // pred_region
          %s301 = sand.u32 %s94, 1
          %s302 = sand.u32 %s94, 1
          %s303 = smul.addr %s302, 8
          %s304 = scalar_lea.vmem [#allocation4], %s303
          %s305 = sadd.s32 %s18, 2
          %s306 = smul.u32 2, %s17
          %s307 = smul.addr %s306, 3
          %s308 = sadd.s32 %s305, %s307
          %s309 = smul.addr %s308, 4
          %s310 = scalar_lea.vmem %s2, %s309
          // Predicated region
          $region103: #{pairwise_bert_forward.15} parent=101 // pred_check
            _
          $region104: #{pairwise_bert_forward.15} parent=101 // pred_check_branch
            %312 = sbr.rel (0) target = $region106
          $region105: #{pairwise_bert_forward.15} parent=101 // pred_region
            // Predicated region
            $region107: #{pairwise_bert_forward.15} parent=105 // pred_check
              _
            $region108: #{pairwise_bert_forward.15} parent=105 // pred_check_branch
              %314 = sbr.rel target = $region110
            $region109: #{pairwise_bert_forward.15} parent=105 // pred_region
              // Predicated region
              $region122: #{pairwise_bert_forward.15} parent=109 // pred_check
                _
              $region123: #{pairwise_bert_forward.15} parent=109 // pred_check_branch
                %332 = sbr.rel (0) target = $region125
              $region124: #{pairwise_bert_forward.15} parent=109 // pred_region
                loop: start=0, step=1, limit=1
                $region126: #{pairwise_bert_forward.15} parent=124 // loop_pre_header
                  _
                $region127: #{pairwise_bert_forward.15} parent=124 // loop_header
                  %s334 = sphi 0, %s338
                  %p335 = scmp.ge.s32.totalorder %s334, 1
                  %s339 = sphi %s310, %s310
                  %s340 = sphi %s304, %s304
                $region128: #{pairwise_bert_forward.15} parent=124 // loop_header_branch
                  %337 = sbr.rel (%p335) target = $region132
                $region129: #{pairwise_bert_forward.15} parent=124 // loop_body
                  _
                $region130: #{pairwise_bert_forward.15} parent=124 // loop_footer
                  %s338 = sadd.s32 1, %s334
                $region131: #{pairwise_bert_forward.15} parent=124 // loop_footer_branch
                  %333 = sbr.rel target = $region127
                $region132: #{pairwise_bert_forward.15} parent=124 // loop_exit
                  _
                %s342 = ssub.s32 16, 1
                loop: start=0, step=1, limit=1
                $region133: #{pairwise_bert_forward.15} parent=124 // loop_pre_header
                  _
                $region134: #{pairwise_bert_forward.15} parent=124 // loop_header
                  %s344 = sphi 0, %s348
                  %p345 = scmp.ge.s32.totalorder %s344, 1
                  %s349 = sphi %s310, %s310
                  %s350 = sphi %s304, %s304
                $region135: #{pairwise_bert_forward.15} parent=124 // loop_header_branch
                  %347 = sbr.rel (%p345) target = $region139
                $region136: #{pairwise_bert_forward.15} parent=124 // loop_body
                  %v351 = vld [vmem:[%s349] sm:%s342]
                  %352 = vst [vmem:[%s350] sm:%s342] %v351
                  %v353 = vld [vmem:[%s349 + $0xc] sm:%s342]
                  %354 = vst [vmem:[%s350 + $0x4] sm:%s342] %v353
                $region137: #{pairwise_bert_forward.15} parent=124 // loop_footer
                  %s348 = sadd.s32 1, %s344
                $region138: #{pairwise_bert_forward.15} parent=124 // loop_footer_branch
                  %343 = sbr.rel target = $region134
                $region139: #{pairwise_bert_forward.15} parent=124 // loop_exit
                  _
              $region125: #{pairwise_bert_forward.15} parent=109 // pred_fallthru
                _
            $region110: #{pairwise_bert_forward.15} parent=105 // pred_fallthru
              _
            // Predicated region
            $region111: #{pairwise_bert_forward.15} parent=105 // pred_check
              _
            $region112: #{pairwise_bert_forward.15} parent=105 // pred_check_branch
              %316 = sbr.rel (0) target = $region114
            $region113: #{pairwise_bert_forward.15} parent=105 // pred_region
              %s318 = ssub.s32 16, 1
              loop: start=0, step=1, limit=1
              $region115: #{pairwise_bert_forward.15} parent=113 // loop_pre_header
                _
              $region116: #{pairwise_bert_forward.15} parent=113 // loop_header
                %s320 = sphi 0, %s324
                %p321 = scmp.ge.s32.totalorder %s320, 1
                %s325 = sphi %s310, %s310
                %s326 = sphi %s304, %s304
              $region117: #{pairwise_bert_forward.15} parent=113 // loop_header_branch
                %323 = sbr.rel (%p321) target = $region121
              $region118: #{pairwise_bert_forward.15} parent=113 // loop_body
                %v327 = vld [vmem:[%s325] sm:%s318]
                %328 = vst [vmem:[%s326] sm:%s318] %v327
                %v329 = vld [vmem:[%s325 + $0xc] sm:%s318]
                %330 = vst [vmem:[%s326 + $0x4] sm:%s318] %v329
              $region119: #{pairwise_bert_forward.15} parent=113 // loop_footer
                %s324 = sadd.s32 1, %s320
              $region120: #{pairwise_bert_forward.15} parent=113 // loop_footer_branch
                %319 = sbr.rel target = $region116
              $region121: #{pairwise_bert_forward.15} parent=113 // loop_exit
                _
            $region114: #{pairwise_bert_forward.15} parent=105 // pred_fallthru
              _
          $region106: #{pairwise_bert_forward.15} parent=101 // pred_fallthru
            _
          %355 = vnop
        $region102: #{pairwise_bert_forward.15} parent=15 // pred_fallthru
          _
        // Predicated region
        $region140: #{pairwise_bert_forward.15} parent=15 // pred_check
          %p356 = pneg %p130
        $region141: #{pairwise_bert_forward.15} parent=15 // pred_check_branch
          %358 = sbr.rel (%p356) target = $region143
        $region142: #{pairwise_bert_forward.15} parent=15 // pred_region
          %p359 = scmp.lt.s32.totalorder %s17, 1
          %s360 = scalar_select %p359, %s17, 1
          %s361 = scalar_lea.vmem %s3, %s360
        $region143: #{pairwise_bert_forward.15} parent=15 // pred_fallthru
          _
      $region16: #{pairwise_bert_forward.15} parent=5 // pred_fallthru
        _
      %p362 = scmp.le.s32.totalorder 1, %s10
      %p363 = scmp.lt.s32.totalorder %s10, 3
      %p364 = pnand %p362, %p363
      %p365 = pneg %p364
      // Predicated region
      $region144: #{pairwise_bert_forward.15} parent=5 // pred_check
        _
      $region145: #{pairwise_bert_forward.15} parent=5 // pred_check_branch
        %367 = sbr.rel (%p364) target = $region147
      $region146: #{pairwise_bert_forward.15} parent=5 // pred_region
        %s368 = ssub.s32 %s10, 1
        %s369 = sand.u32 %s37, 1
        %s370 = sand.u32 %s37, 1
        %s371 = smul.addr %s370, 8
        %s372 = scalar_lea.vmem [#allocation2], %s371
        // Predicated region
        $region148: #{pairwise_bert_forward.15} parent=146 // pred_check
          %p373 = pneg %p50
        $region149: #{pairwise_bert_forward.15} parent=146 // pred_check_branch
          %375 = sbr.rel (%p373) target = $region151
        $region150: #{pairwise_bert_forward.15} parent=146 // pred_region
          _
        $region151: #{pairwise_bert_forward.15} parent=146 // pred_fallthru
          _
        %s376 = sand.u32 %s67, 1
        %s377 = sand.u32 %s67, 1
        %s378 = smul.addr %s377, 8
        %s379 = scalar_lea.vmem [#allocation3], %s378
        // Predicated region
        $region152: #{pairwise_bert_forward.15} parent=146 // pred_check
          %p380 = pneg %p80
        $region153: #{pairwise_bert_forward.15} parent=146 // pred_check_branch
          %382 = sbr.rel (%p380) target = $region155
        $region154: #{pairwise_bert_forward.15} parent=146 // pred_region
          _
        $region155: #{pairwise_bert_forward.15} parent=146 // pred_fallthru
          _
        %s383 = sand.u32 %s97, 1
        %s384 = sand.u32 %s97, 1
        %s385 = smul.addr %s384, 8
        %s386 = scalar_lea.vmem [#allocation4], %s385
        // Predicated region
        $region156: #{pairwise_bert_forward.15} parent=146 // pred_check
          %p387 = pneg %p110
        $region157: #{pairwise_bert_forward.15} parent=146 // pred_check_branch
          %389 = sbr.rel (%p387) target = $region159
        $region158: #{pairwise_bert_forward.15} parent=146 // pred_region
          _
        $region159: #{pairwise_bert_forward.15} parent=146 // pred_fallthru
          _
        %s390 = sand.u32 %s37, 1
        %s391 = sand.u32 %s37, 1
        %s392 = smul.addr %s391, 8
        %s393 = scalar_lea.vmem [#allocation2], %s392
        %p394 = pneg %p50
        %p395 = pneg %p47
        %s396 = sand.u32 %s67, 1
        %s397 = sand.u32 %s67, 1
        %s398 = smul.addr %s397, 8
        %s399 = scalar_lea.vmem [#allocation3], %s398
        %p400 = pneg %p80
        %p401 = pneg %p77
        %s402 = sand.u32 %s97, 1
        %s403 = sand.u32 %s97, 1
        %s404 = smul.addr %s403, 8
        %s405 = scalar_lea.vmem [#allocation4], %s404
        %p406 = pneg %p110
        %p407 = pneg %p107
        %p408 = scmp.lt.s32.totalorder %s19, 1
        %s409 = scalar_select %p408, %s19, 1
        %s410 = scalar_lea.vmem %s3, %s409
        %p411 = pneg %p136
        %p412 = pneg %p133
        %p413 = pneg %p164
        %p414 = pneg %p161
        %s415 = smul.u32 2, %s19
        %p416 = scmp.lt.s32.totalorder %s415, 3
        %s417 = scalar_select %p416, %s415, 3
        %p418 = scmp.lt.s32.totalorder %s20, 0
        %s419 = scalar_select %p418, %s20, 0
        %s420 = sadd.s32 %s419, %s417
        %s421 = smul.addr %s420, 4
        %s422 = scalar_lea.vmem %s4, %s421
        %s423 = smul.u32 2, %s19
        %s424 = sadd.s32 %s20, 1
        %s425 = smul.u32 2, %s19
        %s426 = sadd.s32 %s20, 2
        %s427 = smul.u32 2, %s19
        %p428 = scmp.lt.s32.totalorder %s19, 1
        %s429 = scalar_select %p428, %s19, 1
        %s430 = scalar_lea.vmem %s3, %s429
        %s431 = smul.u32 2, %s19
        %p432 = scmp.lt.s32.totalorder %s431, 3
        %s433 = scalar_select %p432, %s431, 3
        %p434 = scmp.lt.s32.totalorder %s20, 0
        %s435 = scalar_select %p434, %s20, 0
        %s436 = sadd.s32 %s435, %s433
        %s437 = smul.addr %s436, 4
        %s438 = scalar_lea.vmem %s4, %s437
        %s439 = smul.u32 2, %s19
        %v441 = vld [vmem:[%s430] sm:$0x1]
        %v442 = vld [vmem:[%s372] sm:$0xf]
        %v443 = vld [vmem:[%s372 + $0x4] sm:$0xf]
        %v444 = vld [vmem:[%s379] sm:$0xf]
        %v445 = vld [vmem:[%s379 + $0x4] sm:$0xf]
        %v446 = vld [vmem:[%s386] sm:$0xf]
        %v447 = vld [vmem:[%s386 + $0x4] sm:$0xf]
        %v449 = vlaneseq
        %v450 = vshrl.u32 %v449, 7
        %v451 = vsub.s32 0, %v450
        %v452 = vrot.slane %v441, %v451
        %v456 = vunpack.c.l.b16 %v442
        %v457 = vunpack.c.l.b16 %v443
        %v458 = vpack.c.b16 %v457, %v456
        %v461 = vunpack.c.l.b16 %v444
        %v462 = vunpack.c.l.b16 %v445
        %v463 = vpack.c.b16 %v462, %v461
        %vm464 = vcmask 523264
        %v466 = vsel %vm464, %v458, 0
        %v469 = vsel %vm464, %v463, 0
        %471 = vmatprep.subr.bf16.mxu0 0
        %472 = vmatpush1.bf16.xpose.msra.mxu0 0
        %473 = vmatprep.subr.bf16.mxu0 0
        %474 = vmatpush1.bf16.xpose.msra.mxu0 0
        %475 = vmatprep.subr.bf16.mxu0 0
        %476 = vmatpush1.bf16.xpose.msra.mxu0 0
        %477 = vmatprep.subr.bf16.mxu0 0
        %478 = vmatpush1.bf16.xpose.msra.mxu0 0
        %479 = vmatprep.subr.bf16.mxu0 0
        %480 = vmatpush1.bf16.xpose.msra.mxu0 0
        %481 = vmatprep.subr.bf16.mxu0 0
        %482 = vmatpush1.bf16.xpose.msra.mxu0 0
        %483 = vmatprep.subr.bf16.mxu0 0
        %484 = vmatpush1.bf16.xpose.msra.mxu0 0
        %485 = vmatprep.subr.bf16.mxu0 0
        %486 = vmatpush1.bf16.xpose.msra.mxu0 %v469
        %487 = vmatprep.subr.bf16.mxu0 0
        %488 = vmatpush2.bf16.xpose.msra.mxu0 0
        %489 = vmatprep.subr.bf16.mxu0 0
        %490 = vmatpush2.bf16.xpose.msra.mxu0 0
        %491 = vmatprep.subr.bf16.mxu0 0
        %492 = vmatpush2.bf16.xpose.msra.mxu0 0
        %493 = vmatprep.subr.bf16.mxu0 0
        %494 = vmatpush2.bf16.xpose.msra.mxu0 0
        %495 = vmatprep.subr.bf16.mxu0 0
        %496 = vmatpush2.bf16.xpose.msra.mxu0 0
        %497 = vmatprep.subr.bf16.mxu0 0
        %498 = vmatpush2.bf16.xpose.msra.mxu0 0
        %499 = vmatprep.subr.bf16.mxu0 0
        %500 = vmatpush2.bf16.xpose.msra.mxu0 0
        %501 = vmatprep.subr.bf16.mxu0 0
        %502 = vmatpush2.bf16.xpose.msra.mxu0 0
        %503 = vmatprep.mubr.bf16.mxu0 0
        %504 = vmatmul.mubr.bf16.gmra.mxu0 %v466
        %v505 = vpop.f32.mrf.mxu0
        %v506 = vadd.f32 %v452, %v505
        %v507 = vpop.f32.mrf.mxu0
        %v508 = vpop.f32.mrf.mxu0
        %v509 = vadd.f32 %v452, %v508
        %v510 = vpop.f32.mrf.mxu0
        %511 = vdwg.mxu0
        %vm512 = vcmask 130048
        %v513 = vsel %vm512, %v506, -inf
        %514 = vmax.xlane.f32.xlu0 %v513
        %v515 = vpop.xlane.xlu0 %514
        %v516 = vsel %vm512, %v509, -inf
        %517 = vmax.xlane.f32.xlu0 %v516
        %v518 = vpop.xlane.xlu0 %517
        %v519 = vsub.f32 %v506, %v515
        %v520 = vsub.f32 %v509, %v518
        %v521 = vmul.f32 %v519, 1.442695
        %v522 = vpow.pop %v521
        %v523 = vmul.f32 %v520, 1.442695
        %v524 = vpow.pop %v523
        %v525 = vsel %vm512, %v522, 0.0
        %526 = vadd.xlane.f32.xlu0 %v525
        %v527 = vpop.xlane.xlu0 %526
        %v528 = vsel %vm512, %v524, 0.0
        %529 = vadd.xlane.f32.xlu0 %v528
        %v530 = vpop.xlane.xlu0 %529
        %v531 = vrcp.pop %v527
        %v532 = vrcp.pop %v530
        %v533 = vmul.f32 %v522, %v531
        %v534 = vmul.f32 %v524, %v532
        %v535 = vpack.c.bf16 %v534, %v533
        %v538 = vunpack.c.l.b16 %v446
        %v539 = vunpack.c.l.b16 %v447
        %v540 = vpack.c.b16 %v539, %v538
        %v543 = vsel %vm512, %v535, 0
        %545 = vmatprep.subr.bf16.mxu0 0
        %546 = vmatpush1.bf16.msra.mxu0 0
        %547 = vmatprep.subr.bf16.mxu0 0
        %548 = vmatpush1.bf16.msra.mxu0 0
        %549 = vmatprep.subr.bf16.mxu0 0
        %550 = vmatpush1.bf16.msra.mxu0 0
        %551 = vmatprep.subr.bf16.mxu0 0
        %552 = vmatpush1.bf16.msra.mxu0 0
        %553 = vmatprep.subr.bf16.mxu0 0
        %554 = vmatpush1.bf16.msra.mxu0 0
        %555 = vmatprep.subr.bf16.mxu0 0
        %556 = vmatpush1.bf16.msra.mxu0 0
        %557 = vmatprep.subr.bf16.mxu0 0
        %558 = vmatpush1.bf16.msra.mxu0 0
        %559 = vmatprep.subr.bf16.mxu0 0
        %560 = vmatpush1.bf16.msra.mxu0 %v540
        %561 = vmatprep.subr.bf16.mxu0 0
        %562 = vmatpush2.bf16.msra.mxu0 0
        %563 = vmatprep.subr.bf16.mxu0 0
        %564 = vmatpush2.bf16.msra.mxu0 0
        %565 = vmatprep.subr.bf16.mxu0 0
        %566 = vmatpush2.bf16.msra.mxu0 0
        %567 = vmatprep.subr.bf16.mxu0 0
        %568 = vmatpush2.bf16.msra.mxu0 0
        %569 = vmatprep.subr.bf16.mxu0 0
        %570 = vmatpush2.bf16.msra.mxu0 0
        %571 = vmatprep.subr.bf16.mxu0 0
        %572 = vmatpush2.bf16.msra.mxu0 0
        %573 = vmatprep.subr.bf16.mxu0 0
        %574 = vmatpush2.bf16.msra.mxu0 0
        %575 = vmatprep.subr.bf16.mxu0 0
        %576 = vmatpush2.bf16.msra.mxu0 0
        %577 = vmatprep.mubr.bf16.mxu0 0
        %578 = vmatmul.mubr.bf16.gmra.mxu0 %v543
        %v579 = vpop.f32.mrf.mxu0
        %v580 = vadd.f32 0.0, %v579
        %v581 = vpop.f32.mrf.mxu0
        %v582 = vpop.f32.mrf.mxu0
        %v583 = vadd.f32 0.0, %v582
        %v584 = vpop.f32.mrf.mxu0
        %585 = vdwg.mxu0
        %586 = vrot.lane.b32.xlu0 %v458, 64
        %v587 = vpop.permute.xlu0 %586
        %588 = vrot.lane.b32.xlu0 %v463, 64
        %v589 = vpop.permute.xlu0 %588
        %v591 = vsel %vm464, %v587, 0
        %v594 = vsel %vm464, %v589, 0
        %596 = vmatprep.subr.bf16.mxu0 0
        %597 = vmatpush1.bf16.xpose.msra.mxu0 0
        %598 = vmatprep.subr.bf16.mxu0 0
        %599 = vmatpush1.bf16.xpose.msra.mxu0 0
        %600 = vmatprep.subr.bf16.mxu0 0
        %601 = vmatpush1.bf16.xpose.msra.mxu0 0
        %602 = vmatprep.subr.bf16.mxu0 0
        %603 = vmatpush1.bf16.xpose.msra.mxu0 0
        %604 = vmatprep.subr.bf16.mxu0 0
        %605 = vmatpush1.bf16.xpose.msra.mxu0 0
        %606 = vmatprep.subr.bf16.mxu0 0
        %607 = vmatpush1.bf16.xpose.msra.mxu0 0
        %608 = vmatprep.subr.bf16.mxu0 0
        %609 = vmatpush1.bf16.xpose.msra.mxu0 0
        %610 = vmatprep.subr.bf16.mxu0 0
        %611 = vmatpush1.bf16.xpose.msra.mxu0 %v594
        %612 = vmatprep.subr.bf16.mxu0 0
        %613 = vmatpush2.bf16.xpose.msra.mxu0 0
        %614 = vmatprep.subr.bf16.mxu0 0
        %615 = vmatpush2.bf16.xpose.msra.mxu0 0
        %616 = vmatprep.subr.bf16.mxu0 0
        %617 = vmatpush2.bf16.xpose.msra.mxu0 0
        %618 = vmatprep.subr.bf16.mxu0 0
        %619 = vmatpush2.bf16.xpose.msra.mxu0 0
        %620 = vmatprep.subr.bf16.mxu0 0
        %621 = vmatpush2.bf16.xpose.msra.mxu0 0
        %622 = vmatprep.subr.bf16.mxu0 0
        %623 = vmatpush2.bf16.xpose.msra.mxu0 0
        %624 = vmatprep.subr.bf16.mxu0 0
        %625 = vmatpush2.bf16.xpose.msra.mxu0 0
        %626 = vmatprep.subr.bf16.mxu0 0
        %627 = vmatpush2.bf16.xpose.msra.mxu0 0
        %628 = vmatprep.mubr.bf16.mxu0 0
        %629 = vmatmul.mubr.bf16.gmra.mxu0 %v591
        %v630 = vpop.f32.mrf.mxu0
        %v631 = vadd.f32 %v452, %v630
        %v632 = vpop.f32.mrf.mxu0
        %v633 = vpop.f32.mrf.mxu0
        %v634 = vadd.f32 %v452, %v633
        %v635 = vpop.f32.mrf.mxu0
        %636 = vdwg.mxu0
        %v637 = vsel %vm512, %v631, -inf
        %638 = vmax.xlane.f32.xlu0 %v637
        %v639 = vpop.xlane.xlu0 %638
        %v640 = vsel %vm512, %v634, -inf
        %641 = vmax.xlane.f32.xlu0 %v640
        %v642 = vpop.xlane.xlu0 %641
        %v643 = vsub.f32 %v631, %v639
        %v644 = vsub.f32 %v634, %v642
        %v645 = vmul.f32 %v643, 1.442695
        %v646 = vpow.pop %v645
        %v647 = vmul.f32 %v644, 1.442695
        %v648 = vpow.pop %v647
        %v649 = vsel %vm512, %v646, 0.0
        %650 = vadd.xlane.f32.xlu0 %v649
        %v651 = vpop.xlane.xlu0 %650
        %v652 = vsel %vm512, %v648, 0.0
        %653 = vadd.xlane.f32.xlu0 %v652
        %v654 = vpop.xlane.xlu0 %653
        %v655 = vrcp.pop %v651
        %v656 = vrcp.pop %v654
        %v657 = vmul.f32 %v646, %v655
        %v658 = vmul.f32 %v648, %v656
        %v659 = vpack.c.bf16 %v658, %v657
        %660 = vrot.lane.b32.xlu0 %v540, 64
        %v661 = vpop.permute.xlu0 %660
        %v664 = vsel %vm512, %v659, 0
        %666 = vmatprep.subr.bf16.mxu0 0
        %667 = vmatpush1.bf16.msra.mxu0 0
        %668 = vmatprep.subr.bf16.mxu0 0
        %669 = vmatpush1.bf16.msra.mxu0 0
        %670 = vmatprep.subr.bf16.mxu0 0
        %671 = vmatpush1.bf16.msra.mxu0 0
        %672 = vmatprep.subr.bf16.mxu0 0
        %673 = vmatpush1.bf16.msra.mxu0 0
        %674 = vmatprep.subr.bf16.mxu0 0
        %675 = vmatpush1.bf16.msra.mxu0 0
        %676 = vmatprep.subr.bf16.mxu0 0
        %677 = vmatpush1.bf16.msra.mxu0 0
        %678 = vmatprep.subr.bf16.mxu0 0
        %679 = vmatpush1.bf16.msra.mxu0 0
        %680 = vmatprep.subr.bf16.mxu0 0
        %681 = vmatpush1.bf16.msra.mxu0 %v661
        %682 = vmatprep.subr.bf16.mxu0 0
        %683 = vmatpush2.bf16.msra.mxu0 0
        %684 = vmatprep.subr.bf16.mxu0 0
        %685 = vmatpush2.bf16.msra.mxu0 0
        %686 = vmatprep.subr.bf16.mxu0 0
        %687 = vmatpush2.bf16.msra.mxu0 0
        %688 = vmatprep.subr.bf16.mxu0 0
        %689 = vmatpush2.bf16.msra.mxu0 0
        %690 = vmatprep.subr.bf16.mxu0 0
        %691 = vmatpush2.bf16.msra.mxu0 0
        %692 = vmatprep.subr.bf16.mxu0 0
        %693 = vmatpush2.bf16.msra.mxu0 0
        %694 = vmatprep.subr.bf16.mxu0 0
        %695 = vmatpush2.bf16.msra.mxu0 0
        %696 = vmatprep.subr.bf16.mxu0 0
        %697 = vmatpush2.bf16.msra.mxu0 0
        %698 = vmatprep.mubr.bf16.mxu0 0
        %699 = vmatmul.mubr.bf16.gmra.mxu0 %v664
        %v700 = vpop.f32.mrf.mxu0
        %v701 = vadd.f32 0.0, %v700
        %v702 = vpop.f32.mrf.mxu0
        %v703 = vpop.f32.mrf.mxu0
        %v704 = vadd.f32 0.0, %v703
        %v705 = vpop.f32.mrf.mxu0
        %706 = vdwg.mxu0
        %709 = vrot.lane.b32.xlu0 %v701, 64
        %v710 = vpop.permute.xlu0 %709
        %711 = vrot.lane.b32.xlu0 %v704, 64
        %v712 = vpop.permute.xlu0 %711
        %v715 = vsel %vm464, %v580, %v710
        %v716 = vsel %vm464, %v583, %v712
        %v717 = vpack.c.bf16 %v716, %v715
        %v719 = vunpack.c.l.b16 %v717
        %v720 = vunpack.c.h.b16 %v717
        %v721 = vpack.c.b16 %v719, %v719
        %v722 = vpack.c.b16 %v720, %v720
        %725 = vst [vmem:[%s438] sm:$0xf] %v721
        %726 = vst [vmem:[%s438 + $0x4] sm:$0xf] %v722
        %s727 = smul.u32 2, %s19
        %p728 = scmp.lt.s32.totalorder %s727, 3
        %s729 = scalar_select %p728, %s727, 3
        %p730 = scmp.lt.s32.totalorder %s20, 0
        %s731 = scalar_select %p730, %s20, 0
        %s732 = sadd.s32 %s731, %s729
        %s733 = smul.addr %s732, 4
        %s734 = scalar_lea.vmem %s4, %s733
        // Predicated region
        $region160: #{pairwise_bert_forward.15} parent=146 // pred_check
          %p735 = pneg %p161
        $region161: #{pairwise_bert_forward.15} parent=146 // pred_check_branch
          %737 = sbr.rel (%p735) target = $region163
        $region162: #{pairwise_bert_forward.15} parent=146 // pred_region
          %s738 = smul.u32 2, %s19
        $region163: #{pairwise_bert_forward.15} parent=146 // pred_fallthru
          _
      $region147: #{pairwise_bert_forward.15} parent=5 // pred_fallthru
        _
      %p739 = scmp.le.s32.totalorder 2, %s10
      // Predicated region
      $region164: #{pairwise_bert_forward.15} parent=5 // pred_check
        %p740 = pneg %p739
      $region165: #{pairwise_bert_forward.15} parent=5 // pred_check_branch
        %742 = sbr.rel (%p740) target = $region167
      $region166: #{pairwise_bert_forward.15} parent=5 // pred_region
        %s743 = ssub.s32 %s10, 2
        // Predicated region
        $region168: #{pairwise_bert_forward.15} parent=166 // pred_check
          %p744 = pneg %p167
        $region169: #{pairwise_bert_forward.15} parent=166 // pred_check_branch
          %746 = sbr.rel (%p744) target = $region171
        $region170: #{pairwise_bert_forward.15} parent=166 // pred_region
          %s747 = smul.u32 2, %s21
          %p748 = scmp.lt.s32.totalorder %s747, 3
          %s749 = scalar_select %p748, %s747, 3
          %p750 = scmp.lt.s32.totalorder %s22, 0
          %s751 = scalar_select %p750, %s22, 0
          %s752 = sadd.s32 %s751, %s749
          %s753 = smul.addr %s752, 4
          %s754 = scalar_lea.vmem %s4, %s753
        $region171: #{pairwise_bert_forward.15} parent=166 // pred_fallthru
          _
      $region167: #{pairwise_bert_forward.15} parent=5 // pred_fallthru
        _
    $region6: #{pairwise_bert_forward.15} parent=1 // loop_footer
      %s14 = sadd.s32 1, %s10
    $region7: #{pairwise_bert_forward.15} parent=1 // loop_footer_branch
      %9 = sbr.rel target = $region3
    $region8: #{pairwise_bert_forward.15} parent=1 // loop_exit
      _

// kernel: pairwise_bert_forward.17
$region0: #{pairwise_bert_forward.17}
  #allocation0 [shape = 'u32[]', space=smem, size = 0x4, offset = 0x4, fixed_abs, tag = 'smem constant byte address 0x4 - core index']
  #allocation1 [shape = 'u32[144,128]{1,0:T(1,128)}', space=vmem, size = 0x12000, scoped, tag = 'internal scratch']
  %s0 = inlined_call_operand.vmem [shape: bf16[32,128], index: 0, kind: input, shape index: {}]
  %s1 = inlined_call_operand.vmem [shape: bf16[128,256], index: 1, kind: input, shape index: {}]
  %s2 = inlined_call_operand.vmem [shape: f32[1,256], index: 2, kind: input, shape index: {}]
  %s3 = inlined_call_operand.vmem [shape: bf16[32,256], index: 3, kind: output, shape index: {}]
  %s4 = sld [smem:[#allocation0]]
  $region22: #{pairwise_bert_forward.17} parent=0
    _
  %s6 = ssub.s32 1, %s4
  %s7 = scalar_select 0, %s6, %s4
  // Predicated region
  $region2: #{pairwise_bert_forward.17} parent=0 // pred_check
    _
  $region3: #{pairwise_bert_forward.17} parent=0 // pred_check_branch
    %9 = sbr.rel (0) target = $region5
  $region4: #{pairwise_bert_forward.17} parent=0 // pred_region
    _
  $region5: #{pairwise_bert_forward.17} parent=0 // pred_fallthru
    _
  // Predicated region
  $region6: #{pairwise_bert_forward.17} parent=0 // pred_check
    _
  $region7: #{pairwise_bert_forward.17} parent=0 // pred_check_branch
    %11 = sbr.rel (0) target = $region9
  $region8: #{pairwise_bert_forward.17} parent=0 // pred_region
    _
  $region9: #{pairwise_bert_forward.17} parent=0 // pred_fallthru
    _
  // Predicated region
  $region10: #{pairwise_bert_forward.17} parent=0 // pred_check
    _
  $region11: #{pairwise_bert_forward.17} parent=0 // pred_check_branch
    %13 = sbr.rel (0) target = $region13
  $region12: #{pairwise_bert_forward.17} parent=0 // pred_region
    _
  $region13: #{pairwise_bert_forward.17} parent=0 // pred_fallthru
    _
  %v15 = vld [vmem:[%s0] sm:$0xf]
  %v16 = vld [vmem:[%s0 + $0x4] sm:$0xf]
  %v17 = vld [vmem:[%s0 + $0x8] sm:$0xf]
  %v18 = vld [vmem:[%s0 + $0xc] sm:$0xf]
  %v19 = vld [vmem:[%s1] sm:$0xff]
  %v20 = vld [vmem:[%s1 + $0x8] sm:$0xff]
  %v21 = vld [vmem:[%s1 + $0x10] sm:$0xff]
  %v22 = vld [vmem:[%s1 + $0x18] sm:$0xff]
  %v23 = vld [vmem:[%s1 + $0x20] sm:$0xff]
  %v24 = vld [vmem:[%s1 + $0x28] sm:$0xff]
  %v25 = vld [vmem:[%s1 + $0x30] sm:$0xff]
  %v26 = vld [vmem:[%s1 + $0x38] sm:$0xff]
  %v27 = vld [vmem:[%s1 + $0x40] sm:$0xff]
  %v28 = vld [vmem:[%s1 + $0x48] sm:$0xff]
  %v29 = vld [vmem:[%s1 + $0x50] sm:$0xff]
  %v30 = vld [vmem:[%s1 + $0x58] sm:$0xff]
  %v31 = vld [vmem:[%s1 + $0x60] sm:$0xff]
  %v32 = vld [vmem:[%s1 + $0x68] sm:$0xff]
  %v33 = vld [vmem:[%s1 + $0x70] sm:$0xff]
  %v34 = vld [vmem:[%s1 + $0x78] sm:$0xff]
  %v35 = vld [vmem:[%s2] sm:$0x3]
  %v37 = vlaneseq
  %v38 = vshrl.u32 %v37, 7
  %v39 = vsub.s32 0, %v38
  %v40 = vrot.slane %v35, %v39
  %v41 = vlaneseq
  %v42 = vshrl.u32 %v41, 7
  %v43 = vsub.s32 1, %v42
  %v44 = vrot.slane %v35, %v43
  %v51 = vunpack.c.l.b16 %v15
  %v52 = vunpack.c.l.b16 %v16
  %v53 = vunpack.c.l.b16 %v17
  %v54 = vunpack.c.l.b16 %v18
  %v55 = vpack.c.b16 %v52, %v51
  %v56 = vpack.c.b16 %v54, %v53
  %v75 = vunpack.c.l.b16 %v19
  %v76 = vunpack.c.h.b16 %v19
  %v77 = vunpack.c.l.b16 %v20
  %v78 = vunpack.c.h.b16 %v20
  %v79 = vunpack.c.l.b16 %v21
  %v80 = vunpack.c.h.b16 %v21
  %v81 = vunpack.c.l.b16 %v22
  %v82 = vunpack.c.h.b16 %v22
  %v83 = vunpack.c.l.b16 %v23
  %v84 = vunpack.c.h.b16 %v23
  %v85 = vunpack.c.l.b16 %v24
  %v86 = vunpack.c.h.b16 %v24
  %v87 = vunpack.c.l.b16 %v25
  %v88 = vunpack.c.h.b16 %v25
  %v89 = vunpack.c.l.b16 %v26
  %v90 = vunpack.c.h.b16 %v26
  %v91 = vunpack.c.l.b16 %v27
  %v92 = vunpack.c.h.b16 %v27
  %v93 = vunpack.c.l.b16 %v28
  %v94 = vunpack.c.h.b16 %v28
  %v95 = vunpack.c.l.b16 %v29
  %v96 = vunpack.c.h.b16 %v29
  %v97 = vunpack.c.l.b16 %v30
  %v98 = vunpack.c.h.b16 %v30
  %v99 = vunpack.c.l.b16 %v31
  %v100 = vunpack.c.h.b16 %v31
  %v101 = vunpack.c.l.b16 %v32
  %v102 = vunpack.c.h.b16 %v32
  %v103 = vunpack.c.l.b16 %v33
  %v104 = vunpack.c.h.b16 %v33
  %v105 = vunpack.c.l.b16 %v34
  %v106 = vunpack.c.h.b16 %v34
  %v107 = vpack.c.b16 %v77, %v75
  %v108 = vpack.c.b16 %v78, %v76
  %v109 = vpack.c.b16 %v81, %v79
  %v110 = vpack.c.b16 %v82, %v80
  %v111 = vpack.c.b16 %v85, %v83
  %v112 = vpack.c.b16 %v86, %v84
  %v113 = vpack.c.b16 %v89, %v87
  %v114 = vpack.c.b16 %v90, %v88
  %v115 = vpack.c.b16 %v93, %v91
  %v116 = vpack.c.b16 %v94, %v92
  %v117 = vpack.c.b16 %v97, %v95
  %v118 = vpack.c.b16 %v98, %v96
  %v119 = vpack.c.b16 %v101, %v99
  %v120 = vpack.c.b16 %v102, %v100
  %v121 = vpack.c.b16 %v105, %v103
  %v122 = vpack.c.b16 %v106, %v104
  %139 = vmatprep.subr.bf16.mxu0 %v122
  %140 = vmatpush1.bf16.msra.mxu0 %v121
  %141 = vmatprep.subr.bf16.mxu0 %v120
  %142 = vmatpush1.bf16.msra.mxu0 %v119
  %143 = vmatprep.subr.bf16.mxu0 %v118
  %144 = vmatpush1.bf16.msra.mxu0 %v117
  %145 = vmatprep.subr.bf16.mxu0 %v116
  %146 = vmatpush1.bf16.msra.mxu0 %v115
  %147 = vmatprep.subr.bf16.mxu0 %v114
  %148 = vmatpush1.bf16.msra.mxu0 %v113
  %149 = vmatprep.subr.bf16.mxu0 %v112
  %150 = vmatpush1.bf16.msra.mxu0 %v111
  %151 = vmatprep.subr.bf16.mxu0 %v110
  %152 = vmatpush1.bf16.msra.mxu0 %v109
  %153 = vmatprep.subr.bf16.mxu0 %v108
  %154 = vmatpush1.bf16.msra.mxu0 %v107
  %155 = vmatprep.subr.bf16.mxu0 0
  %156 = vmatpush2.bf16.msra.mxu0 0
  %157 = vmatprep.subr.bf16.mxu0 0
  %158 = vmatpush2.bf16.msra.mxu0 0
  %159 = vmatprep.subr.bf16.mxu0 0
  %160 = vmatpush2.bf16.msra.mxu0 0
  %161 = vmatprep.subr.bf16.mxu0 0
  %162 = vmatpush2.bf16.msra.mxu0 0
  %163 = vmatprep.subr.bf16.mxu0 0
  %164 = vmatpush2.bf16.msra.mxu0 0
  %165 = vmatprep.subr.bf16.mxu0 0
  %166 = vmatpush2.bf16.msra.mxu0 0
  %167 = vmatprep.subr.bf16.mxu0 0
  %168 = vmatpush2.bf16.msra.mxu0 0
  %169 = vmatprep.subr.bf16.mxu0 0
  %170 = vmatpush2.bf16.msra.mxu0 0
  %171 = vmatprep.mubr.bf16.mxu0 0
  %172 = vmatmul.mubr.bf16.gmra.mxu0 %v55
  %v173 = vpop.f32.mrf.mxu0
  %v174 = vadd.f32 %v40, %v173
  %v175 = vpop.f32.mrf.mxu0
  %v176 = vadd.f32 %v44, %v175
  %v177 = vpop.f32.mrf.mxu0
  %v178 = vadd.f32 %v40, %v177
  %v179 = vpop.f32.mrf.mxu0
  %v180 = vadd.f32 %v44, %v179
  %181 = vmatprep.mubr.bf16.mxu0 0
  %182 = vmatmul.mubr.bf16.gmra.mxu0 %v56
  %v183 = vpop.f32.mrf.mxu0
  %v184 = vadd.f32 %v40, %v183
  %v185 = vpop.f32.mrf.mxu0
  %v186 = vadd.f32 %v44, %v185
  %v187 = vpop.f32.mrf.mxu0
  %v188 = vadd.f32 %v40, %v187
  %v189 = vpop.f32.mrf.mxu0
  %v190 = vadd.f32 %v44, %v189
  %191 = vdwg.mxu0
  %v192 = vmul.f32 %v174, 0.5
  %v193 = vmul.f32 %v176, 0.5
  %v194 = vmul.f32 %v178, 0.5
  %v195 = vmul.f32 %v180, 0.5
  %v196 = vmul.f32 %v184, 0.5
  %v197 = vmul.f32 %v186, 0.5
  %v198 = vmul.f32 %v188, 0.5
  %v199 = vmul.f32 %v190, 0.5
  %v200 = vmul.f32 %v174, 0.044715
  %v201 = vmul.f32 %v176, 0.044715
  %v202 = vmul.f32 %v178, 0.044715
  %v203 = vmul.f32 %v180, 0.044715
  %v204 = vmul.f32 %v184, 0.044715
  %v205 = vmul.f32 %v186, 0.044715
  %v206 = vmul.f32 %v188, 0.044715
  %v207 = vmul.f32 %v190, 0.044715
  %v208 = vmul.f32 %v200, %v174
  %v209 = vmul.f32 %v201, %v176
  %v210 = vmul.f32 %v202, %v178
  %v211 = vmul.f32 %v203, %v180
  %v212 = vmul.f32 %v204, %v184
  %v213 = vmul.f32 %v205, %v186
  %v214 = vmul.f32 %v206, %v188
  %v215 = vmul.f32 %v207, %v190
  %v216 = vmul.f32 %v208, %v174
  %v217 = vmul.f32 %v209, %v176
  %v218 = vmul.f32 %v210, %v178
  %v219 = vmul.f32 %v211, %v180
  %v220 = vmul.f32 %v212, %v184
  %v221 = vmul.f32 %v213, %v186
  %v222 = vmul.f32 %v214, %v188
  %v223 = vmul.f32 %v215, %v190
  %v224 = vadd.f32 %v174, %v216
  %v225 = vadd.f32 %v176, %v217
  %v226 = vadd.f32 %v178, %v218
  %v227 = vadd.f32 %v180, %v219
  %v228 = vadd.f32 %v184, %v220
  %v229 = vadd.f32 %v186, %v221
  %v230 = vadd.f32 %v188, %v222
  %v231 = vadd.f32 %v190, %v223
  %v232 = vmul.f32 %v224, 0.7978846
  %v233 = vmul.f32 %v225, 0.7978846
  %v234 = vmul.f32 %v226, 0.7978846
  %v235 = vmul.f32 %v227, 0.7978846
  %v236 = vmul.f32 %v228, 0.7978846
  %v237 = vmul.f32 %v229, 0.7978846
  %v238 = vmul.f32 %v230, 0.7978846
  %v239 = vmul.f32 %v231, 0.7978846
  %v240 = vtanh.pop %v232
  %v241 = vtanh.pop %v233
  %v242 = vtanh.pop %v234
  %v243 = vtanh.pop %v235
  %v244 = vtanh.pop %v236
  %v245 = vtanh.pop %v237
  %v246 = vtanh.pop %v238
  %v247 = vtanh.pop %v239
  %v248 = vadd.f32 %v240, 1.0
  %v249 = vadd.f32 %v241, 1.0
  %v250 = vadd.f32 %v242, 1.0
  %v251 = vadd.f32 %v243, 1.0
  %v252 = vadd.f32 %v244, 1.0
  %v253 = vadd.f32 %v245, 1.0
  %v254 = vadd.f32 %v246, 1.0
  %v255 = vadd.f32 %v247, 1.0
  %v256 = vmul.f32 %v192, %v248
  %v257 = vmul.f32 %v193, %v249
  %v258 = vmul.f32 %v194, %v250
  %v259 = vmul.f32 %v195, %v251
  %v260 = vmul.f32 %v196, %v252
  %v261 = vmul.f32 %v197, %v253
  %v262 = vmul.f32 %v198, %v254
  %v263 = vmul.f32 %v199, %v255
  %v264 = vpack.c.bf16 %v258, %v256
  %v265 = vpack.c.bf16 %v259, %v257
  %v266 = vpack.c.bf16 %v262, %v260
  %v267 = vpack.c.bf16 %v263, %v261
  %v272 = vunpack.c.l.b16 %v264
  %v273 = vunpack.c.l.b16 %v265
  %v274 = vunpack.c.h.b16 %v264
  %v275 = vunpack.c.h.b16 %v265
  %v276 = vunpack.c.l.b16 %v266
  %v277 = vunpack.c.l.b16 %v267
  %v278 = vunpack.c.h.b16 %v266
  %v279 = vunpack.c.h.b16 %v267
  %v280 = vpack.c.b16 %v273, %v272
  %v281 = vpack.c.b16 %v275, %v274
  %v282 = vpack.c.b16 %v277, %v276
  %v283 = vpack.c.b16 %v279, %v278
  %288 = vst [vmem:[%s3] sm:$0xff] %v280
  %289 = vst [vmem:[%s3 + $0x8] sm:$0xff] %v281
  %290 = vst [vmem:[%s3 + $0x10] sm:$0xff] %v282
  %291 = vst [vmem:[%s3 + $0x18] sm:$0xff] %v283
  // Predicated region
  $region14: #{pairwise_bert_forward.17} parent=0 // pred_check
    _
  $region15: #{pairwise_bert_forward.17} parent=0 // pred_check_branch
    %293 = sbr.rel (0) target = $region17
  $region16: #{pairwise_bert_forward.17} parent=0 // pred_region
    _
  $region17: #{pairwise_bert_forward.17} parent=0 // pred_fallthru
    _
  // Predicated region
  $region18: #{pairwise_bert_forward.17} parent=0 // pred_check
    _
  $region19: #{pairwise_bert_forward.17} parent=0 // pred_check_branch
    %295 = sbr.rel (0) target = $region21
  $region20: #{pairwise_bert_forward.17} parent=0 // pred_region
    _
  $region21: #{pairwise_bert_forward.17} parent=0 // pred_fallthru
    _

// kernel: pairwise_bert_forward.18
$region0: #{pairwise_bert_forward.18}
  #allocation0 [shape = 'u32[]', space=smem, size = 0x4, offset = 0x4, fixed_abs, tag = 'smem constant byte address 0x4 - core index']
  #allocation1 [shape = 'u32[144,128]{1,0:T(1,128)}', space=vmem, size = 0x12000, scoped, tag = 'internal scratch']
  %s0 = inlined_call_operand.vmem [shape: bf16[32,256], index: 0, kind: input, shape index: {}]
  %s1 = inlined_call_operand.vmem [shape: bf16[256,128], index: 1, kind: input, shape index: {}]
  %s2 = inlined_call_operand.vmem [shape: f32[1,128], index: 2, kind: input, shape index: {}]
  %s3 = inlined_call_operand.vmem [shape: bf16[32,128], index: 3, kind: input, shape index: {}]
  %s4 = inlined_call_operand.vmem [shape: f32[1,128], index: 4, kind: input, shape index: {}]
  %s5 = inlined_call_operand.vmem [shape: f32[1,128], index: 5, kind: input, shape index: {}]
  %s6 = inlined_call_operand.vmem [shape: bf16[32,128], index: 6, kind: output, shape index: {}]
  %s7 = sld [smem:[#allocation0]]
  $region34: #{pairwise_bert_forward.18} parent=0
    _
  %s9 = ssub.s32 1, %s7
  %s10 = scalar_select 0, %s9, %s7
  // Predicated region
  $region2: #{pairwise_bert_forward.18} parent=0 // pred_check
    _
  $region3: #{pairwise_bert_forward.18} parent=0 // pred_check_branch
    %12 = sbr.rel (0) target = $region5
  $region4: #{pairwise_bert_forward.18} parent=0 // pred_region
    _
  $region5: #{pairwise_bert_forward.18} parent=0 // pred_fallthru
    _
  // Predicated region
  $region6: #{pairwise_bert_forward.18} parent=0 // pred_check
    _
  $region7: #{pairwise_bert_forward.18} parent=0 // pred_check_branch
    %14 = sbr.rel (0) target = $region9
  $region8: #{pairwise_bert_forward.18} parent=0 // pred_region
    _
  $region9: #{pairwise_bert_forward.18} parent=0 // pred_fallthru
    _
  // Predicated region
  $region10: #{pairwise_bert_forward.18} parent=0 // pred_check
    _
  $region11: #{pairwise_bert_forward.18} parent=0 // pred_check_branch
    %16 = sbr.rel (0) target = $region13
  $region12: #{pairwise_bert_forward.18} parent=0 // pred_region
    _
  $region13: #{pairwise_bert_forward.18} parent=0 // pred_fallthru
    _
  // Predicated region
  $region14: #{pairwise_bert_forward.18} parent=0 // pred_check
    _
  $region15: #{pairwise_bert_forward.18} parent=0 // pred_check_branch
    %18 = sbr.rel (0) target = $region17
  $region16: #{pairwise_bert_forward.18} parent=0 // pred_region
    _
  $region17: #{pairwise_bert_forward.18} parent=0 // pred_fallthru
    _
  // Predicated region
  $region18: #{pairwise_bert_forward.18} parent=0 // pred_check
    _
  $region19: #{pairwise_bert_forward.18} parent=0 // pred_check_branch
    %20 = sbr.rel (0) target = $region21
  $region20: #{pairwise_bert_forward.18} parent=0 // pred_region
    _
  $region21: #{pairwise_bert_forward.18} parent=0 // pred_fallthru
    _
  // Predicated region
  $region22: #{pairwise_bert_forward.18} parent=0 // pred_check
    _
  $region23: #{pairwise_bert_forward.18} parent=0 // pred_check_branch
    %22 = sbr.rel (0) target = $region25
  $region24: #{pairwise_bert_forward.18} parent=0 // pred_region
    _
  $region25: #{pairwise_bert_forward.18} parent=0 // pred_fallthru
    _
  %v24 = vld [vmem:[%s0] sm:$0xff]
  %v25 = vld [vmem:[%s0 + $0x8] sm:$0xff]
  %v26 = vld [vmem:[%s0 + $0x10] sm:$0xff]
  %v27 = vld [vmem:[%s0 + $0x18] sm:$0xff]
  %v28 = vld [vmem:[%s1] sm:$0xf]
  %v29 = vld [vmem:[%s1 + $0x4] sm:$0xf]
  %v30 = vld [vmem:[%s1 + $0x8] sm:$0xf]
  %v31 = vld [vmem:[%s1 + $0xc] sm:$0xf]
  %v32 = vld [vmem:[%s1 + $0x10] sm:$0xf]
  %v33 = vld [vmem:[%s1 + $0x14] sm:$0xf]
  %v34 = vld [vmem:[%s1 + $0x18] sm:$0xf]
  %v35 = vld [vmem:[%s1 + $0x1c] sm:$0xf]
  %v36 = vld [vmem:[%s1 + $0x20] sm:$0xf]
  %v37 = vld [vmem:[%s1 + $0x24] sm:$0xf]
  %v38 = vld [vmem:[%s1 + $0x28] sm:$0xf]
  %v39 = vld [vmem:[%s1 + $0x2c] sm:$0xf]
  %v40 = vld [vmem:[%s1 + $0x30] sm:$0xf]
  %v41 = vld [vmem:[%s1 + $0x34] sm:$0xf]
  %v42 = vld [vmem:[%s1 + $0x38] sm:$0xf]
  %v43 = vld [vmem:[%s1 + $0x3c] sm:$0xf]
  %v44 = vld [vmem:[%s1 + $0x40] sm:$0xf]
  %v45 = vld [vmem:[%s1 + $0x44] sm:$0xf]
  %v46 = vld [vmem:[%s1 + $0x48] sm:$0xf]
  %v47 = vld [vmem:[%s1 + $0x4c] sm:$0xf]
  %v48 = vld [vmem:[%s1 + $0x50] sm:$0xf]
  %v49 = vld [vmem:[%s1 + $0x54] sm:$0xf]
  %v50 = vld [vmem:[%s1 + $0x58] sm:$0xf]
  %v51 = vld [vmem:[%s1 + $0x5c] sm:$0xf]
  %v52 = vld [vmem:[%s1 + $0x60] sm:$0xf]
  %v53 = vld [vmem:[%s1 + $0x64] sm:$0xf]
  %v54 = vld [vmem:[%s1 + $0x68] sm:$0xf]
  %v55 = vld [vmem:[%s1 + $0x6c] sm:$0xf]
  %v56 = vld [vmem:[%s1 + $0x70] sm:$0xf]
  %v57 = vld [vmem:[%s1 + $0x74] sm:$0xf]
  %v58 = vld [vmem:[%s1 + $0x78] sm:$0xf]
  %v59 = vld [vmem:[%s1 + $0x7c] sm:$0xf]
  %v60 = vld [vmem:[%s2] sm:$0x1]
  %v62 = vlaneseq
  %v63 = vshrl.u32 %v62, 7
  %v64 = vsub.s32 0, %v63
  %v65 = vrot.slane %v60, %v64
  %v71 = vunpack.c.l.b16 %v24
  %v72 = vunpack.c.h.b16 %v24
  %v73 = vunpack.c.l.b16 %v25
  %v74 = vunpack.c.h.b16 %v25
  %v75 = vunpack.c.l.b16 %v26
  %v76 = vunpack.c.h.b16 %v26
  %v77 = vunpack.c.l.b16 %v27
  %v78 = vunpack.c.h.b16 %v27
  %v79 = vpack.c.b16 %v73, %v71
  %v80 = vpack.c.b16 %v74, %v72
  %v81 = vpack.c.b16 %v77, %v75
  %v82 = vpack.c.b16 %v78, %v76
  %v119 = vunpack.c.l.b16 %v28
  %v120 = vunpack.c.l.b16 %v29
  %v121 = vunpack.c.l.b16 %v30
  %v122 = vunpack.c.l.b16 %v31
  %v123 = vunpack.c.l.b16 %v32
  %v124 = vunpack.c.l.b16 %v33
  %v125 = vunpack.c.l.b16 %v34
  %v126 = vunpack.c.l.b16 %v35
  %v127 = vunpack.c.l.b16 %v36
  %v128 = vunpack.c.l.b16 %v37
  %v129 = vunpack.c.l.b16 %v38
  %v130 = vunpack.c.l.b16 %v39
  %v131 = vunpack.c.l.b16 %v40
  %v132 = vunpack.c.l.b16 %v41
  %v133 = vunpack.c.l.b16 %v42
  %v134 = vunpack.c.l.b16 %v43
  %v135 = vunpack.c.l.b16 %v44
  %v136 = vunpack.c.l.b16 %v45
  %v137 = vunpack.c.l.b16 %v46
  %v138 = vunpack.c.l.b16 %v47
  %v139 = vunpack.c.l.b16 %v48
  %v140 = vunpack.c.l.b16 %v49
  %v141 = vunpack.c.l.b16 %v50
  %v142 = vunpack.c.l.b16 %v51
  %v143 = vunpack.c.l.b16 %v52
  %v144 = vunpack.c.l.b16 %v53
  %v145 = vunpack.c.l.b16 %v54
  %v146 = vunpack.c.l.b16 %v55
  %v147 = vunpack.c.l.b16 %v56
  %v148 = vunpack.c.l.b16 %v57
  %v149 = vunpack.c.l.b16 %v58
  %v150 = vunpack.c.l.b16 %v59
  %v151 = vpack.c.b16 %v120, %v119
  %v152 = vpack.c.b16 %v122, %v121
  %v153 = vpack.c.b16 %v124, %v123
  %v154 = vpack.c.b16 %v126, %v125
  %v155 = vpack.c.b16 %v128, %v127
  %v156 = vpack.c.b16 %v130, %v129
  %v157 = vpack.c.b16 %v132, %v131
  %v158 = vpack.c.b16 %v134, %v133
  %v159 = vpack.c.b16 %v136, %v135
  %v160 = vpack.c.b16 %v138, %v137
  %v161 = vpack.c.b16 %v140, %v139
  %v162 = vpack.c.b16 %v142, %v141
  %v163 = vpack.c.b16 %v144, %v143
  %v164 = vpack.c.b16 %v146, %v145
  %v165 = vpack.c.b16 %v148, %v147
  %v166 = vpack.c.b16 %v150, %v149
  %183 = vmatprep.subr.bf16.mxu0 0
  %184 = vmatpush1.bf16.msra.mxu0 %v158
  %185 = vmatprep.subr.bf16.mxu0 0
  %186 = vmatpush1.bf16.msra.mxu0 %v157
  %187 = vmatprep.subr.bf16.mxu0 0
  %188 = vmatpush1.bf16.msra.mxu0 %v156
  %189 = vmatprep.subr.bf16.mxu0 0
  %190 = vmatpush1.bf16.msra.mxu0 %v155
  %191 = vmatprep.subr.bf16.mxu0 0
  %192 = vmatpush1.bf16.msra.mxu0 %v154
  %193 = vmatprep.subr.bf16.mxu0 0
  %194 = vmatpush1.bf16.msra.mxu0 %v153
  %195 = vmatprep.subr.bf16.mxu0 0
  %196 = vmatpush1.bf16.msra.mxu0 %v152
  %197 = vmatprep.subr.bf16.mxu0 0
  %198 = vmatpush1.bf16.msra.mxu0 %v151
  %199 = vmatprep.subr.bf16.mxu0 0
  %200 = vmatpush2.bf16.msra.mxu0 %v166
  %201 = vmatprep.subr.bf16.mxu0 0
  %202 = vmatpush2.bf16.msra.mxu0 %v165
  %203 = vmatprep.subr.bf16.mxu0 0
  %204 = vmatpush2.bf16.msra.mxu0 %v164
  %205 = vmatprep.subr.bf16.mxu0 0
  %206 = vmatpush2.bf16.msra.mxu0 %v163
  %207 = vmatprep.subr.bf16.mxu0 0
  %208 = vmatpush2.bf16.msra.mxu0 %v162
  %209 = vmatprep.subr.bf16.mxu0 0
  %210 = vmatpush2.bf16.msra.mxu0 %v161
  %211 = vmatprep.subr.bf16.mxu0 0
  %212 = vmatpush2.bf16.msra.mxu0 %v160
  %213 = vmatprep.subr.bf16.mxu0 0
  %214 = vmatpush2.bf16.msra.mxu0 %v159
  %215 = vmatprep.mubr.bf16.mxu0 %v80
  %216 = vmatmul.mubr.bf16.gmra.mxu0 %v79
  %v217 = vpop.f32.mrf.mxu0
  %v218 = vadd.f32 %v65, %v217
  %v219 = vpop.f32.mrf.mxu0
  %v220 = vpop.f32.mrf.mxu0
  %v221 = vadd.f32 %v65, %v220
  %v222 = vpop.f32.mrf.mxu0
  %223 = vmatprep.mubr.bf16.mxu0 %v82
  %224 = vmatmul.mubr.bf16.gmra.mxu0 %v81
  %v225 = vpop.f32.mrf.mxu0
  %v226 = vadd.f32 %v65, %v225
  %v227 = vpop.f32.mrf.mxu0
  %v228 = vpop.f32.mrf.mxu0
  %v229 = vadd.f32 %v65, %v228
  %v230 = vpop.f32.mrf.mxu0
  %231 = vdwg.mxu0
  %v232 = vld [vmem:[%s3] sm:$0xf]
  %v233 = vld [vmem:[%s3 + $0x4] sm:$0xf]
  %v234 = vld [vmem:[%s3 + $0x8] sm:$0xf]
  %v235 = vld [vmem:[%s3 + $0xc] sm:$0xf]
  %v236 = vunpack.c.l.bf16 %v232
  %v237 = vunpack.c.l.bf16 %v233
  %v238 = vunpack.c.l.bf16 %v234
  %v239 = vunpack.c.l.bf16 %v235
  %v240 = vadd.f32 %v218, %v236
  %v241 = vadd.f32 %v221, %v237
  %v242 = vadd.f32 %v226, %v238
  %v243 = vadd.f32 %v229, %v239
  %244 = vadd.xlane.f32.xlu0 %v240
  %v245 = vpop.xlane.xlu0 %244
  %246 = vadd.xlane.f32.xlu0 %v241
  %v247 = vpop.xlane.xlu0 %246
  %248 = vadd.xlane.f32.xlu0 %v242
  %v249 = vpop.xlane.xlu0 %248
  %250 = vadd.xlane.f32.xlu0 %v243
  %v251 = vpop.xlane.xlu0 %250
  %v252 = vrcp.pop 128.0
  %v253 = vmul.f32 %v245, %v252
  %v254 = vmul.f32 %v247, %v252
  %v255 = vmul.f32 %v249, %v252
  %v256 = vmul.f32 %v251, %v252
  %v257 = vsub.f32 %v240, %v253
  %v258 = vsub.f32 %v241, %v254
  %v259 = vsub.f32 %v242, %v255
  %v260 = vsub.f32 %v243, %v256
  %v261 = vmul.f32 %v257, %v257
  %v262 = vmul.f32 %v258, %v258
  %v263 = vmul.f32 %v259, %v259
  %v264 = vmul.f32 %v260, %v260
  %265 = vadd.xlane.f32.xlu0 %v261
  %v266 = vpop.xlane.xlu0 %265
  %267 = vadd.xlane.f32.xlu0 %v262
  %v268 = vpop.xlane.xlu0 %267
  %269 = vadd.xlane.f32.xlu0 %v263
  %v270 = vpop.xlane.xlu0 %269
  %271 = vadd.xlane.f32.xlu0 %v264
  %v272 = vpop.xlane.xlu0 %271
  %v273 = vmul.f32 %v266, %v252
  %v274 = vmul.f32 %v268, %v252
  %v275 = vmul.f32 %v270, %v252
  %v276 = vmul.f32 %v272, %v252
  %v277 = vadd.f32 %v273, 1e-12
  %v278 = vadd.f32 %v274, 1e-12
  %v279 = vadd.f32 %v275, 1e-12
  %v280 = vadd.f32 %v276, 1e-12
  %v281 = vrsqrt.pop %v277
  %v282 = vrsqrt.pop %v278
  %v283 = vrsqrt.pop %v279
  %v284 = vrsqrt.pop %v280
  %v285 = vmul.f32 %v257, %v281
  %v286 = vmul.f32 %v258, %v282
  %v287 = vmul.f32 %v259, %v283
  %v288 = vmul.f32 %v260, %v284
  %v289 = vld [vmem:[%s4] sm:$0x1]
  %v291 = vlaneseq
  %v292 = vshrl.u32 %v291, 7
  %v293 = vsub.s32 0, %v292
  %v294 = vrot.slane %v289, %v293
  %v296 = vmul.f32 %v285, %v294
  %v297 = vmul.f32 %v286, %v294
  %v298 = vmul.f32 %v287, %v294
  %v299 = vmul.f32 %v288, %v294
  %v300 = vld [vmem:[%s5] sm:$0x1]
  %v302 = vlaneseq
  %v303 = vshrl.u32 %v302, 7
  %v304 = vsub.s32 0, %v303
  %v305 = vrot.slane %v300, %v304
  %v307 = vadd.f32 %v296, %v305
  %v308 = vadd.f32 %v297, %v305
  %v309 = vadd.f32 %v298, %v305
  %v310 = vadd.f32 %v299, %v305
  %v311 = vpack.c.bf16 %v308, %v307
  %v312 = vpack.c.bf16 %v310, %v309
  %v315 = vunpack.c.l.b16 %v311
  %v316 = vunpack.c.h.b16 %v311
  %v317 = vunpack.c.l.b16 %v312
  %v318 = vunpack.c.h.b16 %v312
  %v319 = vpack.c.b16 %v315, %v315
  %v320 = vpack.c.b16 %v316, %v316
  %v321 = vpack.c.b16 %v317, %v317
  %v322 = vpack.c.b16 %v318, %v318
  %327 = vst [vmem:[%s6] sm:$0xf] %v319
  %328 = vst [vmem:[%s6 + $0x4] sm:$0xf] %v320
  %329 = vst [vmem:[%s6 + $0x8] sm:$0xf] %v321
  %330 = vst [vmem:[%s6 + $0xc] sm:$0xf] %v322
  // Predicated region
  $region26: #{pairwise_bert_forward.18} parent=0 // pred_check
    _
  $region27: #{pairwise_bert_forward.18} parent=0 // pred_check_branch
    %332 = sbr.rel (0) target = $region29
  $region28: #{pairwise_bert_forward.18} parent=0 // pred_region
    _
  $region29: #{pairwise_bert_forward.18} parent=0 // pred_fallthru
    _
  // Predicated region
  $region30: #{pairwise_bert_forward.18} parent=0 // pred_check
    _
  $region31: #{pairwise_bert_forward.18} parent=0 // pred_check_branch
    %334 = sbr.rel (0) target = $region33
  $region32: #{pairwise_bert_forward.18} parent=0 // pred_region
    _
  $region33: #{pairwise_bert_forward.18} parent=0 // pred_fallthru
    _

// kernel: pairwise_bert_forward.25
$region0: #{pairwise_bert_forward.25}
  #allocation0 [shape = 'u32[]', space=smem, size = 0x4, offset = 0x4, fixed_abs, tag = 'smem constant byte address 0x4 - core index']
  #allocation1 [shape = 'u32[144,128]{1,0:T(1,128)}', space=vmem, size = 0x12000, scoped, tag = 'internal scratch']
  %s0 = inlined_call_operand.vmem [shape: bf16[2,128], index: 0, kind: input, shape index: {}]
  %s1 = inlined_call_operand.vmem [shape: bf16[128,64], index: 1, kind: input, shape index: {}]
  %s2 = inlined_call_operand.vmem [shape: f32[1,64], index: 2, kind: input, shape index: {}]
  %s3 = inlined_call_operand.hbm [shape: f32[2,64], index: 3, kind: output, shape index: {}]
  %s4 = sld [smem:[#allocation0]]
  $region22: #{pairwise_bert_forward.25} parent=0
    _
  %s6 = ssub.s32 1, %s4
  %s7 = scalar_select 0, %s6, %s4
  $region1: #{pairwise_bert_forward.25} parent=0
    #allocation2 [shape = 'u8[1024]{0}', space=vmem, size = 0x400, scoped, tag = 'output window, operand 0, single buffered']
    #allocation3 [shape = 's32[1]{0}', space=sflag, size = 0x4, scoped, tag = 'scoped memory for pairwise_bert_forward.25']
    %8 = vsyncpa [#allocation3], 0
    // Predicated region
    $region2: #{pairwise_bert_forward.25} parent=1 // pred_check
      _
    $region3: #{pairwise_bert_forward.25} parent=1 // pred_check_branch
      %10 = sbr.rel (0) target = $region5
    $region4: #{pairwise_bert_forward.25} parent=1 // pred_region
      _
    $region5: #{pairwise_bert_forward.25} parent=1 // pred_fallthru
      _
    // Predicated region
    $region6: #{pairwise_bert_forward.25} parent=1 // pred_check
      _
    $region7: #{pairwise_bert_forward.25} parent=1 // pred_check_branch
      %12 = sbr.rel (0) target = $region9
    $region8: #{pairwise_bert_forward.25} parent=1 // pred_region
      _
    $region9: #{pairwise_bert_forward.25} parent=1 // pred_fallthru
      _
    // Predicated region
    $region10: #{pairwise_bert_forward.25} parent=1 // pred_check
      _
    $region11: #{pairwise_bert_forward.25} parent=1 // pred_check_branch
      %14 = sbr.rel (0) target = $region13
    $region12: #{pairwise_bert_forward.25} parent=1 // pred_region
      _
    $region13: #{pairwise_bert_forward.25} parent=1 // pred_fallthru
      _
    %v16 = vld [vmem:[%s0] sm:$0x1]
    %v17 = vld [vmem:[%s1] sm:$0xf]
    %v18 = vld [vmem:[%s1 + $0x4] sm:$0xf]
    %v19 = vld [vmem:[%s1 + $0x8] sm:$0xf]
    %v20 = vld [vmem:[%s1 + $0xc] sm:$0xf]
    %v21 = vld [vmem:[%s1 + $0x10] sm:$0xf]
    %v22 = vld [vmem:[%s1 + $0x14] sm:$0xf]
    %v23 = vld [vmem:[%s1 + $0x18] sm:$0xf]
    %v24 = vld [vmem:[%s1 + $0x1c] sm:$0xf]
    %v25 = vld [vmem:[%s1 + $0x20] sm:$0xf]
    %v26 = vld [vmem:[%s1 + $0x24] sm:$0xf]
    %v27 = vld [vmem:[%s1 + $0x28] sm:$0xf]
    %v28 = vld [vmem:[%s1 + $0x2c] sm:$0xf]
    %v29 = vld [vmem:[%s1 + $0x30] sm:$0xf]
    %v30 = vld [vmem:[%s1 + $0x34] sm:$0xf]
    %v31 = vld [vmem:[%s1 + $0x38] sm:$0xf]
    %v32 = vld [vmem:[%s1 + $0x3c] sm:$0xf]
    %v33 = vld [vmem:[%s2] sm:$0x1]
    %v35 = vlaneseq
    %v36 = vshrl.u32 %v35, 7
    %v37 = vsub.s32 0, %v36
    %v38 = vrot.slane %v33, %v37
    %v56 = vunpack.c.l.b16 %v17
    %v57 = vunpack.c.l.b16 %v18
    %v58 = vunpack.c.l.b16 %v19
    %v59 = vunpack.c.l.b16 %v20
    %v60 = vunpack.c.l.b16 %v21
    %v61 = vunpack.c.l.b16 %v22
    %v62 = vunpack.c.l.b16 %v23
    %v63 = vunpack.c.l.b16 %v24
    %v64 = vunpack.c.l.b16 %v25
    %v65 = vunpack.c.l.b16 %v26
    %v66 = vunpack.c.l.b16 %v27
    %v67 = vunpack.c.l.b16 %v28
    %v68 = vunpack.c.l.b16 %v29
    %v69 = vunpack.c.l.b16 %v30
    %v70 = vunpack.c.l.b16 %v31
    %v71 = vunpack.c.l.b16 %v32
    %v72 = vpack.c.b16 %v57, %v56
    %v73 = vpack.c.b16 %v59, %v58
    %v74 = vpack.c.b16 %v61, %v60
    %v75 = vpack.c.b16 %v63, %v62
    %v76 = vpack.c.b16 %v65, %v64
    %v77 = vpack.c.b16 %v67, %v66
    %v78 = vpack.c.b16 %v69, %v68
    %v79 = vpack.c.b16 %v71, %v70
    %88 = vmatprep.subr.bf16.mxu0 0
    %89 = vmatpush1.bf16.msra.mxu0 %v79
    %90 = vmatprep.subr.bf16.mxu0 0
    %91 = vmatpush1.bf16.msra.mxu0 %v78
    %92 = vmatprep.subr.bf16.mxu0 0
    %93 = vmatpush1.bf16.msra.mxu0 %v77
    %94 = vmatprep.subr.bf16.mxu0 0
    %95 = vmatpush1.bf16.msra.mxu0 %v76
    %96 = vmatprep.subr.bf16.mxu0 0
    %97 = vmatpush1.bf16.msra.mxu0 %v75
    %98 = vmatprep.subr.bf16.mxu0 0
    %99 = vmatpush1.bf16.msra.mxu0 %v74
    %100 = vmatprep.subr.bf16.mxu0 0
    %101 = vmatpush1.bf16.msra.mxu0 %v73
    %102 = vmatprep.subr.bf16.mxu0 0
    %103 = vmatpush1.bf16.msra.mxu0 %v72
    %104 = vmatprep.subr.bf16.mxu0 0
    %105 = vmatpush2.bf16.msra.mxu0 0
    %106 = vmatprep.subr.bf16.mxu0 0
    %107 = vmatpush2.bf16.msra.mxu0 0
    %108 = vmatprep.subr.bf16.mxu0 0
    %109 = vmatpush2.bf16.msra.mxu0 0
    %110 = vmatprep.subr.bf16.mxu0 0
    %111 = vmatpush2.bf16.msra.mxu0 0
    %112 = vmatprep.subr.bf16.mxu0 0
    %113 = vmatpush2.bf16.msra.mxu0 0
    %114 = vmatprep.subr.bf16.mxu0 0
    %115 = vmatpush2.bf16.msra.mxu0 0
    %116 = vmatprep.subr.bf16.mxu0 0
    %117 = vmatpush2.bf16.msra.mxu0 0
    %118 = vmatprep.subr.bf16.mxu0 0
    %119 = vmatpush2.bf16.msra.mxu0 0
    %120 = vmatprep.mubr.bf16.mxu0 0
    %121 = vmatmul.mubr.bf16.gmra.mxu0 %v16
    %v122 = vpop.f32.mrf.mxu0
    %v123 = vadd.f32 %v38, %v122
    %v124 = vpop.f32.mrf.mxu0
    %v125 = vpop.f32.mrf.mxu0
    %v126 = vpop.f32.mrf.mxu0
    %127 = vdwg.mxu0
    %vm128 = vcmask 517120
    %129 = vst.msk [vmem:[#allocation2] sm:$0x3] %vm128, %v123
    // Predicated region
    $region14: #{pairwise_bert_forward.25} parent=1 // pred_check
      _
    $region15: #{pairwise_bert_forward.25} parent=1 // pred_check_branch
      %131 = sbr.rel (0) target = $region17
    $region16: #{pairwise_bert_forward.25} parent=1 // pred_region
      %s133 = ssub.s32 32, 32
      %134 = vsyncadd [#allocation3], %s133
      %s136 = sshll.u32 [#allocation2], 4
      %s137 = int_to_ptr.vmem [resolvable:$true] %s136
      %139 = dma.vmem_to_hbm [thread:$0]  %s137, 32, %s3, [#allocation3]
    $region17: #{pairwise_bert_forward.25} parent=1 // pred_fallthru
      _
    // Predicated region
    $region18: #{pairwise_bert_forward.25} parent=1 // pred_check
      _
    $region19: #{pairwise_bert_forward.25} parent=1 // pred_check_branch
      %141 = sbr.rel (0) target = $region21
    $region20: #{pairwise_bert_forward.25} parent=1 // pred_region
      %142 = dma.done [#allocation3], 32
    $region21: #{pairwise_bert_forward.25} parent=1 // pred_fallthru
      _
    %143 = vsyncpa [#allocation3], 1

// kernel: pairwise_bert_forward.24
$region0: #{pairwise_bert_forward.24}
  #allocation0 [shape = 'u32[]', space=smem, size = 0x4, offset = 0x4, fixed_abs, tag = 'smem constant byte address 0x4 - core index']
  #allocation1 [shape = 'u32[144,128]{1,0:T(1,128)}', space=vmem, size = 0x12000, scoped, tag = 'internal scratch']
  %s0 = inlined_call_operand.vmem [shape: bf16[2,128], index: 0, kind: input, shape index: {}]
  %s1 = inlined_call_operand.vmem [shape: bf16[128,128], index: 1, kind: input, shape index: {}]
  %s2 = inlined_call_operand.vmem [shape: f32[1,128], index: 2, kind: input, shape index: {}]
  %s3 = inlined_call_operand.vmem [shape: bf16[2,128], index: 3, kind: output, shape index: {}]
  %s4 = sld [smem:[#allocation0]]
  $region22: #{pairwise_bert_forward.24} parent=0
    _
  %s6 = ssub.s32 1, %s4
  %s7 = scalar_select 0, %s6, %s4
  // Predicated region
  $region2: #{pairwise_bert_forward.24} parent=0 // pred_check
    _
  $region3: #{pairwise_bert_forward.24} parent=0 // pred_check_branch
    %9 = sbr.rel (0) target = $region5
  $region4: #{pairwise_bert_forward.24} parent=0 // pred_region
    _
  $region5: #{pairwise_bert_forward.24} parent=0 // pred_fallthru
    _
  // Predicated region
  $region6: #{pairwise_bert_forward.24} parent=0 // pred_check
    _
  $region7: #{pairwise_bert_forward.24} parent=0 // pred_check_branch
    %11 = sbr.rel (0) target = $region9
  $region8: #{pairwise_bert_forward.24} parent=0 // pred_region
    _
  $region9: #{pairwise_bert_forward.24} parent=0 // pred_fallthru
    _
  // Predicated region
  $region10: #{pairwise_bert_forward.24} parent=0 // pred_check
    _
  $region11: #{pairwise_bert_forward.24} parent=0 // pred_check_branch
    %13 = sbr.rel (0) target = $region13
  $region12: #{pairwise_bert_forward.24} parent=0 // pred_region
    _
  $region13: #{pairwise_bert_forward.24} parent=0 // pred_fallthru
    _
  %v15 = vld [vmem:[%s0] sm:$0x1]
  %v16 = vld [vmem:[%s1] sm:$0xf]
  %v17 = vld [vmem:[%s1 + $0x4] sm:$0xf]
  %v18 = vld [vmem:[%s1 + $0x8] sm:$0xf]
  %v19 = vld [vmem:[%s1 + $0xc] sm:$0xf]
  %v20 = vld [vmem:[%s1 + $0x10] sm:$0xf]
  %v21 = vld [vmem:[%s1 + $0x14] sm:$0xf]
  %v22 = vld [vmem:[%s1 + $0x18] sm:$0xf]
  %v23 = vld [vmem:[%s1 + $0x1c] sm:$0xf]
  %v24 = vld [vmem:[%s1 + $0x20] sm:$0xf]
  %v25 = vld [vmem:[%s1 + $0x24] sm:$0xf]
  %v26 = vld [vmem:[%s1 + $0x28] sm:$0xf]
  %v27 = vld [vmem:[%s1 + $0x2c] sm:$0xf]
  %v28 = vld [vmem:[%s1 + $0x30] sm:$0xf]
  %v29 = vld [vmem:[%s1 + $0x34] sm:$0xf]
  %v30 = vld [vmem:[%s1 + $0x38] sm:$0xf]
  %v31 = vld [vmem:[%s1 + $0x3c] sm:$0xf]
  %v32 = vld [vmem:[%s2] sm:$0x1]
  %v34 = vlaneseq
  %v35 = vshrl.u32 %v34, 7
  %v36 = vsub.s32 0, %v35
  %v37 = vrot.slane %v32, %v36
  %v55 = vunpack.c.l.b16 %v16
  %v56 = vunpack.c.l.b16 %v17
  %v57 = vunpack.c.l.b16 %v18
  %v58 = vunpack.c.l.b16 %v19
  %v59 = vunpack.c.l.b16 %v20
  %v60 = vunpack.c.l.b16 %v21
  %v61 = vunpack.c.l.b16 %v22
  %v62 = vunpack.c.l.b16 %v23
  %v63 = vunpack.c.l.b16 %v24
  %v64 = vunpack.c.l.b16 %v25
  %v65 = vunpack.c.l.b16 %v26
  %v66 = vunpack.c.l.b16 %v27
  %v67 = vunpack.c.l.b16 %v28
  %v68 = vunpack.c.l.b16 %v29
  %v69 = vunpack.c.l.b16 %v30
  %v70 = vunpack.c.l.b16 %v31
  %v71 = vpack.c.b16 %v56, %v55
  %v72 = vpack.c.b16 %v58, %v57
  %v73 = vpack.c.b16 %v60, %v59
  %v74 = vpack.c.b16 %v62, %v61
  %v75 = vpack.c.b16 %v64, %v63
  %v76 = vpack.c.b16 %v66, %v65
  %v77 = vpack.c.b16 %v68, %v67
  %v78 = vpack.c.b16 %v70, %v69
  %87 = vmatprep.subr.bf16.mxu0 0
  %88 = vmatpush1.bf16.msra.mxu0 %v78
  %89 = vmatprep.subr.bf16.mxu0 0
  %90 = vmatpush1.bf16.msra.mxu0 %v77
  %91 = vmatprep.subr.bf16.mxu0 0
  %92 = vmatpush1.bf16.msra.mxu0 %v76
  %93 = vmatprep.subr.bf16.mxu0 0
  %94 = vmatpush1.bf16.msra.mxu0 %v75
  %95 = vmatprep.subr.bf16.mxu0 0
  %96 = vmatpush1.bf16.msra.mxu0 %v74
  %97 = vmatprep.subr.bf16.mxu0 0
  %98 = vmatpush1.bf16.msra.mxu0 %v73
  %99 = vmatprep.subr.bf16.mxu0 0
  %100 = vmatpush1.bf16.msra.mxu0 %v72
  %101 = vmatprep.subr.bf16.mxu0 0
  %102 = vmatpush1.bf16.msra.mxu0 %v71
  %103 = vmatprep.subr.bf16.mxu0 0
  %104 = vmatpush2.bf16.msra.mxu0 0
  %105 = vmatprep.subr.bf16.mxu0 0
  %106 = vmatpush2.bf16.msra.mxu0 0
  %107 = vmatprep.subr.bf16.mxu0 0
  %108 = vmatpush2.bf16.msra.mxu0 0
  %109 = vmatprep.subr.bf16.mxu0 0
  %110 = vmatpush2.bf16.msra.mxu0 0
  %111 = vmatprep.subr.bf16.mxu0 0
  %112 = vmatpush2.bf16.msra.mxu0 0
  %113 = vmatprep.subr.bf16.mxu0 0
  %114 = vmatpush2.bf16.msra.mxu0 0
  %115 = vmatprep.subr.bf16.mxu0 0
  %116 = vmatpush2.bf16.msra.mxu0 0
  %117 = vmatprep.subr.bf16.mxu0 0
  %118 = vmatpush2.bf16.msra.mxu0 0
  %119 = vmatprep.mubr.bf16.mxu0 0
  %120 = vmatmul.mubr.bf16.gmra.mxu0 %v15
  %v121 = vpop.f32.mrf.mxu0
  %v122 = vadd.f32 %v37, %v121
  %v123 = vpop.f32.mrf.mxu0
  %v124 = vpop.f32.mrf.mxu0
  %v125 = vpop.f32.mrf.mxu0
  %126 = vdwg.mxu0
  %v127 = vtanh.pop %v122
  %v128 = vpack.c.bf16 %v127, %v127
  %129 = vst [vmem:[%s3] sm:$0x1] %v128
  // Predicated region
  $region14: #{pairwise_bert_forward.24} parent=0 // pred_check
    _
  $region15: #{pairwise_bert_forward.24} parent=0 // pred_check_branch
    %131 = sbr.rel (0) target = $region17
  $region16: #{pairwise_bert_forward.24} parent=0 // pred_region
    _
  $region17: #{pairwise_bert_forward.24} parent=0 // pred_fallthru
    _
  // Predicated region
  $region18: #{pairwise_bert_forward.24} parent=0 // pred_check
    _
  $region19: #{pairwise_bert_forward.24} parent=0 // pred_check_branch
    %133 = sbr.rel (0) target = $region21
  $region20: #{pairwise_bert_forward.24} parent=0 // pred_region
    _
  $region21: #{pairwise_bert_forward.24} parent=0 // pred_fallthru
    _

</llo_original>
